<compile_context>
chip_gen: v7x
topology: tpu7x:2x2x1
jax: 0.10.0
libtpu: 0.0.40
codegen_flags: <defaults>
</compile_context>

<pallas_src>
import math

import jax
import jax.numpy as jnp
from jax import lax
from jax.experimental import pallas as pl
from jax.experimental.pallas import tpu as pltpu

EPS = 1e-5  # nn.InstanceNorm2d default eps (affine=False, biased variance)


def _round_up(x, m):
    return ((x + m - 1) // m) * m


def _pick_nb(N, samples_per_step):
    """Samples packed per grid step: amortize step overhead, keep grid >= 2."""
    if samples_per_step is not None:
        assert N % samples_per_step == 0, "samples_per_step must divide batch"
        return samples_per_step
    best = 1
    for nb in range(1, min(8, N) + 1):       # cap unroll bloat at 8 samples
        if N % nb == 0 and (N // nb) >= 2:   # grid >= 2 keeps both v7x TCs busy
            best = nb
    return best


def _make_kernel(H, W, C, Nb, P, Lm, Lo, taps):
    inv_count = 1.0 / float(H * W)

    def kernel(xm_ref, mrow1_ref, mrow2_ref, w1_ref, w2_ref, o_ref, h_ref):
        # Hoisted (not CSE'd by JAX): per-tap weights + interior-mask rows.
        w1_taps = [w1_ref[k] for k in range(9)]            # 9 x (C, C)
        w2_taps = [w2_ref[k] for k in range(9)]
        m1row = jnp.broadcast_to(mrow1_ref[...], (C, Lm))  # conv1 domain mask
        m2row = jnp.broadcast_to(mrow2_ref[...], (C, Lo))  # conv2/output mask

        def inorm_stats(am):
            # am is the interior-masked activation (f32). Masked per-channel
            # sum & sum-of-squares as f32 lane reductions (no mask-column DMA,
            # no concat copy); normalization math stays f32.
            s = jnp.sum(am, axis=-1, keepdims=True)                 # (C, 1)
            ss = jnp.sum(am * am, axis=-1, keepdims=True)           # (C, 1)
            mean = s * inv_count
            var = ss * inv_count - mean * mean                      # biased var
            scale = lax.rsqrt(jnp.maximum(var, 0.0) + EPS)
            return mean, scale

        for b in range(Nb):
            # ---- conv1: 9 shifted tap views fed straight into accumulated
            #      MXU dots (no staging scratch; MXU is idle at C=8).
            acc1 = jnp.dot(w1_taps[0], xm_ref[b, :, pl.ds(P + taps[0], Lm)],
                           preferred_element_type=jnp.float32)
            for k in range(1, 9):
                acc1 = acc1 + jnp.dot(
                    w1_taps[k], xm_ref[b, :, pl.ds(P + taps[k], Lm)],
                    preferred_element_type=jnp.float32)              # (C, Lm)

            am1 = acc1 * m1row                     # masked: stats + conv2 padding
            mean1, scale1 = inorm_stats(am1)
            # TODO(synk): F.dropout(p=0.2) is identity in eval mode; a training
            # mode kernel would need pltpu.prng_* stochastic masking here.
            # relu((acc1-mean1)*scale1)*mask == relu((am1-mean1*mask)*scale1)
            # since scale1 > 0 and mask is 0/1 — one fewer pass over (C, Lm).
            h_ref[...] = jnp.maximum((am1 - mean1 * m1row) * scale1, 0.0)

            # ---- conv2: same direct-dot pattern on the Lo output domain.
            acc2 = jnp.dot(w2_taps[0], h_ref[:, pl.ds(P + taps[0], Lo)],
                           preferred_element_type=jnp.float32)
            for k in range(1, 9):
                acc2 = acc2 + jnp.dot(
                    w2_taps[k], h_ref[:, pl.ds(P + taps[k], Lo)],
                    preferred_element_type=jnp.float32)              # (C, Lo)

            am2 = acc2 * m2row
            mean2, scale2 = inorm_stats(am2)
            res = xm_ref[b, :, pl.ds(2 * P, Lo)]   # residual (zero on ring/tail)
            # TODO(synk): ring/tail lanes hold un-masked garbage; fine because
            # the wrapper slices the interior. Re-mask with m2row before reuse
            # if the padded (N,C,Lo) layout is ever chained between blocks.
            o_ref[b] = jnp.maximum((acc2 - mean2) * scale2 + res, 0.0)

    return kernel


def basic_block_pallas(x, w1, w2, *, samples_per_step=None):
    """x: (N, C, H, W) f32; w1/w2: (C, C, 3, 3) torch OIHW conv weights (no bias)."""
    N, C, H, W = x.shape
    Nb = _pick_nb(N, samples_per_step)

    Hp, Wp = H + 2, W + 2
    L = Hp * Wp                      # zero-padded plane, flattened into lanes
    P = Wp + 1                       # max |flattened 3x3 tap offset|
    Lo = _round_up(L, 128)           # conv2 / output domain (lane-dense stores)
    Lm = _round_up(Lo + 2 * P, 8)    # conv1 domain (margined so conv2's taps are
                                     #   plain lane slices of the h scratch)
    S = 2 * P                        # padded-plane offset inside the input slab
    BUF = _round_up(S + Lm, 128)     # lane-dense input slab
    taps = [(ky - 1) * Wp + (kx - 1) for ky in range(3) for kx in range(3)]

    # ---- wrapper glue: pad, flatten, tiny mask rows, per-tap (C,C) weights.
    # TODO(synk): if BasicBlocks are chained, keep the (N, C, Lo) padded layout
    # between blocks and fuse these pads with the previous block's output.
    x_pad = jnp.pad(x, ((0, 0), (0, 0), (1, 1), (1, 1))).reshape(N, C, L)
    xm = jnp.pad(x_pad.astype(jnp.float32), ((0, 0), (0, 0), (S, BUF - S - L)))

    q = jnp.arange(L)
    r, c = q // Wp, q % Wp
    interior = ((r >= 1) & (r <= H) & (c >= 1) & (c <= W)).astype(jnp.float32)
    mrow1 = jnp.zeros((1, Lm), jnp.float32).at[0, P:P + L].set(interior)
    mrow2 = jnp.zeros((1, Lo), jnp.float32).at[0, :L].set(interior)

    def prep_w(w):   # OIHW -> (9, C_out, C_in), tap-major
        return jnp.transpose(w, (2, 3, 0, 1)).reshape(9, C, C).astype(jnp.float32)

    out = pl.pallas_call(
        _make_kernel(H, W, C, Nb, P, Lm, Lo, taps),
        out_shape=jax.ShapeDtypeStruct((N, C, Lo), jnp.float32),
        grid=(N // Nb,),
        in_specs=[
            pl.BlockSpec((Nb, C, BUF), lambda n: (n, 0, 0)),
            pl.BlockSpec((1, Lm), lambda n: (0, 0)),
            pl.BlockSpec((1, Lo), lambda n: (0, 0)),
            pl.BlockSpec((9, C, C), lambda n: (0, 0, 0)),
            pl.BlockSpec((9, C, C), lambda n: (0, 0, 0)),
        ],
        out_specs=pl.BlockSpec((Nb, C, Lo), lambda n: (n, 0, 0)),
        scratch_shapes=[
            pltpu.VMEM((C, Lm), jnp.float32),   # relu(IN(conv1)), margined
        ],
        compiler_params=pltpu.CompilerParams(
            dimension_semantics=("parallel",)),  # batch splits across TCs (v7x)
    )(xm, mrow1, mrow2, prep_w(w1), prep_w(w2))

    return out[:, :, :L].reshape(N, C, Hp, Wp)[:, :, 1:H + 1, 1:W + 1]


def basic_block_ref(x, w1, w2):
    # Pure-JAX reference mirroring the PyTorch forward (eval mode).
    def conv(t, w):
        return lax.conv_general_dilated(
            t, w, window_strides=(1, 1), padding=((1, 1), (1, 1)),
            dimension_numbers=('NCHW', 'OIHW', 'NCHW'))

    def inorm(t):
        m = jnp.mean(t, axis=(2, 3), keepdims=True)
        v = jnp.mean(jnp.square(t - m), axis=(2, 3), keepdims=True)
        return (t - m) * lax.rsqrt(v + EPS)

    out = jnp.maximum(inorm(conv(x, w1)), 0.0)
    out = inorm(conv(out, w2)) + x
    return jnp.maximum(out, 0.0)


if __name__ == "__main__":
    # inplanes == planes is required by the residual add in BasicBlock.
    N, C, H, W = 2, 8, 16, 16
    key = jax.random.PRNGKey(0)
    kx, k1, k2 = jax.random.split(key, 3)
    bound = 1.0 / math.sqrt(C * 3 * 3)   # torch Conv2d default init range
    x = jax.random.normal(kx, (N, C, H, W), jnp.float32)
    w1 = jax.random.uniform(k1, (C, C, 3, 3), jnp.float32, -bound, bound)
    w2 = jax.random.uniform(k2, (C, C, 3, 3), jnp.float32, -bound, bound)

    out = jax.jit(basic_block_pallas)(x, w1, w2)
    out = jax.block_until_ready(out)

    ref = basic_block_ref(x, w1, w2)
    err = float(jnp.max(jnp.abs(out - ref)))
    assert out.shape == x.shape and err < 1e-3, f"mismatch: max abs err {err}"
    print("KERNEL_OK")
</pallas_src>

<mosaic_0001>
module attributes {stable_mosaic.version = 11 : i64} {
  func.func @kernel(%arg0: i32, %arg1: memref<1x8x512xf32, #tpu.memory_space<vmem>>, %arg2: memref<1x424xf32, #tpu.memory_space<vmem>>, %arg3: memref<1x384xf32, #tpu.memory_space<vmem>>, %arg4: memref<9x8x8xf32, #tpu.memory_space<vmem>>, %arg5: memref<9x8x8xf32, #tpu.memory_space<vmem>>, %arg6: memref<1x8x384xf32, #tpu.memory_space<vmem>>, %arg7: memref<8x424xf32, #tpu.memory_space<vmem>>) attributes {dimension_semantics = [#tpu.dimension_semantics<parallel>], iteration_bounds = array<i64: 2>, scalar_prefetch = 0 : i64, scratch_operands = 1 : i64, tpu.core_type = #tpu.core_type<tc>, window_params = [{transform_indices = @transform_0, window_bounds = array<i64: 1, 8, 512>}, {pipeline_mode = #tpu.pipeline_mode<synchronous>, transform_indices = @transform_1, window_bounds = array<i64: 1, 424>}, {pipeline_mode = #tpu.pipeline_mode<synchronous>, transform_indices = @transform_2, window_bounds = array<i64: 1, 384>}, {pipeline_mode = #tpu.pipeline_mode<synchronous>, transform_indices = @transform_3, window_bounds = array<i64: 9, 8, 8>}, {pipeline_mode = #tpu.pipeline_mode<synchronous>, transform_indices = @transform_4, window_bounds = array<i64: 9, 8, 8>}, {transform_indices = @transform_5, window_bounds = array<i64: 1, 8, 384>}]} {
    %c0 = arith.constant 0 : index
    %c0_0 = arith.constant 0 : index
    %c0_1 = arith.constant 0 : index
    %0 = vector.load %arg4[%c0, %c0_0, %c0_1] : memref<9x8x8xf32, #tpu.memory_space<vmem>>, vector<1x8x8xf32>
    %1 = vector.shape_cast %0 : vector<1x8x8xf32> to vector<8x8xf32>
    %c1 = arith.constant 1 : index
    %c0_2 = arith.constant 0 : index
    %c0_3 = arith.constant 0 : index
    %2 = vector.load %arg4[%c1, %c0_2, %c0_3] : memref<9x8x8xf32, #tpu.memory_space<vmem>>, vector<1x8x8xf32>
    %3 = vector.shape_cast %2 : vector<1x8x8xf32> to vector<8x8xf32>
    %c2 = arith.constant 2 : index
    %c0_4 = arith.constant 0 : index
    %c0_5 = arith.constant 0 : index
    %4 = vector.load %arg4[%c2, %c0_4, %c0_5] : memref<9x8x8xf32, #tpu.memory_space<vmem>>, vector<1x8x8xf32>
    %5 = vector.shape_cast %4 : vector<1x8x8xf32> to vector<8x8xf32>
    %c3 = arith.constant 3 : index
    %c0_6 = arith.constant 0 : index
    %c0_7 = arith.constant 0 : index
    %6 = vector.load %arg4[%c3, %c0_6, %c0_7] : memref<9x8x8xf32, #tpu.memory_space<vmem>>, vector<1x8x8xf32>
    %7 = vector.shape_cast %6 : vector<1x8x8xf32> to vector<8x8xf32>
    %c4 = arith.constant 4 : index
    %c0_8 = arith.constant 0 : index
    %c0_9 = arith.constant 0 : index
    %8 = vector.load %arg4[%c4, %c0_8, %c0_9] : memref<9x8x8xf32, #tpu.memory_space<vmem>>, vector<1x8x8xf32>
    %9 = vector.shape_cast %8 : vector<1x8x8xf32> to vector<8x8xf32>
    %c5 = arith.constant 5 : index
    %c0_10 = arith.constant 0 : index
    %c0_11 = arith.constant 0 : index
    %10 = vector.load %arg4[%c5, %c0_10, %c0_11] : memref<9x8x8xf32, #tpu.memory_space<vmem>>, vector<1x8x8xf32>
    %11 = vector.shape_cast %10 : vector<1x8x8xf32> to vector<8x8xf32>
    %c6 = arith.constant 6 : index
    %c0_12 = arith.constant 0 : index
    %c0_13 = arith.constant 0 : index
    %12 = vector.load %arg4[%c6, %c0_12, %c0_13] : memref<9x8x8xf32, #tpu.memory_space<vmem>>, vector<1x8x8xf32>
    %13 = vector.shape_cast %12 : vector<1x8x8xf32> to vector<8x8xf32>
    %c7 = arith.constant 7 : index
    %c0_14 = arith.constant 0 : index
    %c0_15 = arith.constant 0 : index
    %14 = vector.load %arg4[%c7, %c0_14, %c0_15] : memref<9x8x8xf32, #tpu.memory_space<vmem>>, vector<1x8x8xf32>
    %15 = vector.shape_cast %14 : vector<1x8x8xf32> to vector<8x8xf32>
    %c8 = arith.constant 8 : index
    %c0_16 = arith.constant 0 : index
    %c0_17 = arith.constant 0 : index
    %16 = vector.load %arg4[%c8, %c0_16, %c0_17] : memref<9x8x8xf32, #tpu.memory_space<vmem>>, vector<1x8x8xf32>
    %17 = vector.shape_cast %16 : vector<1x8x8xf32> to vector<8x8xf32>
    %c0_18 = arith.constant 0 : index
    %c0_19 = arith.constant 0 : index
    %c0_20 = arith.constant 0 : index
    %18 = vector.load %arg5[%c0_18, %c0_19, %c0_20] : memref<9x8x8xf32, #tpu.memory_space<vmem>>, vector<1x8x8xf32>
    %19 = vector.shape_cast %18 : vector<1x8x8xf32> to vector<8x8xf32>
    %c1_21 = arith.constant 1 : index
    %c0_22 = arith.constant 0 : index
    %c0_23 = arith.constant 0 : index
    %20 = vector.load %arg5[%c1_21, %c0_22, %c0_23] : memref<9x8x8xf32, #tpu.memory_space<vmem>>, vector<1x8x8xf32>
    %21 = vector.shape_cast %20 : vector<1x8x8xf32> to vector<8x8xf32>
    %c2_24 = arith.constant 2 : index
    %c0_25 = arith.constant 0 : index
    %c0_26 = arith.constant 0 : index
    %22 = vector.load %arg5[%c2_24, %c0_25, %c0_26] : memref<9x8x8xf32, #tpu.memory_space<vmem>>, vector<1x8x8xf32>
    %23 = vector.shape_cast %22 : vector<1x8x8xf32> to vector<8x8xf32>
    %c3_27 = arith.constant 3 : index
    %c0_28 = arith.constant 0 : index
    %c0_29 = arith.constant 0 : index
    %24 = vector.load %arg5[%c3_27, %c0_28, %c0_29] : memref<9x8x8xf32, #tpu.memory_space<vmem>>, vector<1x8x8xf32>
    %25 = vector.shape_cast %24 : vector<1x8x8xf32> to vector<8x8xf32>
    %c4_30 = arith.constant 4 : index
    %c0_31 = arith.constant 0 : index
    %c0_32 = arith.constant 0 : index
    %26 = vector.load %arg5[%c4_30, %c0_31, %c0_32] : memref<9x8x8xf32, #tpu.memory_space<vmem>>, vector<1x8x8xf32>
    %27 = vector.shape_cast %26 : vector<1x8x8xf32> to vector<8x8xf32>
    %c5_33 = arith.constant 5 : index
    %c0_34 = arith.constant 0 : index
    %c0_35 = arith.constant 0 : index
    %28 = vector.load %arg5[%c5_33, %c0_34, %c0_35] : memref<9x8x8xf32, #tpu.memory_space<vmem>>, vector<1x8x8xf32>
    %29 = vector.shape_cast %28 : vector<1x8x8xf32> to vector<8x8xf32>
    %c6_36 = arith.constant 6 : index
    %c0_37 = arith.constant 0 : index
    %c0_38 = arith.constant 0 : index
    %30 = vector.load %arg5[%c6_36, %c0_37, %c0_38] : memref<9x8x8xf32, #tpu.memory_space<vmem>>, vector<1x8x8xf32>
    %31 = vector.shape_cast %30 : vector<1x8x8xf32> to vector<8x8xf32>
    %c7_39 = arith.constant 7 : index
    %c0_40 = arith.constant 0 : index
    %c0_41 = arith.constant 0 : index
    %32 = vector.load %arg5[%c7_39, %c0_40, %c0_41] : memref<9x8x8xf32, #tpu.memory_space<vmem>>, vector<1x8x8xf32>
    %33 = vector.shape_cast %32 : vector<1x8x8xf32> to vector<8x8xf32>
    %c8_42 = arith.constant 8 : index
    %c0_43 = arith.constant 0 : index
    %c0_44 = arith.constant 0 : index
    %34 = vector.load %arg5[%c8_42, %c0_43, %c0_44] : memref<9x8x8xf32, #tpu.memory_space<vmem>>, vector<1x8x8xf32>
    %35 = vector.shape_cast %34 : vector<1x8x8xf32> to vector<8x8xf32>
    %c0_45 = arith.constant 0 : index
    %c0_46 = arith.constant 0 : index
    %36 = vector.load %arg2[%c0_45, %c0_46] : memref<1x424xf32, #tpu.memory_space<vmem>>, vector<1x424xf32>
    %37 = vector.shape_cast %36 : vector<1x424xf32> to vector<1x424xf32>
    %38 = vector.broadcast %37 : vector<1x424xf32> to vector<8x424xf32>
    %c0_47 = arith.constant 0 : index
    %c0_48 = arith.constant 0 : index
    %39 = vector.load %arg3[%c0_47, %c0_48] : memref<1x384xf32, #tpu.memory_space<vmem>>, vector<1x384xf32>
    %40 = vector.shape_cast %39 : vector<1x384xf32> to vector<1x384xf32>
    %41 = vector.broadcast %40 : vector<1x384xf32> to vector<8x384xf32>
    %c0_49 = arith.constant 0 : index
    %c0_50 = arith.constant 0 : index
    %c0_51 = arith.constant 0 : index
    %42 = vector.load %arg1[%c0_49, %c0_50, %c0_51] : memref<1x8x512xf32, #tpu.memory_space<vmem>>, vector<1x8x424xf32>
    %43 = vector.shape_cast %42 : vector<1x8x424xf32> to vector<8x424xf32>
    %cst = arith.constant dense<0.000000e+00> : vector<8x424xf32>
    %44 = tpu.matmul %1, %43, %cst {dimension_numbers = #tpu.dot_dimension_numbers<[1], [0], [0], [1], [0, 0, 1, 1], [], []>} : vector<8x8xf32>, vector<8x424xf32>, vector<8x424xf32> -> vector<8x424xf32>
    %c0_52 = arith.constant 0 : index
    %c0_53 = arith.constant 0 : index
    %c1_54 = arith.constant 1 : index
    %45 = vector.load %arg1[%c0_52, %c0_53, %c1_54] : memref<1x8x512xf32, #tpu.memory_space<vmem>>, vector<1x8x424xf32>
    %46 = vector.shape_cast %45 : vector<1x8x424xf32> to vector<8x424xf32>
    %cst_55 = arith.constant dense<0.000000e+00> : vector<8x424xf32>
    %47 = tpu.matmul %3, %46, %cst_55 {dimension_numbers = #tpu.dot_dimension_numbers<[1], [0], [0], [1], [0, 0, 1, 1], [], []>} : vector<8x8xf32>, vector<8x424xf32>, vector<8x424xf32> -> vector<8x424xf32>
    %48 = arith.addf %44, %47 : vector<8x424xf32>
    %c0_56 = arith.constant 0 : index
    %c0_57 = arith.constant 0 : index
    %c2_58 = arith.constant 2 : index
    %49 = vector.load %arg1[%c0_56, %c0_57, %c2_58] : memref<1x8x512xf32, #tpu.memory_space<vmem>>, vector<1x8x424xf32>
    %50 = vector.shape_cast %49 : vector<1x8x424xf32> to vector<8x424xf32>
    %cst_59 = arith.constant dense<0.000000e+00> : vector<8x424xf32>
    %51 = tpu.matmul %5, %50, %cst_59 {dimension_numbers = #tpu.dot_dimension_numbers<[1], [0], [0], [1], [0, 0, 1, 1], [], []>} : vector<8x8xf32>, vector<8x424xf32>, vector<8x424xf32> -> vector<8x424xf32>
    %52 = arith.addf %48, %51 : vector<8x424xf32>
    %c0_60 = arith.constant 0 : index
    %c0_61 = arith.constant 0 : index
    %c18 = arith.constant 18 : index
    %53 = vector.load %arg1[%c0_60, %c0_61, %c18] : memref<1x8x512xf32, #tpu.memory_space<vmem>>, vector<1x8x424xf32>
    %54 = vector.shape_cast %53 : vector<1x8x424xf32> to vector<8x424xf32>
    %cst_62 = arith.constant dense<0.000000e+00> : vector<8x424xf32>
    %55 = tpu.matmul %7, %54, %cst_62 {dimension_numbers = #tpu.dot_dimension_numbers<[1], [0], [0], [1], [0, 0, 1, 1], [], []>} : vector<8x8xf32>, vector<8x424xf32>, vector<8x424xf32> -> vector<8x424xf32>
    %56 = arith.addf %52, %55 : vector<8x424xf32>
    %c0_63 = arith.constant 0 : index
    %c0_64 = arith.constant 0 : index
    %c19 = arith.constant 19 : index
    %57 = vector.load %arg1[%c0_63, %c0_64, %c19] : memref<1x8x512xf32, #tpu.memory_space<vmem>>, vector<1x8x424xf32>
    %58 = vector.shape_cast %57 : vector<1x8x424xf32> to vector<8x424xf32>
    %cst_65 = arith.constant dense<0.000000e+00> : vector<8x424xf32>
    %59 = tpu.matmul %9, %58, %cst_65 {dimension_numbers = #tpu.dot_dimension_numbers<[1], [0], [0], [1], [0, 0, 1, 1], [], []>} : vector<8x8xf32>, vector<8x424xf32>, vector<8x424xf32> -> vector<8x424xf32>
    %60 = arith.addf %56, %59 : vector<8x424xf32>
    %c0_66 = arith.constant 0 : index
    %c0_67 = arith.constant 0 : index
    %c20 = arith.constant 20 : index
    %61 = vector.load %arg1[%c0_66, %c0_67, %c20] : memref<1x8x512xf32, #tpu.memory_space<vmem>>, vector<1x8x424xf32>
    %62 = vector.shape_cast %61 : vector<1x8x424xf32> to vector<8x424xf32>
    %cst_68 = arith.constant dense<0.000000e+00> : vector<8x424xf32>
    %63 = tpu.matmul %11, %62, %cst_68 {dimension_numbers = #tpu.dot_dimension_numbers<[1], [0], [0], [1], [0, 0, 1, 1], [], []>} : vector<8x8xf32>, vector<8x424xf32>, vector<8x424xf32> -> vector<8x424xf32>
    %64 = arith.addf %60, %63 : vector<8x424xf32>
    %c0_69 = arith.constant 0 : index
    %c0_70 = arith.constant 0 : index
    %c36 = arith.constant 36 : index
    %65 = vector.load %arg1[%c0_69, %c0_70, %c36] : memref<1x8x512xf32, #tpu.memory_space<vmem>>, vector<1x8x424xf32>
    %66 = vector.shape_cast %65 : vector<1x8x424xf32> to vector<8x424xf32>
    %cst_71 = arith.constant dense<0.000000e+00> : vector<8x424xf32>
    %67 = tpu.matmul %13, %66, %cst_71 {dimension_numbers = #tpu.dot_dimension_numbers<[1], [0], [0], [1], [0, 0, 1, 1], [], []>} : vector<8x8xf32>, vector<8x424xf32>, vector<8x424xf32> -> vector<8x424xf32>
    %68 = arith.addf %64, %67 : vector<8x424xf32>
    %c0_72 = arith.constant 0 : index
    %c0_73 = arith.constant 0 : index
    %c37 = arith.constant 37 : index
    %69 = vector.load %arg1[%c0_72, %c0_73, %c37] : memref<1x8x512xf32, #tpu.memory_space<vmem>>, vector<1x8x424xf32>
    %70 = vector.shape_cast %69 : vector<1x8x424xf32> to vector<8x424xf32>
    %cst_74 = arith.constant dense<0.000000e+00> : vector<8x424xf32>
    %71 = tpu.matmul %15, %70, %cst_74 {dimension_numbers = #tpu.dot_dimension_numbers<[1], [0], [0], [1], [0, 0, 1, 1], [], []>} : vector<8x8xf32>, vector<8x424xf32>, vector<8x424xf32> -> vector<8x424xf32>
    %72 = arith.addf %68, %71 : vector<8x424xf32>
    %c0_75 = arith.constant 0 : index
    %c0_76 = arith.constant 0 : index
    %c38 = arith.constant 38 : index
    %73 = vector.load %arg1[%c0_75, %c0_76, %c38] : memref<1x8x512xf32, #tpu.memory_space<vmem>>, vector<1x8x424xf32>
    %74 = vector.shape_cast %73 : vector<1x8x424xf32> to vector<8x424xf32>
    %cst_77 = arith.constant dense<0.000000e+00> : vector<8x424xf32>
    %75 = tpu.matmul %17, %74, %cst_77 {dimension_numbers = #tpu.dot_dimension_numbers<[1], [0], [0], [1], [0, 0, 1, 1], [], []>} : vector<8x8xf32>, vector<8x424xf32>, vector<8x424xf32> -> vector<8x424xf32>
    %76 = arith.addf %72, %75 : vector<8x424xf32>
    %77 = arith.mulf %76, %38 : vector<8x424xf32>
    %cst_78 = arith.constant dense<0.000000e+00> : vector<8xf32>
    %78 = vector.multi_reduction <add>, %77, %cst_78 [1] : vector<8x424xf32> to vector<8xf32>
    %79 = vector.shape_cast %78 : vector<8xf32> to vector<8x1xf32>
    %80 = arith.mulf %77, %77 : vector<8x424xf32>
    %cst_79 = arith.constant dense<0.000000e+00> : vector<8xf32>
    %81 = vector.multi_reduction <add>, %80, %cst_79 [1] : vector<8x424xf32> to vector<8xf32>
    %82 = vector.shape_cast %81 : vector<8xf32> to vector<8x1xf32>
    %cst_80 = arith.constant 3.906250e-03 : f32
    %83 = vector.broadcast %cst_80 : f32 to vector<8x1xf32>
    %84 = arith.mulf %79, %83 : vector<8x1xf32>
    %cst_81 = arith.constant 3.906250e-03 : f32
    %85 = vector.broadcast %cst_81 : f32 to vector<8x1xf32>
    %86 = arith.mulf %82, %85 : vector<8x1xf32>
    %87 = arith.mulf %84, %84 : vector<8x1xf32>
    %88 = arith.subf %86, %87 : vector<8x1xf32>
    %cst_82 = arith.constant 0.000000e+00 : f32
    %89 = vector.broadcast %cst_82 : f32 to vector<8x1xf32>
    %90 = arith.maximumf %88, %89 : vector<8x1xf32>
    %cst_83 = arith.constant 9.99999974E-6 : f32
    %91 = vector.broadcast %cst_83 : f32 to vector<8x1xf32>
    %92 = arith.addf %90, %91 : vector<8x1xf32>
    %93 = math.rsqrt %92 : vector<8x1xf32>
    %94 = vector.broadcast %84 : vector<8x1xf32> to vector<8x424xf32>
    %95 = arith.mulf %94, %38 : vector<8x424xf32>
    %96 = arith.subf %77, %95 : vector<8x424xf32>
    %97 = vector.broadcast %93 : vector<8x1xf32> to vector<8x424xf32>
    %98 = arith.mulf %96, %97 : vector<8x424xf32>
    %cst_84 = arith.constant 0.000000e+00 : f32
    %99 = vector.broadcast %cst_84 : f32 to vector<8x424xf32>
    %100 = arith.maximumf %98, %99 : vector<8x424xf32>
    %c0_85 = arith.constant 0 : index
    %c0_86 = arith.constant 0 : index
    %101 = vector.load %arg7[%c0_85, %c0_86] : memref<8x424xf32, #tpu.memory_space<vmem>>, vector<8x424xf32>
    tpu.vector_store %arg7[%c0_85, %c0_86], %100 {strides = array<i32>} : memref<8x424xf32, #tpu.memory_space<vmem>>, vector<8x424xf32>,
    %c0_87 = arith.constant 0 : index
    %c0_88 = arith.constant 0 : index
    %102 = vector.load %arg7[%c0_87, %c0_88] : memref<8x424xf32, #tpu.memory_space<vmem>>, vector<8x384xf32>
    %cst_89 = arith.constant dense<0.000000e+00> : vector<8x384xf32>
    %103 = tpu.matmul %19, %102, %cst_89 {dimension_numbers = #tpu.dot_dimension_numbers<[1], [0], [0], [1], [0, 0, 1, 1], [], []>} : vector<8x8xf32>, vector<8x384xf32>, vector<8x384xf32> -> vector<8x384xf32>
    %c0_90 = arith.constant 0 : index
    %c1_91 = arith.constant 1 : index
    %104 = vector.load %arg7[%c0_90, %c1_91] : memref<8x424xf32, #tpu.memory_space<vmem>>, vector<8x384xf32>
    %cst_92 = arith.constant dense<0.000000e+00> : vector<8x384xf32>
    %105 = tpu.matmul %21, %104, %cst_92 {dimension_numbers = #tpu.dot_dimension_numbers<[1], [0], [0], [1], [0, 0, 1, 1], [], []>} : vector<8x8xf32>, vector<8x384xf32>, vector<8x384xf32> -> vector<8x384xf32>
    %106 = arith.addf %103, %105 : vector<8x384xf32>
    %c0_93 = arith.constant 0 : index
    %c2_94 = arith.constant 2 : index
    %107 = vector.load %arg7[%c0_93, %c2_94] : memref<8x424xf32, #tpu.memory_space<vmem>>, vector<8x384xf32>
    %cst_95 = arith.constant dense<0.000000e+00> : vector<8x384xf32>
    %108 = tpu.matmul %23, %107, %cst_95 {dimension_numbers = #tpu.dot_dimension_numbers<[1], [0], [0], [1], [0, 0, 1, 1], [], []>} : vector<8x8xf32>, vector<8x384xf32>, vector<8x384xf32> -> vector<8x384xf32>
    %109 = arith.addf %106, %108 : vector<8x384xf32>
    %c0_96 = arith.constant 0 : index
    %c18_97 = arith.constant 18 : index
    %110 = vector.load %arg7[%c0_96, %c18_97] : memref<8x424xf32, #tpu.memory_space<vmem>>, vector<8x384xf32>
    %cst_98 = arith.constant dense<0.000000e+00> : vector<8x384xf32>
    %111 = tpu.matmul %25, %110, %cst_98 {dimension_numbers = #tpu.dot_dimension_numbers<[1], [0], [0], [1], [0, 0, 1, 1], [], []>} : vector<8x8xf32>, vector<8x384xf32>, vector<8x384xf32> -> vector<8x384xf32>
    %112 = arith.addf %109, %111 : vector<8x384xf32>
    %c0_99 = arith.constant 0 : index
    %c19_100 = arith.constant 19 : index
    %113 = vector.load %arg7[%c0_99, %c19_100] : memref<8x424xf32, #tpu.memory_space<vmem>>, vector<8x384xf32>
    %cst_101 = arith.constant dense<0.000000e+00> : vector<8x384xf32>
    %114 = tpu.matmul %27, %113, %cst_101 {dimension_numbers = #tpu.dot_dimension_numbers<[1], [0], [0], [1], [0, 0, 1, 1], [], []>} : vector<8x8xf32>, vector<8x384xf32>, vector<8x384xf32> -> vector<8x384xf32>
    %115 = arith.addf %112, %114 : vector<8x384xf32>
    %c0_102 = arith.constant 0 : index
    %c20_103 = arith.constant 20 : index
    %116 = vector.load %arg7[%c0_102, %c20_103] : memref<8x424xf32, #tpu.memory_space<vmem>>, vector<8x384xf32>
    %cst_104 = arith.constant dense<0.000000e+00> : vector<8x384xf32>
    %117 = tpu.matmul %29, %116, %cst_104 {dimension_numbers = #tpu.dot_dimension_numbers<[1], [0], [0], [1], [0, 0, 1, 1], [], []>} : vector<8x8xf32>, vector<8x384xf32>, vector<8x384xf32> -> vector<8x384xf32>
    %118 = arith.addf %115, %117 : vector<8x384xf32>
    %c0_105 = arith.constant 0 : index
    %c36_106 = arith.constant 36 : index
    %119 = vector.load %arg7[%c0_105, %c36_106] : memref<8x424xf32, #tpu.memory_space<vmem>>, vector<8x384xf32>
    %cst_107 = arith.constant dense<0.000000e+00> : vector<8x384xf32>
    %120 = tpu.matmul %31, %119, %cst_107 {dimension_numbers = #tpu.dot_dimension_numbers<[1], [0], [0], [1], [0, 0, 1, 1], [], []>} : vector<8x8xf32>, vector<8x384xf32>, vector<8x384xf32> -> vector<8x384xf32>
    %121 = arith.addf %118, %120 : vector<8x384xf32>
    %c0_108 = arith.constant 0 : index
    %c37_109 = arith.constant 37 : index
    %122 = vector.load %arg7[%c0_108, %c37_109] : memref<8x424xf32, #tpu.memory_space<vmem>>, vector<8x384xf32>
    %cst_110 = arith.constant dense<0.000000e+00> : vector<8x384xf32>
    %123 = tpu.matmul %33, %122, %cst_110 {dimension_numbers = #tpu.dot_dimension_numbers<[1], [0], [0], [1], [0, 0, 1, 1], [], []>} : vector<8x8xf32>, vector<8x384xf32>, vector<8x384xf32> -> vector<8x384xf32>
    %124 = arith.addf %121, %123 : vector<8x384xf32>
    %c0_111 = arith.constant 0 : index
    %c38_112 = arith.constant 38 : index
    %125 = vector.load %arg7[%c0_111, %c38_112] : memref<8x424xf32, #tpu.memory_space<vmem>>, vector<8x384xf32>
    %cst_113 = arith.constant dense<0.000000e+00> : vector<8x384xf32>
    %126 = tpu.matmul %35, %125, %cst_113 {dimension_numbers = #tpu.dot_dimension_numbers<[1], [0], [0], [1], [0, 0, 1, 1], [], []>} : vector<8x8xf32>, vector<8x384xf32>, vector<8x384xf32> -> vector<8x384xf32>
    %127 = arith.addf %124, %126 : vector<8x384xf32>
    %128 = arith.mulf %127, %41 : vector<8x384xf32>
    %cst_114 = arith.constant dense<0.000000e+00> : vector<8xf32>
    %129 = vector.multi_reduction <add>, %128, %cst_114 [1] : vector<8x384xf32> to vector<8xf32>
    %130 = vector.shape_cast %129 : vector<8xf32> to vector<8x1xf32>
    %131 = arith.mulf %128, %128 : vector<8x384xf32>
    %cst_115 = arith.constant dense<0.000000e+00> : vector<8xf32>
    %132 = vector.multi_reduction <add>, %131, %cst_115 [1] : vector<8x384xf32> to vector<8xf32>
    %133 = vector.shape_cast %132 : vector<8xf32> to vector<8x1xf32>
    %cst_116 = arith.constant 3.906250e-03 : f32
    %134 = vector.broadcast %cst_116 : f32 to vector<8x1xf32>
    %135 = arith.mulf %130, %134 : vector<8x1xf32>
    %cst_117 = arith.constant 3.906250e-03 : f32
    %136 = vector.broadcast %cst_117 : f32 to vector<8x1xf32>
    %137 = arith.mulf %133, %136 : vector<8x1xf32>
    %138 = arith.mulf %135, %135 : vector<8x1xf32>
    %139 = arith.subf %137, %138 : vector<8x1xf32>
    %cst_118 = arith.constant 0.000000e+00 : f32
    %140 = vector.broadcast %cst_118 : f32 to vector<8x1xf32>
    %141 = arith.maximumf %139, %140 : vector<8x1xf32>
    %cst_119 = arith.constant 9.99999974E-6 : f32
    %142 = vector.broadcast %cst_119 : f32 to vector<8x1xf32>
    %143 = arith.addf %141, %142 : vector<8x1xf32>
    %144 = math.rsqrt %143 : vector<8x1xf32>
    %c0_120 = arith.constant 0 : index
    %c0_121 = arith.constant 0 : index
    %c38_122 = arith.constant 38 : index
    %145 = vector.load %arg1[%c0_120, %c0_121, %c38_122] : memref<1x8x512xf32, #tpu.memory_space<vmem>>, vector<1x8x384xf32>
    %146 = vector.shape_cast %145 : vector<1x8x384xf32> to vector<8x384xf32>
    %147 = vector.broadcast %135 : vector<8x1xf32> to vector<8x384xf32>
    %148 = arith.subf %127, %147 : vector<8x384xf32>
    %149 = vector.broadcast %144 : vector<8x1xf32> to vector<8x384xf32>
    %150 = arith.mulf %148, %149 : vector<8x384xf32>
    %151 = arith.addf %150, %146 : vector<8x384xf32>
    %cst_123 = arith.constant 0.000000e+00 : f32
    %152 = vector.broadcast %cst_123 : f32 to vector<8x384xf32>
    %153 = arith.maximumf %151, %152 : vector<8x384xf32>
    %c0_124 = arith.constant 0 : index
    %c0_125 = arith.constant 0 : index
    %c0_126 = arith.constant 0 : index
    %154 = vector.load %arg6[%c0_124, %c0_125, %c0_126] : memref<1x8x384xf32, #tpu.memory_space<vmem>>, vector<1x8x384xf32>
    %155 = vector.shape_cast %154 : vector<1x8x384xf32> to vector<8x384xf32>
    %156 = vector.shape_cast %153 : vector<8x384xf32> to vector<1x8x384xf32>
    tpu.vector_store %arg6[%c0_124, %c0_125, %c0_126], %156 {strides = array<i32>} : memref<1x8x384xf32, #tpu.memory_space<vmem>>, vector<1x8x384xf32>,
    return
  }
  func.func @transform_0(%arg0: i32) -> (i32, i32, i32) {
    %c0_i32 = arith.constant 0 : i32
    %c0_i32_0 = arith.constant 0 : i32
    %c0_i32_1 = arith.constant 0 : i32
    return %arg0, %c0_i32, %c0_i32_0 : i32, i32, i32
  }
  func.func @transform_1(%arg0: i32) -> (i32, i32) {
    %c0_i32 = arith.constant 0 : i32
    %c0_i32_0 = arith.constant 0 : i32
    %c0_i32_1 = arith.constant 0 : i32
    return %c0_i32, %c0_i32_0 : i32, i32
  }
  func.func @transform_2(%arg0: i32) -> (i32, i32) {
    %c0_i32 = arith.constant 0 : i32
    %c0_i32_0 = arith.constant 0 : i32
    %c0_i32_1 = arith.constant 0 : i32
    return %c0_i32, %c0_i32_0 : i32, i32
  }
  func.func @transform_3(%arg0: i32) -> (i32, i32, i32) {
    %c0_i32 = arith.constant 0 : i32
    %c0_i32_0 = arith.constant 0 : i32
    %c0_i32_1 = arith.constant 0 : i32
    %c0_i32_2 = arith.constant 0 : i32
    return %c0_i32, %c0_i32_0, %c0_i32_1 : i32, i32, i32
  }
  func.func @transform_4(%arg0: i32) -> (i32, i32, i32) {
    %c0_i32 = arith.constant 0 : i32
    %c0_i32_0 = arith.constant 0 : i32
    %c0_i32_1 = arith.constant 0 : i32
    %c0_i32_2 = arith.constant 0 : i32
    return %c0_i32, %c0_i32_0, %c0_i32_1 : i32, i32, i32
  }
  func.func @transform_5(%arg0: i32) -> (i32, i32, i32) {
    %c0_i32 = arith.constant 0 : i32
    %c0_i32_0 = arith.constant 0 : i32
    %c0_i32_1 = arith.constant 0 : i32
    return %arg0, %c0_i32, %c0_i32_0 : i32, i32, i32
  }
}

</mosaic_0001>

<llo_original>
// kernel: basic_block_pallas.1
$region0: #{basic_block_pallas.1}
  #allocation0 [shape = 'u32[]', space=smem, size = 0x4, offset = 0x4, fixed_abs, tag = 'smem constant byte address 0x4 - core index']
  #allocation1 [shape = 'u32[144,128]{1,0:T(1,128)}', space=vmem, size = 0x12000, scoped, tag = 'internal scratch']
  #allocation2 [shape = 'f32[8,424]{1,0:T(8,128)}', space=vmem, size = 0x4000, scoped, tag = 'scratch operand']
  %s0 = inlined_call_operand.vmem [shape: f32[2,8,512], index: 0, kind: input, shape index: {}]
  %s1 = inlined_call_operand.vmem [shape: f32[1,424], index: 1, kind: input, shape index: {}]
  %s2 = inlined_call_operand.vmem [shape: f32[1,384], index: 2, kind: input, shape index: {}]
  %s3 = inlined_call_operand.vmem [shape: f32[9,8,8], index: 3, kind: input, shape index: {}]
  %s4 = inlined_call_operand.vmem [shape: f32[9,8,8], index: 4, kind: input, shape index: {}]
  %s5 = inlined_call_operand.vmem [shape: f32[2,8,384], index: 5, kind: output, shape index: {}]
  %s6 = sld [smem:[#allocation0]]
  $region53: #{basic_block_pallas.1} parent=0
    _
  %s8 = ssub.s32 1, %s6
  %s9 = scalar_select 0, %s8, %s6
  loop: start=0, step=1, limit=4
  $region2: #{basic_block_pallas.1} parent=0 // loop_pre_header
    _
  $region3: #{basic_block_pallas.1} parent=0 // loop_header
    %s11 = sphi 0, %s15
    %p12 = scmp.ge.s32.totalorder %s11, 4
    %s21 = sphi 0, %s23
    %s24 = sphi 0, %s21
    %s25 = sphi 0, %s24
    %s41 = sphi 0, %s25
    %s45 = sphi 0, %s45
    %s47 = sphi 0, %s45
    %s48 = sphi 0, %s47
    %s62 = sphi 0, %s48
    %s66 = sphi 0, %s66
    %s68 = sphi 0, %s66
    %s69 = sphi 0, %s68
    %s83 = sphi 0, %s69
    %s87 = sphi 0, %s87
    %s89 = sphi 0, %s87
    %s90 = sphi 0, %s89
    %s104 = sphi 0, %s90
    %s108 = sphi 0, %s108
    %s110 = sphi 0, %s108
    %s111 = sphi 0, %s110
    %s125 = sphi 0, %s111
    %s131 = sphi 0, %s133
    %s134 = sphi 0, %s131
    %s135 = sphi 0, %s134
    %s151 = sphi 0, %s135
  $region4: #{basic_block_pallas.1} parent=0 // loop_header_branch
    %14 = sbr.rel (%p12) target = $region8
  $region5: #{basic_block_pallas.1} parent=0 // loop_body
    %s16 = ssub.s32 %s11, 1
    %s17 = ssub.s32 %s11, 2
    %s18 = sadd.s32 %s11, 1
    %s19 = ssub.s32 %s11, %s18
    %p20 = scmp.eq.s32.totalorder %s19, 0
    %s22 = sadd.s32 %s21, 1
    %s23 = scalar_select %p20, %s21, %s22
    %p26 = pneg %p20
    %p27 = scmp.eq.s32.totalorder %s11, 1
    %p28 = por %p26, %p27
    %p29 = scmp.ne.s32.totalorder %s21, %s24
    %p30 = scmp.eq.s32.totalorder %s11, 0
    %p31 = por %p29, %p30
    %p32 = scmp.ne.s32.totalorder %s21, %s24
    %p33 = scmp.eq.s32.totalorder %s16, 1
    %p34 = por %p32, %p33
    %p35 = scmp.ne.s32.totalorder %s24, %s25
    %p36 = scmp.eq.s32.totalorder %s16, 0
    %p37 = por %p35, %p36
    %p38 = scmp.ne.s32.totalorder %s24, %s25
    %p39 = scmp.eq.s32.totalorder %s17, 1
    %p40 = por %p38, %p39
    %p42 = scmp.ne.s32.totalorder %s25, %s41
    %p43 = scmp.eq.s32.totalorder %s17, 0
    %p44 = por %p42, %p43
    %s46 = sadd.s32 %s45, 1
    %p49 = scmp.eq.s32.totalorder %s11, 1
    %p50 = scmp.ne.s32.totalorder %s45, %s47
    %p51 = scmp.eq.s32.totalorder %s11, 0
    %p52 = por %p50, %p51
    %p53 = scmp.ne.s32.totalorder %s45, %s47
    %p54 = scmp.eq.s32.totalorder %s16, 1
    %p55 = por %p53, %p54
    %p56 = scmp.ne.s32.totalorder %s47, %s48
    %p57 = scmp.eq.s32.totalorder %s16, 0
    %p58 = por %p56, %p57
    %p59 = scmp.ne.s32.totalorder %s47, %s48
    %p60 = scmp.eq.s32.totalorder %s17, 1
    %p61 = por %p59, %p60
    %p63 = scmp.ne.s32.totalorder %s48, %s62
    %p64 = scmp.eq.s32.totalorder %s17, 0
    %p65 = por %p63, %p64
    %s67 = sadd.s32 %s66, 1
    %p70 = scmp.eq.s32.totalorder %s11, 1
    %p71 = scmp.ne.s32.totalorder %s66, %s68
    %p72 = scmp.eq.s32.totalorder %s11, 0
    %p73 = por %p71, %p72
    %p74 = scmp.ne.s32.totalorder %s66, %s68
    %p75 = scmp.eq.s32.totalorder %s16, 1
    %p76 = por %p74, %p75
    %p77 = scmp.ne.s32.totalorder %s68, %s69
    %p78 = scmp.eq.s32.totalorder %s16, 0
    %p79 = por %p77, %p78
    %p80 = scmp.ne.s32.totalorder %s68, %s69
    %p81 = scmp.eq.s32.totalorder %s17, 1
    %p82 = por %p80, %p81
    %p84 = scmp.ne.s32.totalorder %s69, %s83
    %p85 = scmp.eq.s32.totalorder %s17, 0
    %p86 = por %p84, %p85
    %s88 = sadd.s32 %s87, 1
    %p91 = scmp.eq.s32.totalorder %s11, 1
    %p92 = scmp.ne.s32.totalorder %s87, %s89
    %p93 = scmp.eq.s32.totalorder %s11, 0
    %p94 = por %p92, %p93
    %p95 = scmp.ne.s32.totalorder %s87, %s89
    %p96 = scmp.eq.s32.totalorder %s16, 1
    %p97 = por %p95, %p96
    %p98 = scmp.ne.s32.totalorder %s89, %s90
    %p99 = scmp.eq.s32.totalorder %s16, 0
    %p100 = por %p98, %p99
    %p101 = scmp.ne.s32.totalorder %s89, %s90
    %p102 = scmp.eq.s32.totalorder %s17, 1
    %p103 = por %p101, %p102
    %p105 = scmp.ne.s32.totalorder %s90, %s104
    %p106 = scmp.eq.s32.totalorder %s17, 0
    %p107 = por %p105, %p106
    %s109 = sadd.s32 %s108, 1
    %p112 = scmp.eq.s32.totalorder %s11, 1
    %p113 = scmp.ne.s32.totalorder %s108, %s110
    %p114 = scmp.eq.s32.totalorder %s11, 0
    %p115 = por %p113, %p114
    %p116 = scmp.ne.s32.totalorder %s108, %s110
    %p117 = scmp.eq.s32.totalorder %s16, 1
    %p118 = por %p116, %p117
    %p119 = scmp.ne.s32.totalorder %s110, %s111
    %p120 = scmp.eq.s32.totalorder %s16, 0
    %p121 = por %p119, %p120
    %p122 = scmp.ne.s32.totalorder %s110, %s111
    %p123 = scmp.eq.s32.totalorder %s17, 1
    %p124 = por %p122, %p123
    %p126 = scmp.ne.s32.totalorder %s111, %s125
    %p127 = scmp.eq.s32.totalorder %s17, 0
    %p128 = por %p126, %p127
    %s129 = ssub.s32 %s11, %s18
    %p130 = scmp.eq.s32.totalorder %s129, 0
    %s132 = sadd.s32 %s131, 1
    %s133 = scalar_select %p130, %s131, %s132
    %p136 = pneg %p130
    %p137 = scmp.eq.s32.totalorder %s11, 1
    %p138 = por %p136, %p137
    %p139 = scmp.ne.s32.totalorder %s131, %s134
    %p140 = scmp.eq.s32.totalorder %s11, 0
    %p141 = por %p139, %p140
    %p142 = scmp.ne.s32.totalorder %s131, %s134
    %p143 = scmp.eq.s32.totalorder %s16, 1
    %p144 = por %p142, %p143
    %p145 = scmp.ne.s32.totalorder %s134, %s135
    %p146 = scmp.eq.s32.totalorder %s16, 0
    %p147 = por %p145, %p146
    %p148 = scmp.ne.s32.totalorder %s134, %s135
    %p149 = scmp.eq.s32.totalorder %s17, 1
    %p150 = por %p148, %p149
    %p152 = scmp.ne.s32.totalorder %s135, %s151
    %p153 = scmp.eq.s32.totalorder %s17, 0
    %p154 = por %p152, %p153
    %p155 = scmp.le.s32.totalorder 1, %s11
    %p156 = scmp.lt.s32.totalorder %s11, 3
    %p157 = pnand %p155, %p156
    %p158 = pneg %p157
    // Predicated region
    $region9: #{basic_block_pallas.1} parent=5 // pred_check
      _
    $region10: #{basic_block_pallas.1} parent=5 // pred_check_branch
      %160 = sbr.rel (%p157) target = $region12
    $region11: #{basic_block_pallas.1} parent=5 // pred_region
      %s161 = ssub.s32 %s11, 1
      // Predicated region
      $region13: #{basic_block_pallas.1} parent=11 // pred_check
        %p162 = pneg %p58
      $region14: #{basic_block_pallas.1} parent=11 // pred_check_branch
        %164 = sbr.rel (%p162) target = $region16
      $region15: #{basic_block_pallas.1} parent=11 // pred_region
        _
      $region16: #{basic_block_pallas.1} parent=11 // pred_fallthru
        _
      // Predicated region
      $region17: #{basic_block_pallas.1} parent=11 // pred_check
        %p165 = pneg %p79
      $region18: #{basic_block_pallas.1} parent=11 // pred_check_branch
        %167 = sbr.rel (%p165) target = $region20
      $region19: #{basic_block_pallas.1} parent=11 // pred_region
        _
      $region20: #{basic_block_pallas.1} parent=11 // pred_fallthru
        _
      // Predicated region
      $region21: #{basic_block_pallas.1} parent=11 // pred_check
        %p168 = pneg %p100
      $region22: #{basic_block_pallas.1} parent=11 // pred_check_branch
        %170 = sbr.rel (%p168) target = $region24
      $region23: #{basic_block_pallas.1} parent=11 // pred_region
        _
      $region24: #{basic_block_pallas.1} parent=11 // pred_fallthru
        _
      // Predicated region
      $region25: #{basic_block_pallas.1} parent=11 // pred_check
        %p171 = pneg %p121
      $region26: #{basic_block_pallas.1} parent=11 // pred_check_branch
        %173 = sbr.rel (%p171) target = $region28
      $region27: #{basic_block_pallas.1} parent=11 // pred_region
        _
      $region28: #{basic_block_pallas.1} parent=11 // pred_fallthru
        _
    $region12: #{basic_block_pallas.1} parent=5 // pred_fallthru
      _
    %p174 = scmp.lt.s32.totalorder %s11, 2
    // Predicated region
    $region29: #{basic_block_pallas.1} parent=5 // pred_check
      %p175 = pneg %p174
    $region30: #{basic_block_pallas.1} parent=5 // pred_check_branch
      %177 = sbr.rel (%p175) target = $region32
    $region31: #{basic_block_pallas.1} parent=5 // pred_region
      // Predicated region
      $region33: #{basic_block_pallas.1} parent=31 // pred_check
        %p178 = pneg %p31
      $region34: #{basic_block_pallas.1} parent=31 // pred_check_branch
        %180 = sbr.rel (%p178) target = $region36
      $region35: #{basic_block_pallas.1} parent=31 // pred_region
        %p181 = scmp.lt.s32.totalorder %s11, 1
        %s182 = scalar_select %p181, %s11, 1
        %s183 = smul.addr %s182, 4
        %s184 = smul.addr %s183, 8
        %s185 = scalar_lea.vmem %s0, %s184
      $region36: #{basic_block_pallas.1} parent=31 // pred_fallthru
        _
    $region32: #{basic_block_pallas.1} parent=5 // pred_fallthru
      _
    %p186 = scmp.le.s32.totalorder 1, %s11
    %p187 = scmp.lt.s32.totalorder %s11, 3
    %p188 = pnand %p186, %p187
    %p189 = pneg %p188
    // Predicated region
    $region37: #{basic_block_pallas.1} parent=5 // pred_check
      _
    $region38: #{basic_block_pallas.1} parent=5 // pred_check_branch
      %191 = sbr.rel (%p188) target = $region40
    $region39: #{basic_block_pallas.1} parent=5 // pred_region
      %s192 = ssub.s32 %s11, 1
      %p193 = scmp.lt.s32.totalorder %s16, 1
      %s194 = scalar_select %p193, %s16, 1
      %s195 = smul.addr %s194, 4
      %s196 = smul.addr %s195, 8
      %s197 = scalar_lea.vmem %s0, %s196
      %p198 = pneg %p37
      %p199 = pneg %p34
      %p200 = pneg %p58
      %p201 = pneg %p55
      %p202 = pneg %p79
      %p203 = pneg %p76
      %p204 = pneg %p100
      %p205 = pneg %p97
      %p206 = pneg %p121
      %p207 = pneg %p118
      %p208 = pneg %p147
      %p209 = pneg %p144
      %p210 = scmp.lt.s32.totalorder %s16, 1
      %s211 = scalar_select %p210, %s16, 1
      %s212 = smul.addr %s211, 3
      %s213 = smul.addr %s212, 8
      %s214 = scalar_lea.vmem %s5, %s213
      %p215 = scmp.lt.s32.totalorder %s16, 1
      %s216 = scalar_select %p215, %s16, 1
      %s217 = smul.addr %s216, 4
      %s218 = smul.addr %s217, 8
      %s219 = scalar_lea.vmem %s0, %s218
      %p220 = scmp.lt.s32.totalorder %s16, 1
      %s221 = scalar_select %p220, %s16, 1
      %s222 = smul.addr %s221, 3
      %s223 = smul.addr %s222, 8
      %s224 = scalar_lea.vmem %s5, %s223
      %v225 = vld [vmem:[%s3] sm:$0xff]
      %s226 = scalar_lea.vmem %s3, 8
      %v227 = vld [vmem:[%s226] sm:$0xff]
      %s228 = scalar_lea.vmem %s3, 16
      %v229 = vld [vmem:[%s228] sm:$0xff]
      %s230 = scalar_lea.vmem %s3, 24
      %v231 = vld [vmem:[%s230] sm:$0xff]
      %s232 = scalar_lea.vmem %s3, 32
      %v233 = vld [vmem:[%s232] sm:$0xff]
      %s234 = scalar_lea.vmem %s3, 40
      %v235 = vld [vmem:[%s234] sm:$0xff]
      %s236 = scalar_lea.vmem %s3, 48
      %v237 = vld [vmem:[%s236] sm:$0xff]
      %s238 = scalar_lea.vmem %s3, 56
      %v239 = vld [vmem:[%s238] sm:$0xff]
      %s240 = scalar_lea.vmem %s3, 64
      %v241 = vld [vmem:[%s240] sm:$0xff]
      %v242 = vld [vmem:[%s4] sm:$0xff]
      %s243 = scalar_lea.vmem %s4, 8
      %v244 = vld [vmem:[%s243] sm:$0xff]
      %s245 = scalar_lea.vmem %s4, 16
      %v246 = vld [vmem:[%s245] sm:$0xff]
      %s247 = scalar_lea.vmem %s4, 24
      %v248 = vld [vmem:[%s247] sm:$0xff]
      %s249 = scalar_lea.vmem %s4, 32
      %v250 = vld [vmem:[%s249] sm:$0xff]
      %s251 = scalar_lea.vmem %s4, 40
      %v252 = vld [vmem:[%s251] sm:$0xff]
      %s253 = scalar_lea.vmem %s4, 48
      %v254 = vld [vmem:[%s253] sm:$0xff]
      %s255 = scalar_lea.vmem %s4, 56
      %v256 = vld [vmem:[%s255] sm:$0xff]
      %s257 = scalar_lea.vmem %s4, 64
      %v258 = vld [vmem:[%s257] sm:$0xff]
      %v259 = vld [vmem:[%s1] sm:$0xf]
      %v261 = vlaneseq
      %v262 = vshrl.u32 %v261, 7
      %v263 = vsub.s32 0, %v262
      %v264 = vrot.slane %v259, %v263
      %v265 = vlaneseq
      %v266 = vshrl.u32 %v265, 7
      %v267 = vsub.s32 1, %v266
      %v268 = vrot.slane %v259, %v267
      %v269 = vlaneseq
      %v270 = vshrl.u32 %v269, 7
      %v271 = vsub.s32 2, %v270
      %v272 = vrot.slane %v259, %v271
      %v273 = vlaneseq
      %v274 = vshrl.u32 %v273, 7
      %v275 = vsub.s32 3, %v274
      %v276 = vrot.slane %v259, %v275
      %v281 = vld [vmem:[%s2] sm:$0x7]
      %v283 = vlaneseq
      %v284 = vshrl.u32 %v283, 7
      %v285 = vsub.s32 0, %v284
      %v286 = vrot.slane %v281, %v285
      %v287 = vlaneseq
      %v288 = vshrl.u32 %v287, 7
      %v289 = vsub.s32 1, %v288
      %v290 = vrot.slane %v281, %v289
      %v291 = vlaneseq
      %v292 = vshrl.u32 %v291, 7
      %v293 = vsub.s32 2, %v292
      %v294 = vrot.slane %v281, %v293
      %v298 = vld [vmem:[%s219] sm:$0xff]
      %v299 = vld [vmem:[%s219 + $0x8] sm:$0xff]
      %v300 = vld [vmem:[%s219 + $0x10] sm:$0xff]
      %v301 = vld [vmem:[%s219 + $0x18] sm:$0xff]
      %306 = vrot.lane.b32.xlu0 %v298, 127
      %v307 = vpop.permute.xlu0 %306
      %308 = vrot.lane.b32.xlu0 %v299, 127
      %v309 = vpop.permute.xlu0 %308
      %310 = vrot.lane.b32.xlu0 %v300, 127
      %v311 = vpop.permute.xlu0 %310
      %312 = vrot.lane.b32.xlu0 %v301, 127
      %v313 = vpop.permute.xlu0 %312
      %vm314 = vcmask 1039360
      %v315 = vsel %vm314, %v307, %v309
      %v316 = vsel %vm314, %v309, %v311
      %v317 = vsel %vm314, %v311, %v313
      %vm322 = vcmask 64512
      %v324 = vsel %vm322, %v227, 0
      %326 = vmatprep.subr.mxu0 %v316
      %327 = vmatpush1.msra.mxu0 %v315
      %328 = vmatprep.subr.mxu0 0.0
      %329 = vmatpush1.msra.mxu0 0.0
      %330 = vmatprep.subr.mxu0 0.0
      %331 = vmatpush1.msra.mxu0 0.0
      %332 = vmatprep.subr.mxu0 0.0
      %333 = vmatpush1.msra.mxu0 0.0
      %334 = vmatprep.subr.mxu0 0.0
      %335 = vmatpush1.msra.mxu0 0.0
      %336 = vmatprep.subr.mxu0 0.0
      %337 = vmatpush1.msra.mxu0 0.0
      %338 = vmatprep.subr.mxu0 0.0
      %339 = vmatpush1.msra.mxu0 0.0
      %340 = vmatprep.subr.mxu0 0.0
      %341 = vmatpush1.msra.mxu0 0.0
      %342 = vmatprep.subr.mxu0 0.0
      %343 = vmatpush1.msra.mxu0 0.0
      %344 = vmatprep.subr.mxu0 0.0
      %345 = vmatpush1.msra.mxu0 0.0
      %346 = vmatprep.subr.mxu0 0.0
      %347 = vmatpush1.msra.mxu0 0.0
      %348 = vmatprep.subr.mxu0 0.0
      %349 = vmatpush1.msra.mxu0 0.0
      %350 = vmatprep.subr.mxu0 0.0
      %351 = vmatpush1.msra.mxu0 0.0
      %352 = vmatprep.subr.mxu0 0.0
      %353 = vmatpush1.msra.mxu0 0.0
      %354 = vmatprep.subr.mxu0 0.0
      %355 = vmatpush1.msra.mxu0 0.0
      %356 = vmatprep.subr.mxu0 0.0
      %357 = vmatpush1.msra.mxu0 0.0
      %358 = vmatprep.subr.mxu0 0.0
      %359 = vmatpush1.msra.mxu0 0.0
      %360 = vmatprep.subr.mxu0 0.0
      %361 = vmatpush1.msra.mxu0 0.0
      %362 = vmatprep.subr.mxu0 0.0
      %363 = vmatpush1.msra.mxu0 0.0
      %364 = vmatprep.subr.mxu0 0.0
      %365 = vmatpush1.msra.mxu0 0.0
      %366 = vmatprep.subr.mxu0 0.0
      %367 = vmatpush1.msra.mxu0 0.0
      %368 = vmatprep.subr.mxu0 0.0
      %369 = vmatpush1.msra.mxu0 0.0
      %370 = vmatprep.subr.mxu0 0.0
      %371 = vmatpush1.msra.mxu0 0.0
      %372 = vmatprep.subr.mxu0 0.0
      %373 = vmatpush1.msra.mxu0 0.0
      %374 = vmatprep.subr.mxu0 0.0
      %375 = vmatpush1.msra.mxu0 0.0
      %376 = vmatprep.subr.mxu0 0.0
      %377 = vmatpush1.msra.mxu0 0.0
      %378 = vmatprep.subr.mxu0 0.0
      %379 = vmatpush1.msra.mxu0 0.0
      %380 = vmatprep.subr.mxu0 0.0
      %381 = vmatpush1.msra.mxu0 0.0
      %382 = vmatprep.subr.mxu0 0.0
      %383 = vmatpush1.msra.mxu0 0.0
      %384 = vmatprep.subr.mxu0 0.0
      %385 = vmatpush1.msra.mxu0 0.0
      %386 = vmatprep.subr.mxu0 0.0
      %387 = vmatpush1.msra.mxu0 0.0
      %388 = vmatprep.subr.mxu0 0.0
      %389 = vmatpush1.msra.mxu0 0.0
      %390 = vmatprep.mubr.f32.mxu0 0.0
      %391 = vmatmul.mubr.f32.gmra.mrb[0].mxu0 %v324
      %v392 = vpop.f32.mrb[0].mxu0
      %v393 = vadd.f32 0.0, %v392
      %v394 = vpop.f32.mrb[0].mxu0
      %v395 = vadd.f32 0.0, %v394
      %396 = vdwg.mxu0
      %397 = vmatprep.subr.mxu0 %v313
      %398 = vmatpush1.msra.mxu0 %v317
      %399 = vmatprep.subr.mxu0 0.0
      %400 = vmatpush1.msra.mxu0 0.0
      %401 = vmatprep.subr.mxu0 0.0
      %402 = vmatpush1.msra.mxu0 0.0
      %403 = vmatprep.subr.mxu0 0.0
      %404 = vmatpush1.msra.mxu0 0.0
      %405 = vmatprep.subr.mxu0 0.0
      %406 = vmatpush1.msra.mxu0 0.0
      %407 = vmatprep.subr.mxu0 0.0
      %408 = vmatpush1.msra.mxu0 0.0
      %409 = vmatprep.subr.mxu0 0.0
      %410 = vmatpush1.msra.mxu0 0.0
      %411 = vmatprep.subr.mxu0 0.0
      %412 = vmatpush1.msra.mxu0 0.0
      %413 = vmatprep.subr.mxu0 0.0
      %414 = vmatpush1.msra.mxu0 0.0
      %415 = vmatprep.subr.mxu0 0.0
      %416 = vmatpush1.msra.mxu0 0.0
      %417 = vmatprep.subr.mxu0 0.0
      %418 = vmatpush1.msra.mxu0 0.0
      %419 = vmatprep.subr.mxu0 0.0
      %420 = vmatpush1.msra.mxu0 0.0
      %421 = vmatprep.subr.mxu0 0.0
      %422 = vmatpush1.msra.mxu0 0.0
      %423 = vmatprep.subr.mxu0 0.0
      %424 = vmatpush1.msra.mxu0 0.0
      %425 = vmatprep.subr.mxu0 0.0
      %426 = vmatpush1.msra.mxu0 0.0
      %427 = vmatprep.subr.mxu0 0.0
      %428 = vmatpush1.msra.mxu0 0.0
      %429 = vmatprep.subr.mxu0 0.0
      %430 = vmatpush1.msra.mxu0 0.0
      %431 = vmatprep.subr.mxu0 0.0
      %432 = vmatpush1.msra.mxu0 0.0
      %433 = vmatprep.subr.mxu0 0.0
      %434 = vmatpush1.msra.mxu0 0.0
      %435 = vmatprep.subr.mxu0 0.0
      %436 = vmatpush1.msra.mxu0 0.0
      %437 = vmatprep.subr.mxu0 0.0
      %438 = vmatpush1.msra.mxu0 0.0
      %439 = vmatprep.subr.mxu0 0.0
      %440 = vmatpush1.msra.mxu0 0.0
      %441 = vmatprep.subr.mxu0 0.0
      %442 = vmatpush1.msra.mxu0 0.0
      %443 = vmatprep.subr.mxu0 0.0
      %444 = vmatpush1.msra.mxu0 0.0
      %445 = vmatprep.subr.mxu0 0.0
      %446 = vmatpush1.msra.mxu0 0.0
      %447 = vmatprep.subr.mxu0 0.0
      %448 = vmatpush1.msra.mxu0 0.0
      %449 = vmatprep.subr.mxu0 0.0
      %450 = vmatpush1.msra.mxu0 0.0
      %451 = vmatprep.subr.mxu0 0.0
      %452 = vmatpush1.msra.mxu0 0.0
      %453 = vmatprep.subr.mxu0 0.0
      %454 = vmatpush1.msra.mxu0 0.0
      %455 = vmatprep.subr.mxu0 0.0
      %456 = vmatpush1.msra.mxu0 0.0
      %457 = vmatprep.subr.mxu0 0.0
      %458 = vmatpush1.msra.mxu0 0.0
      %459 = vmatprep.subr.mxu0 0.0
      %460 = vmatpush1.msra.mxu0 0.0
      %461 = vmatprep.mubr.f32.mxu0 0.0
      %462 = vmatmul.mubr.f32.gmra.mrb[0].mxu0 %v324
      %v463 = vpop.f32.mrb[0].mxu0
      %v464 = vadd.f32 0.0, %v463
      %v465 = vpop.f32.mrb[0].mxu0
      %v466 = vadd.f32 0.0, %v465
      %467 = vdwg.mxu0
      %v469 = vsel %vm322, %v225, 0
      %471 = vmatprep.subr.mxu0 %v299
      %472 = vmatpush1.msra.mxu0 %v298
      %473 = vmatprep.subr.mxu0 0.0
      %474 = vmatpush1.msra.mxu0 0.0
      %475 = vmatprep.subr.mxu0 0.0
      %476 = vmatpush1.msra.mxu0 0.0
      %477 = vmatprep.subr.mxu0 0.0
      %478 = vmatpush1.msra.mxu0 0.0
      %479 = vmatprep.subr.mxu0 0.0
      %480 = vmatpush1.msra.mxu0 0.0
      %481 = vmatprep.subr.mxu0 0.0
      %482 = vmatpush1.msra.mxu0 0.0
      %483 = vmatprep.subr.mxu0 0.0
      %484 = vmatpush1.msra.mxu0 0.0
      %485 = vmatprep.subr.mxu0 0.0
      %486 = vmatpush1.msra.mxu0 0.0
      %487 = vmatprep.subr.mxu0 0.0
      %488 = vmatpush1.msra.mxu0 0.0
      %489 = vmatprep.subr.mxu0 0.0
      %490 = vmatpush1.msra.mxu0 0.0
      %491 = vmatprep.subr.mxu0 0.0
      %492 = vmatpush1.msra.mxu0 0.0
      %493 = vmatprep.subr.mxu0 0.0
      %494 = vmatpush1.msra.mxu0 0.0
      %495 = vmatprep.subr.mxu0 0.0
      %496 = vmatpush1.msra.mxu0 0.0
      %497 = vmatprep.subr.mxu0 0.0
      %498 = vmatpush1.msra.mxu0 0.0
      %499 = vmatprep.subr.mxu0 0.0
      %500 = vmatpush1.msra.mxu0 0.0
      %501 = vmatprep.subr.mxu0 0.0
      %502 = vmatpush1.msra.mxu0 0.0
      %503 = vmatprep.subr.mxu0 0.0
      %504 = vmatpush1.msra.mxu0 0.0
      %505 = vmatprep.subr.mxu0 0.0
      %506 = vmatpush1.msra.mxu0 0.0
      %507 = vmatprep.subr.mxu0 0.0
      %508 = vmatpush1.msra.mxu0 0.0
      %509 = vmatprep.subr.mxu0 0.0
      %510 = vmatpush1.msra.mxu0 0.0
      %511 = vmatprep.subr.mxu0 0.0
      %512 = vmatpush1.msra.mxu0 0.0
      %513 = vmatprep.subr.mxu0 0.0
      %514 = vmatpush1.msra.mxu0 0.0
      %515 = vmatprep.subr.mxu0 0.0
      %516 = vmatpush1.msra.mxu0 0.0
      %517 = vmatprep.subr.mxu0 0.0
      %518 = vmatpush1.msra.mxu0 0.0
      %519 = vmatprep.subr.mxu0 0.0
      %520 = vmatpush1.msra.mxu0 0.0
      %521 = vmatprep.subr.mxu0 0.0
      %522 = vmatpush1.msra.mxu0 0.0
      %523 = vmatprep.subr.mxu0 0.0
      %524 = vmatpush1.msra.mxu0 0.0
      %525 = vmatprep.subr.mxu0 0.0
      %526 = vmatpush1.msra.mxu0 0.0
      %527 = vmatprep.subr.mxu0 0.0
      %528 = vmatpush1.msra.mxu0 0.0
      %529 = vmatprep.subr.mxu0 0.0
      %530 = vmatpush1.msra.mxu0 0.0
      %531 = vmatprep.subr.mxu0 0.0
      %532 = vmatpush1.msra.mxu0 0.0
      %533 = vmatprep.subr.mxu0 0.0
      %534 = vmatpush1.msra.mxu0 0.0
      %535 = vmatprep.mubr.f32.mxu0 0.0
      %536 = vmatmul.mubr.f32.gmra.mrb[0].mxu0 %v469
      %v537 = vpop.f32.mrb[0].mxu0
      %v538 = vadd.f32 %v393, %v537
      %v539 = vpop.f32.mrb[0].mxu0
      %v540 = vadd.f32 %v395, %v539
      %541 = vdwg.mxu0
      %542 = vmatprep.subr.mxu0 %v301
      %543 = vmatpush1.msra.mxu0 %v300
      %544 = vmatprep.subr.mxu0 0.0
      %545 = vmatpush1.msra.mxu0 0.0
      %546 = vmatprep.subr.mxu0 0.0
      %547 = vmatpush1.msra.mxu0 0.0
      %548 = vmatprep.subr.mxu0 0.0
      %549 = vmatpush1.msra.mxu0 0.0
      %550 = vmatprep.subr.mxu0 0.0
      %551 = vmatpush1.msra.mxu0 0.0
      %552 = vmatprep.subr.mxu0 0.0
      %553 = vmatpush1.msra.mxu0 0.0
      %554 = vmatprep.subr.mxu0 0.0
      %555 = vmatpush1.msra.mxu0 0.0
      %556 = vmatprep.subr.mxu0 0.0
      %557 = vmatpush1.msra.mxu0 0.0
      %558 = vmatprep.subr.mxu0 0.0
      %559 = vmatpush1.msra.mxu0 0.0
      %560 = vmatprep.subr.mxu0 0.0
      %561 = vmatpush1.msra.mxu0 0.0
      %562 = vmatprep.subr.mxu0 0.0
      %563 = vmatpush1.msra.mxu0 0.0
      %564 = vmatprep.subr.mxu0 0.0
      %565 = vmatpush1.msra.mxu0 0.0
      %566 = vmatprep.subr.mxu0 0.0
      %567 = vmatpush1.msra.mxu0 0.0
      %568 = vmatprep.subr.mxu0 0.0
      %569 = vmatpush1.msra.mxu0 0.0
      %570 = vmatprep.subr.mxu0 0.0
      %571 = vmatpush1.msra.mxu0 0.0
      %572 = vmatprep.subr.mxu0 0.0
      %573 = vmatpush1.msra.mxu0 0.0
      %574 = vmatprep.subr.mxu0 0.0
      %575 = vmatpush1.msra.mxu0 0.0
      %576 = vmatprep.subr.mxu0 0.0
      %577 = vmatpush1.msra.mxu0 0.0
      %578 = vmatprep.subr.mxu0 0.0
      %579 = vmatpush1.msra.mxu0 0.0
      %580 = vmatprep.subr.mxu0 0.0
      %581 = vmatpush1.msra.mxu0 0.0
      %582 = vmatprep.subr.mxu0 0.0
      %583 = vmatpush1.msra.mxu0 0.0
      %584 = vmatprep.subr.mxu0 0.0
      %585 = vmatpush1.msra.mxu0 0.0
      %586 = vmatprep.subr.mxu0 0.0
      %587 = vmatpush1.msra.mxu0 0.0
      %588 = vmatprep.subr.mxu0 0.0
      %589 = vmatpush1.msra.mxu0 0.0
      %590 = vmatprep.subr.mxu0 0.0
      %591 = vmatpush1.msra.mxu0 0.0
      %592 = vmatprep.subr.mxu0 0.0
      %593 = vmatpush1.msra.mxu0 0.0
      %594 = vmatprep.subr.mxu0 0.0
      %595 = vmatpush1.msra.mxu0 0.0
      %596 = vmatprep.subr.mxu0 0.0
      %597 = vmatpush1.msra.mxu0 0.0
      %598 = vmatprep.subr.mxu0 0.0
      %599 = vmatpush1.msra.mxu0 0.0
      %600 = vmatprep.subr.mxu0 0.0
      %601 = vmatpush1.msra.mxu0 0.0
      %602 = vmatprep.subr.mxu0 0.0
      %603 = vmatpush1.msra.mxu0 0.0
      %604 = vmatprep.subr.mxu0 0.0
      %605 = vmatpush1.msra.mxu0 0.0
      %606 = vmatprep.mubr.f32.mxu0 0.0
      %607 = vmatmul.mubr.f32.gmra.mrb[0].mxu0 %v469
      %v608 = vpop.f32.mrb[0].mxu0
      %v609 = vadd.f32 %v464, %v608
      %v610 = vpop.f32.mrb[0].mxu0
      %v611 = vadd.f32 %v466, %v610
      %612 = vdwg.mxu0
      %613 = vrot.lane.b32.xlu0 %v298, 126
      %v614 = vpop.permute.xlu0 %613
      %615 = vrot.lane.b32.xlu0 %v299, 126
      %v616 = vpop.permute.xlu0 %615
      %617 = vrot.lane.b32.xlu0 %v300, 126
      %v618 = vpop.permute.xlu0 %617
      %619 = vrot.lane.b32.xlu0 %v301, 126
      %v620 = vpop.permute.xlu0 %619
      %vm621 = vcmask 1031168
      %v622 = vsel %vm621, %v614, %v616
      %v623 = vsel %vm621, %v616, %v618
      %v624 = vsel %vm621, %v618, %v620
      %v630 = vsel %vm322, %v229, 0
      %632 = vmatprep.subr.mxu0 %v623
      %633 = vmatpush1.msra.mxu0 %v622
      %634 = vmatprep.subr.mxu0 0.0
      %635 = vmatpush1.msra.mxu0 0.0
      %636 = vmatprep.subr.mxu0 0.0
      %637 = vmatpush1.msra.mxu0 0.0
      %638 = vmatprep.subr.mxu0 0.0
      %639 = vmatpush1.msra.mxu0 0.0
      %640 = vmatprep.subr.mxu0 0.0
      %641 = vmatpush1.msra.mxu0 0.0
      %642 = vmatprep.subr.mxu0 0.0
      %643 = vmatpush1.msra.mxu0 0.0
      %644 = vmatprep.subr.mxu0 0.0
      %645 = vmatpush1.msra.mxu0 0.0
      %646 = vmatprep.subr.mxu0 0.0
      %647 = vmatpush1.msra.mxu0 0.0
      %648 = vmatprep.subr.mxu0 0.0
      %649 = vmatpush1.msra.mxu0 0.0
      %650 = vmatprep.subr.mxu0 0.0
      %651 = vmatpush1.msra.mxu0 0.0
      %652 = vmatprep.subr.mxu0 0.0
      %653 = vmatpush1.msra.mxu0 0.0
      %654 = vmatprep.subr.mxu0 0.0
      %655 = vmatpush1.msra.mxu0 0.0
      %656 = vmatprep.subr.mxu0 0.0
      %657 = vmatpush1.msra.mxu0 0.0
      %658 = vmatprep.subr.mxu0 0.0
      %659 = vmatpush1.msra.mxu0 0.0
      %660 = vmatprep.subr.mxu0 0.0
      %661 = vmatpush1.msra.mxu0 0.0
      %662 = vmatprep.subr.mxu0 0.0
      %663 = vmatpush1.msra.mxu0 0.0
      %664 = vmatprep.subr.mxu0 0.0
      %665 = vmatpush1.msra.mxu0 0.0
      %666 = vmatprep.subr.mxu0 0.0
      %667 = vmatpush1.msra.mxu0 0.0
      %668 = vmatprep.subr.mxu0 0.0
      %669 = vmatpush1.msra.mxu0 0.0
      %670 = vmatprep.subr.mxu0 0.0
      %671 = vmatpush1.msra.mxu0 0.0
      %672 = vmatprep.subr.mxu0 0.0
      %673 = vmatpush1.msra.mxu0 0.0
      %674 = vmatprep.subr.mxu0 0.0
      %675 = vmatpush1.msra.mxu0 0.0
      %676 = vmatprep.subr.mxu0 0.0
      %677 = vmatpush1.msra.mxu0 0.0
      %678 = vmatprep.subr.mxu0 0.0
      %679 = vmatpush1.msra.mxu0 0.0
      %680 = vmatprep.subr.mxu0 0.0
      %681 = vmatpush1.msra.mxu0 0.0
      %682 = vmatprep.subr.mxu0 0.0
      %683 = vmatpush1.msra.mxu0 0.0
      %684 = vmatprep.subr.mxu0 0.0
      %685 = vmatpush1.msra.mxu0 0.0
      %686 = vmatprep.subr.mxu0 0.0
      %687 = vmatpush1.msra.mxu0 0.0
      %688 = vmatprep.subr.mxu0 0.0
      %689 = vmatpush1.msra.mxu0 0.0
      %690 = vmatprep.subr.mxu0 0.0
      %691 = vmatpush1.msra.mxu0 0.0
      %692 = vmatprep.subr.mxu0 0.0
      %693 = vmatpush1.msra.mxu0 0.0
      %694 = vmatprep.subr.mxu0 0.0
      %695 = vmatpush1.msra.mxu0 0.0
      %696 = vmatprep.mubr.f32.mxu0 0.0
      %697 = vmatmul.mubr.f32.gmra.mrb[0].mxu0 %v630
      %v698 = vpop.f32.mrb[0].mxu0
      %v699 = vadd.f32 0.0, %v698
      %v700 = vpop.f32.mrb[0].mxu0
      %v701 = vadd.f32 0.0, %v700
      %702 = vdwg.mxu0
      %703 = vmatprep.subr.mxu0 %v620
      %704 = vmatpush1.msra.mxu0 %v624
      %705 = vmatprep.subr.mxu0 0.0
      %706 = vmatpush1.msra.mxu0 0.0
      %707 = vmatprep.subr.mxu0 0.0
      %708 = vmatpush1.msra.mxu0 0.0
      %709 = vmatprep.subr.mxu0 0.0
      %710 = vmatpush1.msra.mxu0 0.0
      %711 = vmatprep.subr.mxu0 0.0
      %712 = vmatpush1.msra.mxu0 0.0
      %713 = vmatprep.subr.mxu0 0.0
      %714 = vmatpush1.msra.mxu0 0.0
      %715 = vmatprep.subr.mxu0 0.0
      %716 = vmatpush1.msra.mxu0 0.0
      %717 = vmatprep.subr.mxu0 0.0
      %718 = vmatpush1.msra.mxu0 0.0
      %719 = vmatprep.subr.mxu0 0.0
      %720 = vmatpush1.msra.mxu0 0.0
      %721 = vmatprep.subr.mxu0 0.0
      %722 = vmatpush1.msra.mxu0 0.0
      %723 = vmatprep.subr.mxu0 0.0
      %724 = vmatpush1.msra.mxu0 0.0
      %725 = vmatprep.subr.mxu0 0.0
      %726 = vmatpush1.msra.mxu0 0.0
      %727 = vmatprep.subr.mxu0 0.0
      %728 = vmatpush1.msra.mxu0 0.0
      %729 = vmatprep.subr.mxu0 0.0
      %730 = vmatpush1.msra.mxu0 0.0
      %731 = vmatprep.subr.mxu0 0.0
      %732 = vmatpush1.msra.mxu0 0.0
      %733 = vmatprep.subr.mxu0 0.0
      %734 = vmatpush1.msra.mxu0 0.0
      %735 = vmatprep.subr.mxu0 0.0
      %736 = vmatpush1.msra.mxu0 0.0
      %737 = vmatprep.subr.mxu0 0.0
      %738 = vmatpush1.msra.mxu0 0.0
      %739 = vmatprep.subr.mxu0 0.0
      %740 = vmatpush1.msra.mxu0 0.0
      %741 = vmatprep.subr.mxu0 0.0
      %742 = vmatpush1.msra.mxu0 0.0
      %743 = vmatprep.subr.mxu0 0.0
      %744 = vmatpush1.msra.mxu0 0.0
      %745 = vmatprep.subr.mxu0 0.0
      %746 = vmatpush1.msra.mxu0 0.0
      %747 = vmatprep.subr.mxu0 0.0
      %748 = vmatpush1.msra.mxu0 0.0
      %749 = vmatprep.subr.mxu0 0.0
      %750 = vmatpush1.msra.mxu0 0.0
      %751 = vmatprep.subr.mxu0 0.0
      %752 = vmatpush1.msra.mxu0 0.0
      %753 = vmatprep.subr.mxu0 0.0
      %754 = vmatpush1.msra.mxu0 0.0
      %755 = vmatprep.subr.mxu0 0.0
      %756 = vmatpush1.msra.mxu0 0.0
      %757 = vmatprep.subr.mxu0 0.0
      %758 = vmatpush1.msra.mxu0 0.0
      %759 = vmatprep.subr.mxu0 0.0
      %760 = vmatpush1.msra.mxu0 0.0
      %761 = vmatprep.subr.mxu0 0.0
      %762 = vmatpush1.msra.mxu0 0.0
      %763 = vmatprep.subr.mxu0 0.0
      %764 = vmatpush1.msra.mxu0 0.0
      %765 = vmatprep.subr.mxu0 0.0
      %766 = vmatpush1.msra.mxu0 0.0
      %767 = vmatprep.mubr.f32.mxu0 0.0
      %768 = vmatmul.mubr.f32.gmra.mrb[0].mxu0 %v630
      %v769 = vpop.f32.mrb[0].mxu0
      %v770 = vadd.f32 0.0, %v769
      %v771 = vpop.f32.mrb[0].mxu0
      %v772 = vadd.f32 0.0, %v771
      %773 = vdwg.mxu0
      %v774 = vadd.f32 %v538, %v699
      %v775 = vadd.f32 %v540, %v701
      %v776 = vadd.f32 %v609, %v770
      %v777 = vadd.f32 %v611, %v772
      %778 = vrot.lane.b32.xlu0 %v298, 110
      %v779 = vpop.permute.xlu0 %778
      %780 = vrot.lane.b32.xlu0 %v299, 110
      %v781 = vpop.permute.xlu0 %780
      %782 = vrot.lane.b32.xlu0 %v300, 110
      %v783 = vpop.permute.xlu0 %782
      %784 = vrot.lane.b32.xlu0 %v301, 110
      %v785 = vpop.permute.xlu0 %784
      %vm786 = vcmask 900096
      %v787 = vsel %vm786, %v779, %v781
      %v788 = vsel %vm786, %v781, %v783
      %v789 = vsel %vm786, %v783, %v785
      %v795 = vsel %vm322, %v231, 0
      %797 = vmatprep.subr.mxu0 %v788
      %798 = vmatpush1.msra.mxu0 %v787
      %799 = vmatprep.subr.mxu0 0.0
      %800 = vmatpush1.msra.mxu0 0.0
      %801 = vmatprep.subr.mxu0 0.0
      %802 = vmatpush1.msra.mxu0 0.0
      %803 = vmatprep.subr.mxu0 0.0
      %804 = vmatpush1.msra.mxu0 0.0
      %805 = vmatprep.subr.mxu0 0.0
      %806 = vmatpush1.msra.mxu0 0.0
      %807 = vmatprep.subr.mxu0 0.0
      %808 = vmatpush1.msra.mxu0 0.0
      %809 = vmatprep.subr.mxu0 0.0
      %810 = vmatpush1.msra.mxu0 0.0
      %811 = vmatprep.subr.mxu0 0.0
      %812 = vmatpush1.msra.mxu0 0.0
      %813 = vmatprep.subr.mxu0 0.0
      %814 = vmatpush1.msra.mxu0 0.0
      %815 = vmatprep.subr.mxu0 0.0
      %816 = vmatpush1.msra.mxu0 0.0
      %817 = vmatprep.subr.mxu0 0.0
      %818 = vmatpush1.msra.mxu0 0.0
      %819 = vmatprep.subr.mxu0 0.0
      %820 = vmatpush1.msra.mxu0 0.0
      %821 = vmatprep.subr.mxu0 0.0
      %822 = vmatpush1.msra.mxu0 0.0
      %823 = vmatprep.subr.mxu0 0.0
      %824 = vmatpush1.msra.mxu0 0.0
      %825 = vmatprep.subr.mxu0 0.0
      %826 = vmatpush1.msra.mxu0 0.0
      %827 = vmatprep.subr.mxu0 0.0
      %828 = vmatpush1.msra.mxu0 0.0
      %829 = vmatprep.subr.mxu0 0.0
      %830 = vmatpush1.msra.mxu0 0.0
      %831 = vmatprep.subr.mxu0 0.0
      %832 = vmatpush1.msra.mxu0 0.0
      %833 = vmatprep.subr.mxu0 0.0
      %834 = vmatpush1.msra.mxu0 0.0
      %835 = vmatprep.subr.mxu0 0.0
      %836 = vmatpush1.msra.mxu0 0.0
      %837 = vmatprep.subr.mxu0 0.0
      %838 = vmatpush1.msra.mxu0 0.0
      %839 = vmatprep.subr.mxu0 0.0
      %840 = vmatpush1.msra.mxu0 0.0
      %841 = vmatprep.subr.mxu0 0.0
      %842 = vmatpush1.msra.mxu0 0.0
      %843 = vmatprep.subr.mxu0 0.0
      %844 = vmatpush1.msra.mxu0 0.0
      %845 = vmatprep.subr.mxu0 0.0
      %846 = vmatpush1.msra.mxu0 0.0
      %847 = vmatprep.subr.mxu0 0.0
      %848 = vmatpush1.msra.mxu0 0.0
      %849 = vmatprep.subr.mxu0 0.0
      %850 = vmatpush1.msra.mxu0 0.0
      %851 = vmatprep.subr.mxu0 0.0
      %852 = vmatpush1.msra.mxu0 0.0
      %853 = vmatprep.subr.mxu0 0.0
      %854 = vmatpush1.msra.mxu0 0.0
      %855 = vmatprep.subr.mxu0 0.0
      %856 = vmatpush1.msra.mxu0 0.0
      %857 = vmatprep.subr.mxu0 0.0
      %858 = vmatpush1.msra.mxu0 0.0
      %859 = vmatprep.subr.mxu0 0.0
      %860 = vmatpush1.msra.mxu0 0.0
      %861 = vmatprep.mubr.f32.mxu0 0.0
      %862 = vmatmul.mubr.f32.gmra.mrb[0].mxu0 %v795
      %v863 = vpop.f32.mrb[0].mxu0
      %v864 = vadd.f32 0.0, %v863
      %v865 = vpop.f32.mrb[0].mxu0
      %v866 = vadd.f32 0.0, %v865
      %867 = vdwg.mxu0
      %868 = vmatprep.subr.mxu0 %v785
      %869 = vmatpush1.msra.mxu0 %v789
      %870 = vmatprep.subr.mxu0 0.0
      %871 = vmatpush1.msra.mxu0 0.0
      %872 = vmatprep.subr.mxu0 0.0
      %873 = vmatpush1.msra.mxu0 0.0
      %874 = vmatprep.subr.mxu0 0.0
      %875 = vmatpush1.msra.mxu0 0.0
      %876 = vmatprep.subr.mxu0 0.0
      %877 = vmatpush1.msra.mxu0 0.0
      %878 = vmatprep.subr.mxu0 0.0
      %879 = vmatpush1.msra.mxu0 0.0
      %880 = vmatprep.subr.mxu0 0.0
      %881 = vmatpush1.msra.mxu0 0.0
      %882 = vmatprep.subr.mxu0 0.0
      %883 = vmatpush1.msra.mxu0 0.0
      %884 = vmatprep.subr.mxu0 0.0
      %885 = vmatpush1.msra.mxu0 0.0
      %886 = vmatprep.subr.mxu0 0.0
      %887 = vmatpush1.msra.mxu0 0.0
      %888 = vmatprep.subr.mxu0 0.0
      %889 = vmatpush1.msra.mxu0 0.0
      %890 = vmatprep.subr.mxu0 0.0
      %891 = vmatpush1.msra.mxu0 0.0
      %892 = vmatprep.subr.mxu0 0.0
      %893 = vmatpush1.msra.mxu0 0.0
      %894 = vmatprep.subr.mxu0 0.0
      %895 = vmatpush1.msra.mxu0 0.0
      %896 = vmatprep.subr.mxu0 0.0
      %897 = vmatpush1.msra.mxu0 0.0
      %898 = vmatprep.subr.mxu0 0.0
      %899 = vmatpush1.msra.mxu0 0.0
      %900 = vmatprep.subr.mxu0 0.0
      %901 = vmatpush1.msra.mxu0 0.0
      %902 = vmatprep.subr.mxu0 0.0
      %903 = vmatpush1.msra.mxu0 0.0
      %904 = vmatprep.subr.mxu0 0.0
      %905 = vmatpush1.msra.mxu0 0.0
      %906 = vmatprep.subr.mxu0 0.0
      %907 = vmatpush1.msra.mxu0 0.0
      %908 = vmatprep.subr.mxu0 0.0
      %909 = vmatpush1.msra.mxu0 0.0
      %910 = vmatprep.subr.mxu0 0.0
      %911 = vmatpush1.msra.mxu0 0.0
      %912 = vmatprep.subr.mxu0 0.0
      %913 = vmatpush1.msra.mxu0 0.0
      %914 = vmatprep.subr.mxu0 0.0
      %915 = vmatpush1.msra.mxu0 0.0
      %916 = vmatprep.subr.mxu0 0.0
      %917 = vmatpush1.msra.mxu0 0.0
      %918 = vmatprep.subr.mxu0 0.0
      %919 = vmatpush1.msra.mxu0 0.0
      %920 = vmatprep.subr.mxu0 0.0
      %921 = vmatpush1.msra.mxu0 0.0
      %922 = vmatprep.subr.mxu0 0.0
      %923 = vmatpush1.msra.mxu0 0.0
      %924 = vmatprep.subr.mxu0 0.0
      %925 = vmatpush1.msra.mxu0 0.0
      %926 = vmatprep.subr.mxu0 0.0
      %927 = vmatpush1.msra.mxu0 0.0
      %928 = vmatprep.subr.mxu0 0.0
      %929 = vmatpush1.msra.mxu0 0.0
      %930 = vmatprep.subr.mxu0 0.0
      %931 = vmatpush1.msra.mxu0 0.0
      %932 = vmatprep.mubr.f32.mxu0 0.0
      %933 = vmatmul.mubr.f32.gmra.mrb[0].mxu0 %v795
      %v934 = vpop.f32.mrb[0].mxu0
      %v935 = vadd.f32 0.0, %v934
      %v936 = vpop.f32.mrb[0].mxu0
      %v937 = vadd.f32 0.0, %v936
      %938 = vdwg.mxu0
      %v939 = vadd.f32 %v774, %v864
      %v940 = vadd.f32 %v775, %v866
      %v941 = vadd.f32 %v776, %v935
      %v942 = vadd.f32 %v777, %v937
      %943 = vrot.lane.b32.xlu0 %v298, 109
      %v944 = vpop.permute.xlu0 %943
      %945 = vrot.lane.b32.xlu0 %v299, 109
      %v946 = vpop.permute.xlu0 %945
      %947 = vrot.lane.b32.xlu0 %v300, 109
      %v948 = vpop.permute.xlu0 %947
      %949 = vrot.lane.b32.xlu0 %v301, 109
      %v950 = vpop.permute.xlu0 %949
      %vm951 = vcmask 891904
      %v952 = vsel %vm951, %v944, %v946
      %v953 = vsel %vm951, %v946, %v948
      %v954 = vsel %vm951, %v948, %v950
      %v960 = vsel %vm322, %v233, 0
      %962 = vmatprep.subr.mxu0 %v953
      %963 = vmatpush1.msra.mxu0 %v952
      %964 = vmatprep.subr.mxu0 0.0
      %965 = vmatpush1.msra.mxu0 0.0
      %966 = vmatprep.subr.mxu0 0.0
      %967 = vmatpush1.msra.mxu0 0.0
      %968 = vmatprep.subr.mxu0 0.0
      %969 = vmatpush1.msra.mxu0 0.0
      %970 = vmatprep.subr.mxu0 0.0
      %971 = vmatpush1.msra.mxu0 0.0
      %972 = vmatprep.subr.mxu0 0.0
      %973 = vmatpush1.msra.mxu0 0.0
      %974 = vmatprep.subr.mxu0 0.0
      %975 = vmatpush1.msra.mxu0 0.0
      %976 = vmatprep.subr.mxu0 0.0
      %977 = vmatpush1.msra.mxu0 0.0
      %978 = vmatprep.subr.mxu0 0.0
      %979 = vmatpush1.msra.mxu0 0.0
      %980 = vmatprep.subr.mxu0 0.0
      %981 = vmatpush1.msra.mxu0 0.0
      %982 = vmatprep.subr.mxu0 0.0
      %983 = vmatpush1.msra.mxu0 0.0
      %984 = vmatprep.subr.mxu0 0.0
      %985 = vmatpush1.msra.mxu0 0.0
      %986 = vmatprep.subr.mxu0 0.0
      %987 = vmatpush1.msra.mxu0 0.0
      %988 = vmatprep.subr.mxu0 0.0
      %989 = vmatpush1.msra.mxu0 0.0
      %990 = vmatprep.subr.mxu0 0.0
      %991 = vmatpush1.msra.mxu0 0.0
      %992 = vmatprep.subr.mxu0 0.0
      %993 = vmatpush1.msra.mxu0 0.0
      %994 = vmatprep.subr.mxu0 0.0
      %995 = vmatpush1.msra.mxu0 0.0
      %996 = vmatprep.subr.mxu0 0.0
      %997 = vmatpush1.msra.mxu0 0.0
      %998 = vmatprep.subr.mxu0 0.0
      %999 = vmatpush1.msra.mxu0 0.0
      %1000 = vmatprep.subr.mxu0 0.0
      %1001 = vmatpush1.msra.mxu0 0.0
      %1002 = vmatprep.subr.mxu0 0.0
      %1003 = vmatpush1.msra.mxu0 0.0
      %1004 = vmatprep.subr.mxu0 0.0
      %1005 = vmatpush1.msra.mxu0 0.0
      %1006 = vmatprep.subr.mxu0 0.0
      %1007 = vmatpush1.msra.mxu0 0.0
      %1008 = vmatprep.subr.mxu0 0.0
      %1009 = vmatpush1.msra.mxu0 0.0
      %1010 = vmatprep.subr.mxu0 0.0
      %1011 = vmatpush1.msra.mxu0 0.0
      %1012 = vmatprep.subr.mxu0 0.0
      %1013 = vmatpush1.msra.mxu0 0.0
      %1014 = vmatprep.subr.mxu0 0.0
      %1015 = vmatpush1.msra.mxu0 0.0
      %1016 = vmatprep.subr.mxu0 0.0
      %1017 = vmatpush1.msra.mxu0 0.0
      %1018 = vmatprep.subr.mxu0 0.0
      %1019 = vmatpush1.msra.mxu0 0.0
      %1020 = vmatprep.subr.mxu0 0.0
      %1021 = vmatpush1.msra.mxu0 0.0
      %1022 = vmatprep.subr.mxu0 0.0
      %1023 = vmatpush1.msra.mxu0 0.0
      %1024 = vmatprep.subr.mxu0 0.0
      %1025 = vmatpush1.msra.mxu0 0.0
      %1026 = vmatprep.mubr.f32.mxu0 0.0
      %1027 = vmatmul.mubr.f32.gmra.mrb[0].mxu0 %v960
      %v1028 = vpop.f32.mrb[0].mxu0
      %v1029 = vadd.f32 0.0, %v1028
      %v1030 = vpop.f32.mrb[0].mxu0
      %v1031 = vadd.f32 0.0, %v1030
      %1032 = vdwg.mxu0
      %1033 = vmatprep.subr.mxu0 %v950
      %1034 = vmatpush1.msra.mxu0 %v954
      %1035 = vmatprep.subr.mxu0 0.0
      %1036 = vmatpush1.msra.mxu0 0.0
      %1037 = vmatprep.subr.mxu0 0.0
      %1038 = vmatpush1.msra.mxu0 0.0
      %1039 = vmatprep.subr.mxu0 0.0
      %1040 = vmatpush1.msra.mxu0 0.0
      %1041 = vmatprep.subr.mxu0 0.0
      %1042 = vmatpush1.msra.mxu0 0.0
      %1043 = vmatprep.subr.mxu0 0.0
      %1044 = vmatpush1.msra.mxu0 0.0
      %1045 = vmatprep.subr.mxu0 0.0
      %1046 = vmatpush1.msra.mxu0 0.0
      %1047 = vmatprep.subr.mxu0 0.0
      %1048 = vmatpush1.msra.mxu0 0.0
      %1049 = vmatprep.subr.mxu0 0.0
      %1050 = vmatpush1.msra.mxu0 0.0
      %1051 = vmatprep.subr.mxu0 0.0
      %1052 = vmatpush1.msra.mxu0 0.0
      %1053 = vmatprep.subr.mxu0 0.0
      %1054 = vmatpush1.msra.mxu0 0.0
      %1055 = vmatprep.subr.mxu0 0.0
      %1056 = vmatpush1.msra.mxu0 0.0
      %1057 = vmatprep.subr.mxu0 0.0
      %1058 = vmatpush1.msra.mxu0 0.0
      %1059 = vmatprep.subr.mxu0 0.0
      %1060 = vmatpush1.msra.mxu0 0.0
      %1061 = vmatprep.subr.mxu0 0.0
      %1062 = vmatpush1.msra.mxu0 0.0
      %1063 = vmatprep.subr.mxu0 0.0
      %1064 = vmatpush1.msra.mxu0 0.0
      %1065 = vmatprep.subr.mxu0 0.0
      %1066 = vmatpush1.msra.mxu0 0.0
      %1067 = vmatprep.subr.mxu0 0.0
      %1068 = vmatpush1.msra.mxu0 0.0
      %1069 = vmatprep.subr.mxu0 0.0
      %1070 = vmatpush1.msra.mxu0 0.0
      %1071 = vmatprep.subr.mxu0 0.0
      %1072 = vmatpush1.msra.mxu0 0.0
      %1073 = vmatprep.subr.mxu0 0.0
      %1074 = vmatpush1.msra.mxu0 0.0
      %1075 = vmatprep.subr.mxu0 0.0
      %1076 = vmatpush1.msra.mxu0 0.0
      %1077 = vmatprep.subr.mxu0 0.0
      %1078 = vmatpush1.msra.mxu0 0.0
      %1079 = vmatprep.subr.mxu0 0.0
      %1080 = vmatpush1.msra.mxu0 0.0
      %1081 = vmatprep.subr.mxu0 0.0
      %1082 = vmatpush1.msra.mxu0 0.0
      %1083 = vmatprep.subr.mxu0 0.0
      %1084 = vmatpush1.msra.mxu0 0.0
      %1085 = vmatprep.subr.mxu0 0.0
      %1086 = vmatpush1.msra.mxu0 0.0
      %1087 = vmatprep.subr.mxu0 0.0
      %1088 = vmatpush1.msra.mxu0 0.0
      %1089 = vmatprep.subr.mxu0 0.0
      %1090 = vmatpush1.msra.mxu0 0.0
      %1091 = vmatprep.subr.mxu0 0.0
      %1092 = vmatpush1.msra.mxu0 0.0
      %1093 = vmatprep.subr.mxu0 0.0
      %1094 = vmatpush1.msra.mxu0 0.0
      %1095 = vmatprep.subr.mxu0 0.0
      %1096 = vmatpush1.msra.mxu0 0.0
      %1097 = vmatprep.mubr.f32.mxu0 0.0
      %1098 = vmatmul.mubr.f32.gmra.mrb[0].mxu0 %v960
      %v1099 = vpop.f32.mrb[0].mxu0
      %v1100 = vadd.f32 0.0, %v1099
      %v1101 = vpop.f32.mrb[0].mxu0
      %v1102 = vadd.f32 0.0, %v1101
      %1103 = vdwg.mxu0
      %v1104 = vadd.f32 %v939, %v1029
      %v1105 = vadd.f32 %v940, %v1031
      %v1106 = vadd.f32 %v941, %v1100
      %v1107 = vadd.f32 %v942, %v1102
      %1108 = vrot.lane.b32.xlu0 %v298, 108
      %v1109 = vpop.permute.xlu0 %1108
      %1110 = vrot.lane.b32.xlu0 %v299, 108
      %v1111 = vpop.permute.xlu0 %1110
      %1112 = vrot.lane.b32.xlu0 %v300, 108
      %v1113 = vpop.permute.xlu0 %1112
      %1114 = vrot.lane.b32.xlu0 %v301, 108
      %v1115 = vpop.permute.xlu0 %1114
      %vm1116 = vcmask 883712
      %v1117 = vsel %vm1116, %v1109, %v1111
      %v1118 = vsel %vm1116, %v1111, %v1113
      %v1119 = vsel %vm1116, %v1113, %v1115
      %v1125 = vsel %vm322, %v235, 0
      %1127 = vmatprep.subr.mxu0 %v1118
      %1128 = vmatpush1.msra.mxu0 %v1117
      %1129 = vmatprep.subr.mxu0 0.0
      %1130 = vmatpush1.msra.mxu0 0.0
      %1131 = vmatprep.subr.mxu0 0.0
      %1132 = vmatpush1.msra.mxu0 0.0
      %1133 = vmatprep.subr.mxu0 0.0
      %1134 = vmatpush1.msra.mxu0 0.0
      %1135 = vmatprep.subr.mxu0 0.0
      %1136 = vmatpush1.msra.mxu0 0.0
      %1137 = vmatprep.subr.mxu0 0.0
      %1138 = vmatpush1.msra.mxu0 0.0
      %1139 = vmatprep.subr.mxu0 0.0
      %1140 = vmatpush1.msra.mxu0 0.0
      %1141 = vmatprep.subr.mxu0 0.0
      %1142 = vmatpush1.msra.mxu0 0.0
      %1143 = vmatprep.subr.mxu0 0.0
      %1144 = vmatpush1.msra.mxu0 0.0
      %1145 = vmatprep.subr.mxu0 0.0
      %1146 = vmatpush1.msra.mxu0 0.0
      %1147 = vmatprep.subr.mxu0 0.0
      %1148 = vmatpush1.msra.mxu0 0.0
      %1149 = vmatprep.subr.mxu0 0.0
      %1150 = vmatpush1.msra.mxu0 0.0
      %1151 = vmatprep.subr.mxu0 0.0
      %1152 = vmatpush1.msra.mxu0 0.0
      %1153 = vmatprep.subr.mxu0 0.0
      %1154 = vmatpush1.msra.mxu0 0.0
      %1155 = vmatprep.subr.mxu0 0.0
      %1156 = vmatpush1.msra.mxu0 0.0
      %1157 = vmatprep.subr.mxu0 0.0
      %1158 = vmatpush1.msra.mxu0 0.0
      %1159 = vmatprep.subr.mxu0 0.0
      %1160 = vmatpush1.msra.mxu0 0.0
      %1161 = vmatprep.subr.mxu0 0.0
      %1162 = vmatpush1.msra.mxu0 0.0
      %1163 = vmatprep.subr.mxu0 0.0
      %1164 = vmatpush1.msra.mxu0 0.0
      %1165 = vmatprep.subr.mxu0 0.0
      %1166 = vmatpush1.msra.mxu0 0.0
      %1167 = vmatprep.subr.mxu0 0.0
      %1168 = vmatpush1.msra.mxu0 0.0
      %1169 = vmatprep.subr.mxu0 0.0
      %1170 = vmatpush1.msra.mxu0 0.0
      %1171 = vmatprep.subr.mxu0 0.0
      %1172 = vmatpush1.msra.mxu0 0.0
      %1173 = vmatprep.subr.mxu0 0.0
      %1174 = vmatpush1.msra.mxu0 0.0
      %1175 = vmatprep.subr.mxu0 0.0
      %1176 = vmatpush1.msra.mxu0 0.0
      %1177 = vmatprep.subr.mxu0 0.0
      %1178 = vmatpush1.msra.mxu0 0.0
      %1179 = vmatprep.subr.mxu0 0.0
      %1180 = vmatpush1.msra.mxu0 0.0
      %1181 = vmatprep.subr.mxu0 0.0
      %1182 = vmatpush1.msra.mxu0 0.0
      %1183 = vmatprep.subr.mxu0 0.0
      %1184 = vmatpush1.msra.mxu0 0.0
      %1185 = vmatprep.subr.mxu0 0.0
      %1186 = vmatpush1.msra.mxu0 0.0
      %1187 = vmatprep.subr.mxu0 0.0
      %1188 = vmatpush1.msra.mxu0 0.0
      %1189 = vmatprep.subr.mxu0 0.0
      %1190 = vmatpush1.msra.mxu0 0.0
      %1191 = vmatprep.mubr.f32.mxu0 0.0
      %1192 = vmatmul.mubr.f32.gmra.mrb[0].mxu0 %v1125
      %v1193 = vpop.f32.mrb[0].mxu0
      %v1194 = vadd.f32 0.0, %v1193
      %v1195 = vpop.f32.mrb[0].mxu0
      %v1196 = vadd.f32 0.0, %v1195
      %1197 = vdwg.mxu0
      %1198 = vmatprep.subr.mxu0 %v1115
      %1199 = vmatpush1.msra.mxu0 %v1119
      %1200 = vmatprep.subr.mxu0 0.0
      %1201 = vmatpush1.msra.mxu0 0.0
      %1202 = vmatprep.subr.mxu0 0.0
      %1203 = vmatpush1.msra.mxu0 0.0
      %1204 = vmatprep.subr.mxu0 0.0
      %1205 = vmatpush1.msra.mxu0 0.0
      %1206 = vmatprep.subr.mxu0 0.0
      %1207 = vmatpush1.msra.mxu0 0.0
      %1208 = vmatprep.subr.mxu0 0.0
      %1209 = vmatpush1.msra.mxu0 0.0
      %1210 = vmatprep.subr.mxu0 0.0
      %1211 = vmatpush1.msra.mxu0 0.0
      %1212 = vmatprep.subr.mxu0 0.0
      %1213 = vmatpush1.msra.mxu0 0.0
      %1214 = vmatprep.subr.mxu0 0.0
      %1215 = vmatpush1.msra.mxu0 0.0
      %1216 = vmatprep.subr.mxu0 0.0
      %1217 = vmatpush1.msra.mxu0 0.0
      %1218 = vmatprep.subr.mxu0 0.0
      %1219 = vmatpush1.msra.mxu0 0.0
      %1220 = vmatprep.subr.mxu0 0.0
      %1221 = vmatpush1.msra.mxu0 0.0
      %1222 = vmatprep.subr.mxu0 0.0
      %1223 = vmatpush1.msra.mxu0 0.0
      %1224 = vmatprep.subr.mxu0 0.0
      %1225 = vmatpush1.msra.mxu0 0.0
      %1226 = vmatprep.subr.mxu0 0.0
      %1227 = vmatpush1.msra.mxu0 0.0
      %1228 = vmatprep.subr.mxu0 0.0
      %1229 = vmatpush1.msra.mxu0 0.0
      %1230 = vmatprep.subr.mxu0 0.0
      %1231 = vmatpush1.msra.mxu0 0.0
      %1232 = vmatprep.subr.mxu0 0.0
      %1233 = vmatpush1.msra.mxu0 0.0
      %1234 = vmatprep.subr.mxu0 0.0
      %1235 = vmatpush1.msra.mxu0 0.0
      %1236 = vmatprep.subr.mxu0 0.0
      %1237 = vmatpush1.msra.mxu0 0.0
      %1238 = vmatprep.subr.mxu0 0.0
      %1239 = vmatpush1.msra.mxu0 0.0
      %1240 = vmatprep.subr.mxu0 0.0
      %1241 = vmatpush1.msra.mxu0 0.0
      %1242 = vmatprep.subr.mxu0 0.0
      %1243 = vmatpush1.msra.mxu0 0.0
      %1244 = vmatprep.subr.mxu0 0.0
      %1245 = vmatpush1.msra.mxu0 0.0
      %1246 = vmatprep.subr.mxu0 0.0
      %1247 = vmatpush1.msra.mxu0 0.0
      %1248 = vmatprep.subr.mxu0 0.0
      %1249 = vmatpush1.msra.mxu0 0.0
      %1250 = vmatprep.subr.mxu0 0.0
      %1251 = vmatpush1.msra.mxu0 0.0
      %1252 = vmatprep.subr.mxu0 0.0
      %1253 = vmatpush1.msra.mxu0 0.0
      %1254 = vmatprep.subr.mxu0 0.0
      %1255 = vmatpush1.msra.mxu0 0.0
      %1256 = vmatprep.subr.mxu0 0.0
      %1257 = vmatpush1.msra.mxu0 0.0
      %1258 = vmatprep.subr.mxu0 0.0
      %1259 = vmatpush1.msra.mxu0 0.0
      %1260 = vmatprep.subr.mxu0 0.0
      %1261 = vmatpush1.msra.mxu0 0.0
      %1262 = vmatprep.mubr.f32.mxu0 0.0
      %1263 = vmatmul.mubr.f32.gmra.mrb[0].mxu0 %v1125
      %v1264 = vpop.f32.mrb[0].mxu0
      %v1265 = vadd.f32 0.0, %v1264
      %v1266 = vpop.f32.mrb[0].mxu0
      %v1267 = vadd.f32 0.0, %v1266
      %1268 = vdwg.mxu0
      %v1269 = vadd.f32 %v1104, %v1194
      %v1270 = vadd.f32 %v1105, %v1196
      %v1271 = vadd.f32 %v1106, %v1265
      %v1272 = vadd.f32 %v1107, %v1267
      %1273 = vrot.lane.b32.xlu0 %v298, 92
      %v1274 = vpop.permute.xlu0 %1273
      %1275 = vrot.lane.b32.xlu0 %v299, 92
      %v1276 = vpop.permute.xlu0 %1275
      %1277 = vrot.lane.b32.xlu0 %v300, 92
      %v1278 = vpop.permute.xlu0 %1277
      %1279 = vrot.lane.b32.xlu0 %v301, 92
      %v1280 = vpop.permute.xlu0 %1279
      %vm1281 = vcmask 752640
      %v1282 = vsel %vm1281, %v1274, %v1276
      %v1283 = vsel %vm1281, %v1276, %v1278
      %v1284 = vsel %vm1281, %v1278, %v1280
      %v1290 = vsel %vm322, %v237, 0
      %1292 = vmatprep.subr.mxu0 %v1283
      %1293 = vmatpush1.msra.mxu0 %v1282
      %1294 = vmatprep.subr.mxu0 0.0
      %1295 = vmatpush1.msra.mxu0 0.0
      %1296 = vmatprep.subr.mxu0 0.0
      %1297 = vmatpush1.msra.mxu0 0.0
      %1298 = vmatprep.subr.mxu0 0.0
      %1299 = vmatpush1.msra.mxu0 0.0
      %1300 = vmatprep.subr.mxu0 0.0
      %1301 = vmatpush1.msra.mxu0 0.0
      %1302 = vmatprep.subr.mxu0 0.0
      %1303 = vmatpush1.msra.mxu0 0.0
      %1304 = vmatprep.subr.mxu0 0.0
      %1305 = vmatpush1.msra.mxu0 0.0
      %1306 = vmatprep.subr.mxu0 0.0
      %1307 = vmatpush1.msra.mxu0 0.0
      %1308 = vmatprep.subr.mxu0 0.0
      %1309 = vmatpush1.msra.mxu0 0.0
      %1310 = vmatprep.subr.mxu0 0.0
      %1311 = vmatpush1.msra.mxu0 0.0
      %1312 = vmatprep.subr.mxu0 0.0
      %1313 = vmatpush1.msra.mxu0 0.0
      %1314 = vmatprep.subr.mxu0 0.0
      %1315 = vmatpush1.msra.mxu0 0.0
      %1316 = vmatprep.subr.mxu0 0.0
      %1317 = vmatpush1.msra.mxu0 0.0
      %1318 = vmatprep.subr.mxu0 0.0
      %1319 = vmatpush1.msra.mxu0 0.0
      %1320 = vmatprep.subr.mxu0 0.0
      %1321 = vmatpush1.msra.mxu0 0.0
      %1322 = vmatprep.subr.mxu0 0.0
      %1323 = vmatpush1.msra.mxu0 0.0
      %1324 = vmatprep.subr.mxu0 0.0
      %1325 = vmatpush1.msra.mxu0 0.0
      %1326 = vmatprep.subr.mxu0 0.0
      %1327 = vmatpush1.msra.mxu0 0.0
      %1328 = vmatprep.subr.mxu0 0.0
      %1329 = vmatpush1.msra.mxu0 0.0
      %1330 = vmatprep.subr.mxu0 0.0
      %1331 = vmatpush1.msra.mxu0 0.0
      %1332 = vmatprep.subr.mxu0 0.0
      %1333 = vmatpush1.msra.mxu0 0.0
      %1334 = vmatprep.subr.mxu0 0.0
      %1335 = vmatpush1.msra.mxu0 0.0
      %1336 = vmatprep.subr.mxu0 0.0
      %1337 = vmatpush1.msra.mxu0 0.0
      %1338 = vmatprep.subr.mxu0 0.0
      %1339 = vmatpush1.msra.mxu0 0.0
      %1340 = vmatprep.subr.mxu0 0.0
      %1341 = vmatpush1.msra.mxu0 0.0
      %1342 = vmatprep.subr.mxu0 0.0
      %1343 = vmatpush1.msra.mxu0 0.0
      %1344 = vmatprep.subr.mxu0 0.0
      %1345 = vmatpush1.msra.mxu0 0.0
      %1346 = vmatprep.subr.mxu0 0.0
      %1347 = vmatpush1.msra.mxu0 0.0
      %1348 = vmatprep.subr.mxu0 0.0
      %1349 = vmatpush1.msra.mxu0 0.0
      %1350 = vmatprep.subr.mxu0 0.0
      %1351 = vmatpush1.msra.mxu0 0.0
      %1352 = vmatprep.subr.mxu0 0.0
      %1353 = vmatpush1.msra.mxu0 0.0
      %1354 = vmatprep.subr.mxu0 0.0
      %1355 = vmatpush1.msra.mxu0 0.0
      %1356 = vmatprep.mubr.f32.mxu0 0.0
      %1357 = vmatmul.mubr.f32.gmra.mrb[0].mxu0 %v1290
      %v1358 = vpop.f32.mrb[0].mxu0
      %v1359 = vadd.f32 0.0, %v1358
      %v1360 = vpop.f32.mrb[0].mxu0
      %v1361 = vadd.f32 0.0, %v1360
      %1362 = vdwg.mxu0
      %1363 = vmatprep.subr.mxu0 %v1280
      %1364 = vmatpush1.msra.mxu0 %v1284
      %1365 = vmatprep.subr.mxu0 0.0
      %1366 = vmatpush1.msra.mxu0 0.0
      %1367 = vmatprep.subr.mxu0 0.0
      %1368 = vmatpush1.msra.mxu0 0.0
      %1369 = vmatprep.subr.mxu0 0.0
      %1370 = vmatpush1.msra.mxu0 0.0
      %1371 = vmatprep.subr.mxu0 0.0
      %1372 = vmatpush1.msra.mxu0 0.0
      %1373 = vmatprep.subr.mxu0 0.0
      %1374 = vmatpush1.msra.mxu0 0.0
      %1375 = vmatprep.subr.mxu0 0.0
      %1376 = vmatpush1.msra.mxu0 0.0
      %1377 = vmatprep.subr.mxu0 0.0
      %1378 = vmatpush1.msra.mxu0 0.0
      %1379 = vmatprep.subr.mxu0 0.0
      %1380 = vmatpush1.msra.mxu0 0.0
      %1381 = vmatprep.subr.mxu0 0.0
      %1382 = vmatpush1.msra.mxu0 0.0
      %1383 = vmatprep.subr.mxu0 0.0
      %1384 = vmatpush1.msra.mxu0 0.0
      %1385 = vmatprep.subr.mxu0 0.0
      %1386 = vmatpush1.msra.mxu0 0.0
      %1387 = vmatprep.subr.mxu0 0.0
      %1388 = vmatpush1.msra.mxu0 0.0
      %1389 = vmatprep.subr.mxu0 0.0
      %1390 = vmatpush1.msra.mxu0 0.0
      %1391 = vmatprep.subr.mxu0 0.0
      %1392 = vmatpush1.msra.mxu0 0.0
      %1393 = vmatprep.subr.mxu0 0.0
      %1394 = vmatpush1.msra.mxu0 0.0
      %1395 = vmatprep.subr.mxu0 0.0
      %1396 = vmatpush1.msra.mxu0 0.0
      %1397 = vmatprep.subr.mxu0 0.0
      %1398 = vmatpush1.msra.mxu0 0.0
      %1399 = vmatprep.subr.mxu0 0.0
      %1400 = vmatpush1.msra.mxu0 0.0
      %1401 = vmatprep.subr.mxu0 0.0
      %1402 = vmatpush1.msra.mxu0 0.0
      %1403 = vmatprep.subr.mxu0 0.0
      %1404 = vmatpush1.msra.mxu0 0.0
      %1405 = vmatprep.subr.mxu0 0.0
      %1406 = vmatpush1.msra.mxu0 0.0
      %1407 = vmatprep.subr.mxu0 0.0
      %1408 = vmatpush1.msra.mxu0 0.0
      %1409 = vmatprep.subr.mxu0 0.0
      %1410 = vmatpush1.msra.mxu0 0.0
      %1411 = vmatprep.subr.mxu0 0.0
      %1412 = vmatpush1.msra.mxu0 0.0
      %1413 = vmatprep.subr.mxu0 0.0
      %1414 = vmatpush1.msra.mxu0 0.0
      %1415 = vmatprep.subr.mxu0 0.0
      %1416 = vmatpush1.msra.mxu0 0.0
      %1417 = vmatprep.subr.mxu0 0.0
      %1418 = vmatpush1.msra.mxu0 0.0
      %1419 = vmatprep.subr.mxu0 0.0
      %1420 = vmatpush1.msra.mxu0 0.0
      %1421 = vmatprep.subr.mxu0 0.0
      %1422 = vmatpush1.msra.mxu0 0.0
      %1423 = vmatprep.subr.mxu0 0.0
      %1424 = vmatpush1.msra.mxu0 0.0
      %1425 = vmatprep.subr.mxu0 0.0
      %1426 = vmatpush1.msra.mxu0 0.0
      %1427 = vmatprep.mubr.f32.mxu0 0.0
      %1428 = vmatmul.mubr.f32.gmra.mrb[0].mxu0 %v1290
      %v1429 = vpop.f32.mrb[0].mxu0
      %v1430 = vadd.f32 0.0, %v1429
      %v1431 = vpop.f32.mrb[0].mxu0
      %v1432 = vadd.f32 0.0, %v1431
      %1433 = vdwg.mxu0
      %v1434 = vadd.f32 %v1269, %v1359
      %v1435 = vadd.f32 %v1270, %v1361
      %v1436 = vadd.f32 %v1271, %v1430
      %v1437 = vadd.f32 %v1272, %v1432
      %1438 = vrot.lane.b32.xlu0 %v298, 91
      %v1439 = vpop.permute.xlu0 %1438
      %1440 = vrot.lane.b32.xlu0 %v299, 91
      %v1441 = vpop.permute.xlu0 %1440
      %1442 = vrot.lane.b32.xlu0 %v300, 91
      %v1443 = vpop.permute.xlu0 %1442
      %1444 = vrot.lane.b32.xlu0 %v301, 91
      %v1445 = vpop.permute.xlu0 %1444
      %vm1446 = vcmask 744448
      %v1447 = vsel %vm1446, %v1439, %v1441
      %v1448 = vsel %vm1446, %v1441, %v1443
      %v1449 = vsel %vm1446, %v1443, %v1445
      %v1455 = vsel %vm322, %v239, 0
      %1457 = vmatprep.subr.mxu0 %v1448
      %1458 = vmatpush1.msra.mxu0 %v1447
      %1459 = vmatprep.subr.mxu0 0.0
      %1460 = vmatpush1.msra.mxu0 0.0
      %1461 = vmatprep.subr.mxu0 0.0
      %1462 = vmatpush1.msra.mxu0 0.0
      %1463 = vmatprep.subr.mxu0 0.0
      %1464 = vmatpush1.msra.mxu0 0.0
      %1465 = vmatprep.subr.mxu0 0.0
      %1466 = vmatpush1.msra.mxu0 0.0
      %1467 = vmatprep.subr.mxu0 0.0
      %1468 = vmatpush1.msra.mxu0 0.0
      %1469 = vmatprep.subr.mxu0 0.0
      %1470 = vmatpush1.msra.mxu0 0.0
      %1471 = vmatprep.subr.mxu0 0.0
      %1472 = vmatpush1.msra.mxu0 0.0
      %1473 = vmatprep.subr.mxu0 0.0
      %1474 = vmatpush1.msra.mxu0 0.0
      %1475 = vmatprep.subr.mxu0 0.0
      %1476 = vmatpush1.msra.mxu0 0.0
      %1477 = vmatprep.subr.mxu0 0.0
      %1478 = vmatpush1.msra.mxu0 0.0
      %1479 = vmatprep.subr.mxu0 0.0
      %1480 = vmatpush1.msra.mxu0 0.0
      %1481 = vmatprep.subr.mxu0 0.0
      %1482 = vmatpush1.msra.mxu0 0.0
      %1483 = vmatprep.subr.mxu0 0.0
      %1484 = vmatpush1.msra.mxu0 0.0
      %1485 = vmatprep.subr.mxu0 0.0
      %1486 = vmatpush1.msra.mxu0 0.0
      %1487 = vmatprep.subr.mxu0 0.0
      %1488 = vmatpush1.msra.mxu0 0.0
      %1489 = vmatprep.subr.mxu0 0.0
      %1490 = vmatpush1.msra.mxu0 0.0
      %1491 = vmatprep.subr.mxu0 0.0
      %1492 = vmatpush1.msra.mxu0 0.0
      %1493 = vmatprep.subr.mxu0 0.0
      %1494 = vmatpush1.msra.mxu0 0.0
      %1495 = vmatprep.subr.mxu0 0.0
      %1496 = vmatpush1.msra.mxu0 0.0
      %1497 = vmatprep.subr.mxu0 0.0
      %1498 = vmatpush1.msra.mxu0 0.0
      %1499 = vmatprep.subr.mxu0 0.0
      %1500 = vmatpush1.msra.mxu0 0.0
      %1501 = vmatprep.subr.mxu0 0.0
      %1502 = vmatpush1.msra.mxu0 0.0
      %1503 = vmatprep.subr.mxu0 0.0
      %1504 = vmatpush1.msra.mxu0 0.0
      %1505 = vmatprep.subr.mxu0 0.0
      %1506 = vmatpush1.msra.mxu0 0.0
      %1507 = vmatprep.subr.mxu0 0.0
      %1508 = vmatpush1.msra.mxu0 0.0
      %1509 = vmatprep.subr.mxu0 0.0
      %1510 = vmatpush1.msra.mxu0 0.0
      %1511 = vmatprep.subr.mxu0 0.0
      %1512 = vmatpush1.msra.mxu0 0.0
      %1513 = vmatprep.subr.mxu0 0.0
      %1514 = vmatpush1.msra.mxu0 0.0
      %1515 = vmatprep.subr.mxu0 0.0
      %1516 = vmatpush1.msra.mxu0 0.0
      %1517 = vmatprep.subr.mxu0 0.0
      %1518 = vmatpush1.msra.mxu0 0.0
      %1519 = vmatprep.subr.mxu0 0.0
      %1520 = vmatpush1.msra.mxu0 0.0
      %1521 = vmatprep.mubr.f32.mxu0 0.0
      %1522 = vmatmul.mubr.f32.gmra.mrb[0].mxu0 %v1455
      %v1523 = vpop.f32.mrb[0].mxu0
      %v1524 = vadd.f32 0.0, %v1523
      %v1525 = vpop.f32.mrb[0].mxu0
      %v1526 = vadd.f32 0.0, %v1525
      %1527 = vdwg.mxu0
      %1528 = vmatprep.subr.mxu0 %v1445
      %1529 = vmatpush1.msra.mxu0 %v1449
      %1530 = vmatprep.subr.mxu0 0.0
      %1531 = vmatpush1.msra.mxu0 0.0
      %1532 = vmatprep.subr.mxu0 0.0
      %1533 = vmatpush1.msra.mxu0 0.0
      %1534 = vmatprep.subr.mxu0 0.0
      %1535 = vmatpush1.msra.mxu0 0.0
      %1536 = vmatprep.subr.mxu0 0.0
      %1537 = vmatpush1.msra.mxu0 0.0
      %1538 = vmatprep.subr.mxu0 0.0
      %1539 = vmatpush1.msra.mxu0 0.0
      %1540 = vmatprep.subr.mxu0 0.0
      %1541 = vmatpush1.msra.mxu0 0.0
      %1542 = vmatprep.subr.mxu0 0.0
      %1543 = vmatpush1.msra.mxu0 0.0
      %1544 = vmatprep.subr.mxu0 0.0
      %1545 = vmatpush1.msra.mxu0 0.0
      %1546 = vmatprep.subr.mxu0 0.0
      %1547 = vmatpush1.msra.mxu0 0.0
      %1548 = vmatprep.subr.mxu0 0.0
      %1549 = vmatpush1.msra.mxu0 0.0
      %1550 = vmatprep.subr.mxu0 0.0
      %1551 = vmatpush1.msra.mxu0 0.0
      %1552 = vmatprep.subr.mxu0 0.0
      %1553 = vmatpush1.msra.mxu0 0.0
      %1554 = vmatprep.subr.mxu0 0.0
      %1555 = vmatpush1.msra.mxu0 0.0
      %1556 = vmatprep.subr.mxu0 0.0
      %1557 = vmatpush1.msra.mxu0 0.0
      %1558 = vmatprep.subr.mxu0 0.0
      %1559 = vmatpush1.msra.mxu0 0.0
      %1560 = vmatprep.subr.mxu0 0.0
      %1561 = vmatpush1.msra.mxu0 0.0
      %1562 = vmatprep.subr.mxu0 0.0
      %1563 = vmatpush1.msra.mxu0 0.0
      %1564 = vmatprep.subr.mxu0 0.0
      %1565 = vmatpush1.msra.mxu0 0.0
      %1566 = vmatprep.subr.mxu0 0.0
      %1567 = vmatpush1.msra.mxu0 0.0
      %1568 = vmatprep.subr.mxu0 0.0
      %1569 = vmatpush1.msra.mxu0 0.0
      %1570 = vmatprep.subr.mxu0 0.0
      %1571 = vmatpush1.msra.mxu0 0.0
      %1572 = vmatprep.subr.mxu0 0.0
      %1573 = vmatpush1.msra.mxu0 0.0
      %1574 = vmatprep.subr.mxu0 0.0
      %1575 = vmatpush1.msra.mxu0 0.0
      %1576 = vmatprep.subr.mxu0 0.0
      %1577 = vmatpush1.msra.mxu0 0.0
      %1578 = vmatprep.subr.mxu0 0.0
      %1579 = vmatpush1.msra.mxu0 0.0
      %1580 = vmatprep.subr.mxu0 0.0
      %1581 = vmatpush1.msra.mxu0 0.0
      %1582 = vmatprep.subr.mxu0 0.0
      %1583 = vmatpush1.msra.mxu0 0.0
      %1584 = vmatprep.subr.mxu0 0.0
      %1585 = vmatpush1.msra.mxu0 0.0
      %1586 = vmatprep.subr.mxu0 0.0
      %1587 = vmatpush1.msra.mxu0 0.0
      %1588 = vmatprep.subr.mxu0 0.0
      %1589 = vmatpush1.msra.mxu0 0.0
      %1590 = vmatprep.subr.mxu0 0.0
      %1591 = vmatpush1.msra.mxu0 0.0
      %1592 = vmatprep.mubr.f32.mxu0 0.0
      %1593 = vmatmul.mubr.f32.gmra.mrb[0].mxu0 %v1455
      %v1594 = vpop.f32.mrb[0].mxu0
      %v1595 = vadd.f32 0.0, %v1594
      %v1596 = vpop.f32.mrb[0].mxu0
      %v1597 = vadd.f32 0.0, %v1596
      %1598 = vdwg.mxu0
      %v1599 = vadd.f32 %v1434, %v1524
      %v1600 = vadd.f32 %v1435, %v1526
      %v1601 = vadd.f32 %v1436, %v1595
      %v1602 = vadd.f32 %v1437, %v1597
      %1603 = vrot.lane.b32.xlu0 %v298, 90
      %v1604 = vpop.permute.xlu0 %1603
      %1605 = vrot.lane.b32.xlu0 %v299, 90
      %v1606 = vpop.permute.xlu0 %1605
      %1607 = vrot.lane.b32.xlu0 %v300, 90
      %v1608 = vpop.permute.xlu0 %1607
      %1609 = vrot.lane.b32.xlu0 %v301, 90
      %v1610 = vpop.permute.xlu0 %1609
      %vm1611 = vcmask 736256
      %v1612 = vsel %vm1611, %v1604, %v1606
      %v1613 = vsel %vm1611, %v1606, %v1608
      %v1614 = vsel %vm1611, %v1608, %v1610
      %v1620 = vsel %vm322, %v241, 0
      %1622 = vmatprep.subr.mxu0 %v1613
      %1623 = vmatpush1.msra.mxu0 %v1612
      %1624 = vmatprep.subr.mxu0 0.0
      %1625 = vmatpush1.msra.mxu0 0.0
      %1626 = vmatprep.subr.mxu0 0.0
      %1627 = vmatpush1.msra.mxu0 0.0
      %1628 = vmatprep.subr.mxu0 0.0
      %1629 = vmatpush1.msra.mxu0 0.0
      %1630 = vmatprep.subr.mxu0 0.0
      %1631 = vmatpush1.msra.mxu0 0.0
      %1632 = vmatprep.subr.mxu0 0.0
      %1633 = vmatpush1.msra.mxu0 0.0
      %1634 = vmatprep.subr.mxu0 0.0
      %1635 = vmatpush1.msra.mxu0 0.0
      %1636 = vmatprep.subr.mxu0 0.0
      %1637 = vmatpush1.msra.mxu0 0.0
      %1638 = vmatprep.subr.mxu0 0.0
      %1639 = vmatpush1.msra.mxu0 0.0
      %1640 = vmatprep.subr.mxu0 0.0
      %1641 = vmatpush1.msra.mxu0 0.0
      %1642 = vmatprep.subr.mxu0 0.0
      %1643 = vmatpush1.msra.mxu0 0.0
      %1644 = vmatprep.subr.mxu0 0.0
      %1645 = vmatpush1.msra.mxu0 0.0
      %1646 = vmatprep.subr.mxu0 0.0
      %1647 = vmatpush1.msra.mxu0 0.0
      %1648 = vmatprep.subr.mxu0 0.0
      %1649 = vmatpush1.msra.mxu0 0.0
      %1650 = vmatprep.subr.mxu0 0.0
      %1651 = vmatpush1.msra.mxu0 0.0
      %1652 = vmatprep.subr.mxu0 0.0
      %1653 = vmatpush1.msra.mxu0 0.0
      %1654 = vmatprep.subr.mxu0 0.0
      %1655 = vmatpush1.msra.mxu0 0.0
      %1656 = vmatprep.subr.mxu0 0.0
      %1657 = vmatpush1.msra.mxu0 0.0
      %1658 = vmatprep.subr.mxu0 0.0
      %1659 = vmatpush1.msra.mxu0 0.0
      %1660 = vmatprep.subr.mxu0 0.0
      %1661 = vmatpush1.msra.mxu0 0.0
      %1662 = vmatprep.subr.mxu0 0.0
      %1663 = vmatpush1.msra.mxu0 0.0
      %1664 = vmatprep.subr.mxu0 0.0
      %1665 = vmatpush1.msra.mxu0 0.0
      %1666 = vmatprep.subr.mxu0 0.0
      %1667 = vmatpush1.msra.mxu0 0.0
      %1668 = vmatprep.subr.mxu0 0.0
      %1669 = vmatpush1.msra.mxu0 0.0
      %1670 = vmatprep.subr.mxu0 0.0
      %1671 = vmatpush1.msra.mxu0 0.0
      %1672 = vmatprep.subr.mxu0 0.0
      %1673 = vmatpush1.msra.mxu0 0.0
      %1674 = vmatprep.subr.mxu0 0.0
      %1675 = vmatpush1.msra.mxu0 0.0
      %1676 = vmatprep.subr.mxu0 0.0
      %1677 = vmatpush1.msra.mxu0 0.0
      %1678 = vmatprep.subr.mxu0 0.0
      %1679 = vmatpush1.msra.mxu0 0.0
      %1680 = vmatprep.subr.mxu0 0.0
      %1681 = vmatpush1.msra.mxu0 0.0
      %1682 = vmatprep.subr.mxu0 0.0
      %1683 = vmatpush1.msra.mxu0 0.0
      %1684 = vmatprep.subr.mxu0 0.0
      %1685 = vmatpush1.msra.mxu0 0.0
      %1686 = vmatprep.mubr.f32.mxu0 0.0
      %1687 = vmatmul.mubr.f32.gmra.mrb[0].mxu0 %v1620
      %v1688 = vpop.f32.mrb[0].mxu0
      %v1689 = vadd.f32 0.0, %v1688
      %v1690 = vpop.f32.mrb[0].mxu0
      %v1691 = vadd.f32 0.0, %v1690
      %1692 = vdwg.mxu0
      %1693 = vmatprep.subr.mxu0 %v1610
      %1694 = vmatpush1.msra.mxu0 %v1614
      %1695 = vmatprep.subr.mxu0 0.0
      %1696 = vmatpush1.msra.mxu0 0.0
      %1697 = vmatprep.subr.mxu0 0.0
      %1698 = vmatpush1.msra.mxu0 0.0
      %1699 = vmatprep.subr.mxu0 0.0
      %1700 = vmatpush1.msra.mxu0 0.0
      %1701 = vmatprep.subr.mxu0 0.0
      %1702 = vmatpush1.msra.mxu0 0.0
      %1703 = vmatprep.subr.mxu0 0.0
      %1704 = vmatpush1.msra.mxu0 0.0
      %1705 = vmatprep.subr.mxu0 0.0
      %1706 = vmatpush1.msra.mxu0 0.0
      %1707 = vmatprep.subr.mxu0 0.0
      %1708 = vmatpush1.msra.mxu0 0.0
      %1709 = vmatprep.subr.mxu0 0.0
      %1710 = vmatpush1.msra.mxu0 0.0
      %1711 = vmatprep.subr.mxu0 0.0
      %1712 = vmatpush1.msra.mxu0 0.0
      %1713 = vmatprep.subr.mxu0 0.0
      %1714 = vmatpush1.msra.mxu0 0.0
      %1715 = vmatprep.subr.mxu0 0.0
      %1716 = vmatpush1.msra.mxu0 0.0
      %1717 = vmatprep.subr.mxu0 0.0
      %1718 = vmatpush1.msra.mxu0 0.0
      %1719 = vmatprep.subr.mxu0 0.0
      %1720 = vmatpush1.msra.mxu0 0.0
      %1721 = vmatprep.subr.mxu0 0.0
      %1722 = vmatpush1.msra.mxu0 0.0
      %1723 = vmatprep.subr.mxu0 0.0
      %1724 = vmatpush1.msra.mxu0 0.0
      %1725 = vmatprep.subr.mxu0 0.0
      %1726 = vmatpush1.msra.mxu0 0.0
      %1727 = vmatprep.subr.mxu0 0.0
      %1728 = vmatpush1.msra.mxu0 0.0
      %1729 = vmatprep.subr.mxu0 0.0
      %1730 = vmatpush1.msra.mxu0 0.0
      %1731 = vmatprep.subr.mxu0 0.0
      %1732 = vmatpush1.msra.mxu0 0.0
      %1733 = vmatprep.subr.mxu0 0.0
      %1734 = vmatpush1.msra.mxu0 0.0
      %1735 = vmatprep.subr.mxu0 0.0
      %1736 = vmatpush1.msra.mxu0 0.0
      %1737 = vmatprep.subr.mxu0 0.0
      %1738 = vmatpush1.msra.mxu0 0.0
      %1739 = vmatprep.subr.mxu0 0.0
      %1740 = vmatpush1.msra.mxu0 0.0
      %1741 = vmatprep.subr.mxu0 0.0
      %1742 = vmatpush1.msra.mxu0 0.0
      %1743 = vmatprep.subr.mxu0 0.0
      %1744 = vmatpush1.msra.mxu0 0.0
      %1745 = vmatprep.subr.mxu0 0.0
      %1746 = vmatpush1.msra.mxu0 0.0
      %1747 = vmatprep.subr.mxu0 0.0
      %1748 = vmatpush1.msra.mxu0 0.0
      %1749 = vmatprep.subr.mxu0 0.0
      %1750 = vmatpush1.msra.mxu0 0.0
      %1751 = vmatprep.subr.mxu0 0.0
      %1752 = vmatpush1.msra.mxu0 0.0
      %1753 = vmatprep.subr.mxu0 0.0
      %1754 = vmatpush1.msra.mxu0 0.0
      %1755 = vmatprep.subr.mxu0 0.0
      %1756 = vmatpush1.msra.mxu0 0.0
      %1757 = vmatprep.mubr.f32.mxu0 0.0
      %1758 = vmatmul.mubr.f32.gmra.mrb[0].mxu0 %v1620
      %v1759 = vpop.f32.mrb[0].mxu0
      %v1760 = vadd.f32 0.0, %v1759
      %v1761 = vpop.f32.mrb[0].mxu0
      %v1762 = vadd.f32 0.0, %v1761
      %1763 = vdwg.mxu0
      %v1764 = vadd.f32 %v1599, %v1689
      %v1765 = vadd.f32 %v1600, %v1691
      %v1766 = vadd.f32 %v1601, %v1760
      %v1767 = vadd.f32 %v1602, %v1762
      %v1768 = vmul.f32 %v1764, %v264
      %v1769 = vmul.f32 %v1765, %v268
      %v1770 = vmul.f32 %v1766, %v272
      %v1771 = vmul.f32 %v1767, %v276
      %v1772 = vadd.f32 %v1768, %v1769
      %v1773 = vadd.f32 %v1772, %v1770
      %vm1774 = vcmask 326656
      %v1775 = vsel %vm1774, %v1771, 0.0
      %v1776 = vadd.f32 %v1773, %v1775
      %1777 = vadd.xlane.f32.xlu0 %v1776
      %v1778 = vpop.xlane.xlu0 %1777
      %v1779 = vmul.f32 %v1768, %v1768
      %v1780 = vmul.f32 %v1769, %v1769
      %v1781 = vmul.f32 %v1770, %v1770
      %v1782 = vmul.f32 %v1771, %v1771
      %v1783 = vadd.f32 %v1779, %v1780
      %v1784 = vadd.f32 %v1783, %v1781
      %v1785 = vsel %vm1774, %v1782, 0.0
      %v1786 = vadd.f32 %v1784, %v1785
      %1787 = vadd.xlane.f32.xlu0 %v1786
      %v1788 = vpop.xlane.xlu0 %1787
      %v1789 = vmul.f32 %v1778, 0.00390625
      %v1790 = vmul.f32 %v1788, 0.00390625
      %v1791 = vmul.f32 %v1789, %v1789
      %v1792 = vsub.f32 %v1790, %v1791
      %v1793 = vmax.f32 %v1792, 0.0
      %v1794 = vadd.f32 %v1793, 1e-05
      %v1795 = vrsqrt.pop %v1794
      %v1796 = vmul.f32 %v1789, %v264
      %v1797 = vmul.f32 %v1789, %v268
      %v1798 = vmul.f32 %v1789, %v272
      %v1799 = vmul.f32 %v1789, %v276
      %v1800 = vsub.f32 %v1768, %v1796
      %v1801 = vsub.f32 %v1769, %v1797
      %v1802 = vsub.f32 %v1770, %v1798
      %v1803 = vsub.f32 %v1771, %v1799
      %v1804 = vmul.f32 %v1800, %v1795
      %v1805 = vmul.f32 %v1801, %v1795
      %v1806 = vmul.f32 %v1802, %v1795
      %v1807 = vmul.f32 %v1803, %v1795
      %v1808 = vmax.f32 %v1804, 0.0
      %v1809 = vmax.f32 %v1805, 0.0
      %v1810 = vmax.f32 %v1806, 0.0
      %v1811 = vmax.f32 %v1807, 0.0
      %1812 = vst [vmem:[#allocation2] sm:$0xff] %v1808
      %1813 = vst [vmem:[#allocation2 + $0x8] sm:$0xff] %v1809
      %1814 = vst [vmem:[#allocation2 + $0x10] sm:$0xff] %v1810
      %1815 = vst.msk [vmem:[#allocation2 + $0x18] sm:$0xff] %vm1774, %v1811
      %v1816 = vld [vmem:[#allocation2] sm:$0xff]
      %v1817 = vld [vmem:[#allocation2 + $0x8] sm:$0xff]
      %v1818 = vld [vmem:[#allocation2 + $0x10] sm:$0xff]
      %v1819 = vld [vmem:[#allocation2 + $0x18] sm:$0xff]
      %1824 = vrot.lane.b32.xlu0 %v1816, 127
      %v1825 = vpop.permute.xlu0 %1824
      %1826 = vrot.lane.b32.xlu0 %v1817, 127
      %v1827 = vpop.permute.xlu0 %1826
      %1828 = vrot.lane.b32.xlu0 %v1818, 127
      %v1829 = vpop.permute.xlu0 %1828
      %1830 = vrot.lane.b32.xlu0 %v1819, 127
      %v1831 = vpop.permute.xlu0 %1830
      %v1832 = vsel %vm314, %v1825, %v1827
      %v1833 = vsel %vm314, %v1827, %v1829
      %v1834 = vsel %vm314, %v1829, %v1831
      %v1839 = vsel %vm322, %v244, 0
      %1841 = vmatprep.subr.mxu0 %v1833
      %1842 = vmatpush1.msra.mxu0 %v1832
      %1843 = vmatprep.subr.mxu0 0.0
      %1844 = vmatpush1.msra.mxu0 0.0
      %1845 = vmatprep.subr.mxu0 0.0
      %1846 = vmatpush1.msra.mxu0 0.0
      %1847 = vmatprep.subr.mxu0 0.0
      %1848 = vmatpush1.msra.mxu0 0.0
      %1849 = vmatprep.subr.mxu0 0.0
      %1850 = vmatpush1.msra.mxu0 0.0
      %1851 = vmatprep.subr.mxu0 0.0
      %1852 = vmatpush1.msra.mxu0 0.0
      %1853 = vmatprep.subr.mxu0 0.0
      %1854 = vmatpush1.msra.mxu0 0.0
      %1855 = vmatprep.subr.mxu0 0.0
      %1856 = vmatpush1.msra.mxu0 0.0
      %1857 = vmatprep.subr.mxu0 0.0
      %1858 = vmatpush1.msra.mxu0 0.0
      %1859 = vmatprep.subr.mxu0 0.0
      %1860 = vmatpush1.msra.mxu0 0.0
      %1861 = vmatprep.subr.mxu0 0.0
      %1862 = vmatpush1.msra.mxu0 0.0
      %1863 = vmatprep.subr.mxu0 0.0
      %1864 = vmatpush1.msra.mxu0 0.0
      %1865 = vmatprep.subr.mxu0 0.0
      %1866 = vmatpush1.msra.mxu0 0.0
      %1867 = vmatprep.subr.mxu0 0.0
      %1868 = vmatpush1.msra.mxu0 0.0
      %1869 = vmatprep.subr.mxu0 0.0
      %1870 = vmatpush1.msra.mxu0 0.0
      %1871 = vmatprep.subr.mxu0 0.0
      %1872 = vmatpush1.msra.mxu0 0.0
      %1873 = vmatprep.subr.mxu0 0.0
      %1874 = vmatpush1.msra.mxu0 0.0
      %1875 = vmatprep.subr.mxu0 0.0
      %1876 = vmatpush1.msra.mxu0 0.0
      %1877 = vmatprep.subr.mxu0 0.0
      %1878 = vmatpush1.msra.mxu0 0.0
      %1879 = vmatprep.subr.mxu0 0.0
      %1880 = vmatpush1.msra.mxu0 0.0
      %1881 = vmatprep.subr.mxu0 0.0
      %1882 = vmatpush1.msra.mxu0 0.0
      %1883 = vmatprep.subr.mxu0 0.0
      %1884 = vmatpush1.msra.mxu0 0.0
      %1885 = vmatprep.subr.mxu0 0.0
      %1886 = vmatpush1.msra.mxu0 0.0
      %1887 = vmatprep.subr.mxu0 0.0
      %1888 = vmatpush1.msra.mxu0 0.0
      %1889 = vmatprep.subr.mxu0 0.0
      %1890 = vmatpush1.msra.mxu0 0.0
      %1891 = vmatprep.subr.mxu0 0.0
      %1892 = vmatpush1.msra.mxu0 0.0
      %1893 = vmatprep.subr.mxu0 0.0
      %1894 = vmatpush1.msra.mxu0 0.0
      %1895 = vmatprep.subr.mxu0 0.0
      %1896 = vmatpush1.msra.mxu0 0.0
      %1897 = vmatprep.subr.mxu0 0.0
      %1898 = vmatpush1.msra.mxu0 0.0
      %1899 = vmatprep.subr.mxu0 0.0
      %1900 = vmatpush1.msra.mxu0 0.0
      %1901 = vmatprep.subr.mxu0 0.0
      %1902 = vmatpush1.msra.mxu0 0.0
      %1903 = vmatprep.subr.mxu0 0.0
      %1904 = vmatpush1.msra.mxu0 0.0
      %1905 = vmatprep.mubr.f32.mxu0 0.0
      %1906 = vmatmul.mubr.f32.gmra.mrb[0].mxu0 %v1839
      %v1907 = vpop.f32.mrb[0].mxu0
      %v1908 = vadd.f32 0.0, %v1907
      %v1909 = vpop.f32.mrb[0].mxu0
      %v1910 = vadd.f32 0.0, %v1909
      %1911 = vdwg.mxu0
      %1912 = vmatprep.subr.mxu0 0.0
      %1913 = vmatpush1.msra.mxu0 %v1834
      %1914 = vmatprep.subr.mxu0 0.0
      %1915 = vmatpush1.msra.mxu0 0.0
      %1916 = vmatprep.subr.mxu0 0.0
      %1917 = vmatpush1.msra.mxu0 0.0
      %1918 = vmatprep.subr.mxu0 0.0
      %1919 = vmatpush1.msra.mxu0 0.0
      %1920 = vmatprep.subr.mxu0 0.0
      %1921 = vmatpush1.msra.mxu0 0.0
      %1922 = vmatprep.subr.mxu0 0.0
      %1923 = vmatpush1.msra.mxu0 0.0
      %1924 = vmatprep.subr.mxu0 0.0
      %1925 = vmatpush1.msra.mxu0 0.0
      %1926 = vmatprep.subr.mxu0 0.0
      %1927 = vmatpush1.msra.mxu0 0.0
      %1928 = vmatprep.subr.mxu0 0.0
      %1929 = vmatpush1.msra.mxu0 0.0
      %1930 = vmatprep.subr.mxu0 0.0
      %1931 = vmatpush1.msra.mxu0 0.0
      %1932 = vmatprep.subr.mxu0 0.0
      %1933 = vmatpush1.msra.mxu0 0.0
      %1934 = vmatprep.subr.mxu0 0.0
      %1935 = vmatpush1.msra.mxu0 0.0
      %1936 = vmatprep.subr.mxu0 0.0
      %1937 = vmatpush1.msra.mxu0 0.0
      %1938 = vmatprep.subr.mxu0 0.0
      %1939 = vmatpush1.msra.mxu0 0.0
      %1940 = vmatprep.subr.mxu0 0.0
      %1941 = vmatpush1.msra.mxu0 0.0
      %1942 = vmatprep.subr.mxu0 0.0
      %1943 = vmatpush1.msra.mxu0 0.0
      %1944 = vmatprep.subr.mxu0 0.0
      %1945 = vmatpush1.msra.mxu0 0.0
      %1946 = vmatprep.subr.mxu0 0.0
      %1947 = vmatpush1.msra.mxu0 0.0
      %1948 = vmatprep.subr.mxu0 0.0
      %1949 = vmatpush1.msra.mxu0 0.0
      %1950 = vmatprep.subr.mxu0 0.0
      %1951 = vmatpush1.msra.mxu0 0.0
      %1952 = vmatprep.subr.mxu0 0.0
      %1953 = vmatpush1.msra.mxu0 0.0
      %1954 = vmatprep.subr.mxu0 0.0
      %1955 = vmatpush1.msra.mxu0 0.0
      %1956 = vmatprep.subr.mxu0 0.0
      %1957 = vmatpush1.msra.mxu0 0.0
      %1958 = vmatprep.subr.mxu0 0.0
      %1959 = vmatpush1.msra.mxu0 0.0
      %1960 = vmatprep.subr.mxu0 0.0
      %1961 = vmatpush1.msra.mxu0 0.0
      %1962 = vmatprep.subr.mxu0 0.0
      %1963 = vmatpush1.msra.mxu0 0.0
      %1964 = vmatprep.subr.mxu0 0.0
      %1965 = vmatpush1.msra.mxu0 0.0
      %1966 = vmatprep.subr.mxu0 0.0
      %1967 = vmatpush1.msra.mxu0 0.0
      %1968 = vmatprep.subr.mxu0 0.0
      %1969 = vmatpush1.msra.mxu0 0.0
      %1970 = vmatprep.subr.mxu0 0.0
      %1971 = vmatpush1.msra.mxu0 0.0
      %1972 = vmatprep.subr.mxu0 0.0
      %1973 = vmatpush1.msra.mxu0 0.0
      %1974 = vmatprep.subr.mxu0 0.0
      %1975 = vmatpush1.msra.mxu0 0.0
      %1976 = vmatprep.mubr.f32.mxu0 0.0
      %1977 = vmatmul.mubr.f32.gmra.mrb[0].mxu0 %v1839
      %v1978 = vpop.f32.mrb[0].mxu0
      %v1979 = vadd.f32 0.0, %v1978
      %v1980 = vpop.f32.mrb[0].mxu0
      %1981 = vdwg.mxu0
      %v1983 = vsel %vm322, %v242, 0
      %1985 = vmatprep.subr.mxu0 %v1817
      %1986 = vmatpush1.msra.mxu0 %v1816
      %1987 = vmatprep.subr.mxu0 0.0
      %1988 = vmatpush1.msra.mxu0 0.0
      %1989 = vmatprep.subr.mxu0 0.0
      %1990 = vmatpush1.msra.mxu0 0.0
      %1991 = vmatprep.subr.mxu0 0.0
      %1992 = vmatpush1.msra.mxu0 0.0
      %1993 = vmatprep.subr.mxu0 0.0
      %1994 = vmatpush1.msra.mxu0 0.0
      %1995 = vmatprep.subr.mxu0 0.0
      %1996 = vmatpush1.msra.mxu0 0.0
      %1997 = vmatprep.subr.mxu0 0.0
      %1998 = vmatpush1.msra.mxu0 0.0
      %1999 = vmatprep.subr.mxu0 0.0
      %2000 = vmatpush1.msra.mxu0 0.0
      %2001 = vmatprep.subr.mxu0 0.0
      %2002 = vmatpush1.msra.mxu0 0.0
      %2003 = vmatprep.subr.mxu0 0.0
      %2004 = vmatpush1.msra.mxu0 0.0
      %2005 = vmatprep.subr.mxu0 0.0
      %2006 = vmatpush1.msra.mxu0 0.0
      %2007 = vmatprep.subr.mxu0 0.0
      %2008 = vmatpush1.msra.mxu0 0.0
      %2009 = vmatprep.subr.mxu0 0.0
      %2010 = vmatpush1.msra.mxu0 0.0
      %2011 = vmatprep.subr.mxu0 0.0
      %2012 = vmatpush1.msra.mxu0 0.0
      %2013 = vmatprep.subr.mxu0 0.0
      %2014 = vmatpush1.msra.mxu0 0.0
      %2015 = vmatprep.subr.mxu0 0.0
      %2016 = vmatpush1.msra.mxu0 0.0
      %2017 = vmatprep.subr.mxu0 0.0
      %2018 = vmatpush1.msra.mxu0 0.0
      %2019 = vmatprep.subr.mxu0 0.0
      %2020 = vmatpush1.msra.mxu0 0.0
      %2021 = vmatprep.subr.mxu0 0.0
      %2022 = vmatpush1.msra.mxu0 0.0
      %2023 = vmatprep.subr.mxu0 0.0
      %2024 = vmatpush1.msra.mxu0 0.0
      %2025 = vmatprep.subr.mxu0 0.0
      %2026 = vmatpush1.msra.mxu0 0.0
      %2027 = vmatprep.subr.mxu0 0.0
      %2028 = vmatpush1.msra.mxu0 0.0
      %2029 = vmatprep.subr.mxu0 0.0
      %2030 = vmatpush1.msra.mxu0 0.0
      %2031 = vmatprep.subr.mxu0 0.0
      %2032 = vmatpush1.msra.mxu0 0.0
      %2033 = vmatprep.subr.mxu0 0.0
      %2034 = vmatpush1.msra.mxu0 0.0
      %2035 = vmatprep.subr.mxu0 0.0
      %2036 = vmatpush1.msra.mxu0 0.0
      %2037 = vmatprep.subr.mxu0 0.0
      %2038 = vmatpush1.msra.mxu0 0.0
      %2039 = vmatprep.subr.mxu0 0.0
      %2040 = vmatpush1.msra.mxu0 0.0
      %2041 = vmatprep.subr.mxu0 0.0
      %2042 = vmatpush1.msra.mxu0 0.0
      %2043 = vmatprep.subr.mxu0 0.0
      %2044 = vmatpush1.msra.mxu0 0.0
      %2045 = vmatprep.subr.mxu0 0.0
      %2046 = vmatpush1.msra.mxu0 0.0
      %2047 = vmatprep.subr.mxu0 0.0
      %2048 = vmatpush1.msra.mxu0 0.0
      %2049 = vmatprep.mubr.f32.mxu0 0.0
      %2050 = vmatmul.mubr.f32.gmra.mrb[0].mxu0 %v1983
      %v2051 = vpop.f32.mrb[0].mxu0
      %v2052 = vadd.f32 %v1908, %v2051
      %v2053 = vpop.f32.mrb[0].mxu0
      %v2054 = vadd.f32 %v1910, %v2053
      %2055 = vdwg.mxu0
      %2056 = vmatprep.subr.mxu0 0.0
      %2057 = vmatpush1.msra.mxu0 %v1818
      %2058 = vmatprep.subr.mxu0 0.0
      %2059 = vmatpush1.msra.mxu0 0.0
      %2060 = vmatprep.subr.mxu0 0.0
      %2061 = vmatpush1.msra.mxu0 0.0
      %2062 = vmatprep.subr.mxu0 0.0
      %2063 = vmatpush1.msra.mxu0 0.0
      %2064 = vmatprep.subr.mxu0 0.0
      %2065 = vmatpush1.msra.mxu0 0.0
      %2066 = vmatprep.subr.mxu0 0.0
      %2067 = vmatpush1.msra.mxu0 0.0
      %2068 = vmatprep.subr.mxu0 0.0
      %2069 = vmatpush1.msra.mxu0 0.0
      %2070 = vmatprep.subr.mxu0 0.0
      %2071 = vmatpush1.msra.mxu0 0.0
      %2072 = vmatprep.subr.mxu0 0.0
      %2073 = vmatpush1.msra.mxu0 0.0
      %2074 = vmatprep.subr.mxu0 0.0
      %2075 = vmatpush1.msra.mxu0 0.0
      %2076 = vmatprep.subr.mxu0 0.0
      %2077 = vmatpush1.msra.mxu0 0.0
      %2078 = vmatprep.subr.mxu0 0.0
      %2079 = vmatpush1.msra.mxu0 0.0
      %2080 = vmatprep.subr.mxu0 0.0
      %2081 = vmatpush1.msra.mxu0 0.0
      %2082 = vmatprep.subr.mxu0 0.0
      %2083 = vmatpush1.msra.mxu0 0.0
      %2084 = vmatprep.subr.mxu0 0.0
      %2085 = vmatpush1.msra.mxu0 0.0
      %2086 = vmatprep.subr.mxu0 0.0
      %2087 = vmatpush1.msra.mxu0 0.0
      %2088 = vmatprep.subr.mxu0 0.0
      %2089 = vmatpush1.msra.mxu0 0.0
      %2090 = vmatprep.subr.mxu0 0.0
      %2091 = vmatpush1.msra.mxu0 0.0
      %2092 = vmatprep.subr.mxu0 0.0
      %2093 = vmatpush1.msra.mxu0 0.0
      %2094 = vmatprep.subr.mxu0 0.0
      %2095 = vmatpush1.msra.mxu0 0.0
      %2096 = vmatprep.subr.mxu0 0.0
      %2097 = vmatpush1.msra.mxu0 0.0
      %2098 = vmatprep.subr.mxu0 0.0
      %2099 = vmatpush1.msra.mxu0 0.0
      %2100 = vmatprep.subr.mxu0 0.0
      %2101 = vmatpush1.msra.mxu0 0.0
      %2102 = vmatprep.subr.mxu0 0.0
      %2103 = vmatpush1.msra.mxu0 0.0
      %2104 = vmatprep.subr.mxu0 0.0
      %2105 = vmatpush1.msra.mxu0 0.0
      %2106 = vmatprep.subr.mxu0 0.0
      %2107 = vmatpush1.msra.mxu0 0.0
      %2108 = vmatprep.subr.mxu0 0.0
      %2109 = vmatpush1.msra.mxu0 0.0
      %2110 = vmatprep.subr.mxu0 0.0
      %2111 = vmatpush1.msra.mxu0 0.0
      %2112 = vmatprep.subr.mxu0 0.0
      %2113 = vmatpush1.msra.mxu0 0.0
      %2114 = vmatprep.subr.mxu0 0.0
      %2115 = vmatpush1.msra.mxu0 0.0
      %2116 = vmatprep.subr.mxu0 0.0
      %2117 = vmatpush1.msra.mxu0 0.0
      %2118 = vmatprep.subr.mxu0 0.0
      %2119 = vmatpush1.msra.mxu0 0.0
      %2120 = vmatprep.mubr.f32.mxu0 0.0
      %2121 = vmatmul.mubr.f32.gmra.mrb[0].mxu0 %v1983
      %v2122 = vpop.f32.mrb[0].mxu0
      %v2123 = vadd.f32 %v1979, %v2122
      %v2124 = vpop.f32.mrb[0].mxu0
      %2125 = vdwg.mxu0
      %2126 = vrot.lane.b32.xlu0 %v1816, 126
      %v2127 = vpop.permute.xlu0 %2126
      %2128 = vrot.lane.b32.xlu0 %v1817, 126
      %v2129 = vpop.permute.xlu0 %2128
      %2130 = vrot.lane.b32.xlu0 %v1818, 126
      %v2131 = vpop.permute.xlu0 %2130
      %2132 = vrot.lane.b32.xlu0 %v1819, 126
      %v2133 = vpop.permute.xlu0 %2132
      %v2134 = vsel %vm621, %v2127, %v2129
      %v2135 = vsel %vm621, %v2129, %v2131
      %v2136 = vsel %vm621, %v2131, %v2133
      %v2141 = vsel %vm322, %v246, 0
      %2143 = vmatprep.subr.mxu0 %v2135
      %2144 = vmatpush1.msra.mxu0 %v2134
      %2145 = vmatprep.subr.mxu0 0.0
      %2146 = vmatpush1.msra.mxu0 0.0
      %2147 = vmatprep.subr.mxu0 0.0
      %2148 = vmatpush1.msra.mxu0 0.0
      %2149 = vmatprep.subr.mxu0 0.0
      %2150 = vmatpush1.msra.mxu0 0.0
      %2151 = vmatprep.subr.mxu0 0.0
      %2152 = vmatpush1.msra.mxu0 0.0
      %2153 = vmatprep.subr.mxu0 0.0
      %2154 = vmatpush1.msra.mxu0 0.0
      %2155 = vmatprep.subr.mxu0 0.0
      %2156 = vmatpush1.msra.mxu0 0.0
      %2157 = vmatprep.subr.mxu0 0.0
      %2158 = vmatpush1.msra.mxu0 0.0
      %2159 = vmatprep.subr.mxu0 0.0
      %2160 = vmatpush1.msra.mxu0 0.0
      %2161 = vmatprep.subr.mxu0 0.0
      %2162 = vmatpush1.msra.mxu0 0.0
      %2163 = vmatprep.subr.mxu0 0.0
      %2164 = vmatpush1.msra.mxu0 0.0
      %2165 = vmatprep.subr.mxu0 0.0
      %2166 = vmatpush1.msra.mxu0 0.0
      %2167 = vmatprep.subr.mxu0 0.0
      %2168 = vmatpush1.msra.mxu0 0.0
      %2169 = vmatprep.subr.mxu0 0.0
      %2170 = vmatpush1.msra.mxu0 0.0
      %2171 = vmatprep.subr.mxu0 0.0
      %2172 = vmatpush1.msra.mxu0 0.0
      %2173 = vmatprep.subr.mxu0 0.0
      %2174 = vmatpush1.msra.mxu0 0.0
      %2175 = vmatprep.subr.mxu0 0.0
      %2176 = vmatpush1.msra.mxu0 0.0
      %2177 = vmatprep.subr.mxu0 0.0
      %2178 = vmatpush1.msra.mxu0 0.0
      %2179 = vmatprep.subr.mxu0 0.0
      %2180 = vmatpush1.msra.mxu0 0.0
      %2181 = vmatprep.subr.mxu0 0.0
      %2182 = vmatpush1.msra.mxu0 0.0
      %2183 = vmatprep.subr.mxu0 0.0
      %2184 = vmatpush1.msra.mxu0 0.0
      %2185 = vmatprep.subr.mxu0 0.0
      %2186 = vmatpush1.msra.mxu0 0.0
      %2187 = vmatprep.subr.mxu0 0.0
      %2188 = vmatpush1.msra.mxu0 0.0
      %2189 = vmatprep.subr.mxu0 0.0
      %2190 = vmatpush1.msra.mxu0 0.0
      %2191 = vmatprep.subr.mxu0 0.0
      %2192 = vmatpush1.msra.mxu0 0.0
      %2193 = vmatprep.subr.mxu0 0.0
      %2194 = vmatpush1.msra.mxu0 0.0
      %2195 = vmatprep.subr.mxu0 0.0
      %2196 = vmatpush1.msra.mxu0 0.0
      %2197 = vmatprep.subr.mxu0 0.0
      %2198 = vmatpush1.msra.mxu0 0.0
      %2199 = vmatprep.subr.mxu0 0.0
      %2200 = vmatpush1.msra.mxu0 0.0
      %2201 = vmatprep.subr.mxu0 0.0
      %2202 = vmatpush1.msra.mxu0 0.0
      %2203 = vmatprep.subr.mxu0 0.0
      %2204 = vmatpush1.msra.mxu0 0.0
      %2205 = vmatprep.subr.mxu0 0.0
      %2206 = vmatpush1.msra.mxu0 0.0
      %2207 = vmatprep.mubr.f32.mxu0 0.0
      %2208 = vmatmul.mubr.f32.gmra.mrb[0].mxu0 %v2141
      %v2209 = vpop.f32.mrb[0].mxu0
      %v2210 = vadd.f32 0.0, %v2209
      %v2211 = vpop.f32.mrb[0].mxu0
      %v2212 = vadd.f32 0.0, %v2211
      %2213 = vdwg.mxu0
      %2214 = vmatprep.subr.mxu0 0.0
      %2215 = vmatpush1.msra.mxu0 %v2136
      %2216 = vmatprep.subr.mxu0 0.0
      %2217 = vmatpush1.msra.mxu0 0.0
      %2218 = vmatprep.subr.mxu0 0.0
      %2219 = vmatpush1.msra.mxu0 0.0
      %2220 = vmatprep.subr.mxu0 0.0
      %2221 = vmatpush1.msra.mxu0 0.0
      %2222 = vmatprep.subr.mxu0 0.0
      %2223 = vmatpush1.msra.mxu0 0.0
      %2224 = vmatprep.subr.mxu0 0.0
      %2225 = vmatpush1.msra.mxu0 0.0
      %2226 = vmatprep.subr.mxu0 0.0
      %2227 = vmatpush1.msra.mxu0 0.0
      %2228 = vmatprep.subr.mxu0 0.0
      %2229 = vmatpush1.msra.mxu0 0.0
      %2230 = vmatprep.subr.mxu0 0.0
      %2231 = vmatpush1.msra.mxu0 0.0
      %2232 = vmatprep.subr.mxu0 0.0
      %2233 = vmatpush1.msra.mxu0 0.0
      %2234 = vmatprep.subr.mxu0 0.0
      %2235 = vmatpush1.msra.mxu0 0.0
      %2236 = vmatprep.subr.mxu0 0.0
      %2237 = vmatpush1.msra.mxu0 0.0
      %2238 = vmatprep.subr.mxu0 0.0
      %2239 = vmatpush1.msra.mxu0 0.0
      %2240 = vmatprep.subr.mxu0 0.0
      %2241 = vmatpush1.msra.mxu0 0.0
      %2242 = vmatprep.subr.mxu0 0.0
      %2243 = vmatpush1.msra.mxu0 0.0
      %2244 = vmatprep.subr.mxu0 0.0
      %2245 = vmatpush1.msra.mxu0 0.0
      %2246 = vmatprep.subr.mxu0 0.0
      %2247 = vmatpush1.msra.mxu0 0.0
      %2248 = vmatprep.subr.mxu0 0.0
      %2249 = vmatpush1.msra.mxu0 0.0
      %2250 = vmatprep.subr.mxu0 0.0
      %2251 = vmatpush1.msra.mxu0 0.0
      %2252 = vmatprep.subr.mxu0 0.0
      %2253 = vmatpush1.msra.mxu0 0.0
      %2254 = vmatprep.subr.mxu0 0.0
      %2255 = vmatpush1.msra.mxu0 0.0
      %2256 = vmatprep.subr.mxu0 0.0
      %2257 = vmatpush1.msra.mxu0 0.0
      %2258 = vmatprep.subr.mxu0 0.0
      %2259 = vmatpush1.msra.mxu0 0.0
      %2260 = vmatprep.subr.mxu0 0.0
      %2261 = vmatpush1.msra.mxu0 0.0
      %2262 = vmatprep.subr.mxu0 0.0
      %2263 = vmatpush1.msra.mxu0 0.0
      %2264 = vmatprep.subr.mxu0 0.0
      %2265 = vmatpush1.msra.mxu0 0.0
      %2266 = vmatprep.subr.mxu0 0.0
      %2267 = vmatpush1.msra.mxu0 0.0
      %2268 = vmatprep.subr.mxu0 0.0
      %2269 = vmatpush1.msra.mxu0 0.0
      %2270 = vmatprep.subr.mxu0 0.0
      %2271 = vmatpush1.msra.mxu0 0.0
      %2272 = vmatprep.subr.mxu0 0.0
      %2273 = vmatpush1.msra.mxu0 0.0
      %2274 = vmatprep.subr.mxu0 0.0
      %2275 = vmatpush1.msra.mxu0 0.0
      %2276 = vmatprep.subr.mxu0 0.0
      %2277 = vmatpush1.msra.mxu0 0.0
      %2278 = vmatprep.mubr.f32.mxu0 0.0
      %2279 = vmatmul.mubr.f32.gmra.mrb[0].mxu0 %v2141
      %v2280 = vpop.f32.mrb[0].mxu0
      %v2281 = vadd.f32 0.0, %v2280
      %v2282 = vpop.f32.mrb[0].mxu0
      %2283 = vdwg.mxu0
      %v2284 = vadd.f32 %v2052, %v2210
      %v2285 = vadd.f32 %v2054, %v2212
      %v2286 = vadd.f32 %v2123, %v2281
      %2287 = vrot.lane.b32.xlu0 %v1816, 110
      %v2288 = vpop.permute.xlu0 %2287
      %2289 = vrot.lane.b32.xlu0 %v1817, 110
      %v2290 = vpop.permute.xlu0 %2289
      %2291 = vrot.lane.b32.xlu0 %v1818, 110
      %v2292 = vpop.permute.xlu0 %2291
      %2293 = vrot.lane.b32.xlu0 %v1819, 110
      %v2294 = vpop.permute.xlu0 %2293
      %v2295 = vsel %vm786, %v2288, %v2290
      %v2296 = vsel %vm786, %v2290, %v2292
      %v2297 = vsel %vm786, %v2292, %v2294
      %v2302 = vsel %vm322, %v248, 0
      %2304 = vmatprep.subr.mxu0 %v2296
      %2305 = vmatpush1.msra.mxu0 %v2295
      %2306 = vmatprep.subr.mxu0 0.0
      %2307 = vmatpush1.msra.mxu0 0.0
      %2308 = vmatprep.subr.mxu0 0.0
      %2309 = vmatpush1.msra.mxu0 0.0
      %2310 = vmatprep.subr.mxu0 0.0
      %2311 = vmatpush1.msra.mxu0 0.0
      %2312 = vmatprep.subr.mxu0 0.0
      %2313 = vmatpush1.msra.mxu0 0.0
      %2314 = vmatprep.subr.mxu0 0.0
      %2315 = vmatpush1.msra.mxu0 0.0
      %2316 = vmatprep.subr.mxu0 0.0
      %2317 = vmatpush1.msra.mxu0 0.0
      %2318 = vmatprep.subr.mxu0 0.0
      %2319 = vmatpush1.msra.mxu0 0.0
      %2320 = vmatprep.subr.mxu0 0.0
      %2321 = vmatpush1.msra.mxu0 0.0
      %2322 = vmatprep.subr.mxu0 0.0
      %2323 = vmatpush1.msra.mxu0 0.0
      %2324 = vmatprep.subr.mxu0 0.0
      %2325 = vmatpush1.msra.mxu0 0.0
      %2326 = vmatprep.subr.mxu0 0.0
      %2327 = vmatpush1.msra.mxu0 0.0
      %2328 = vmatprep.subr.mxu0 0.0
      %2329 = vmatpush1.msra.mxu0 0.0
      %2330 = vmatprep.subr.mxu0 0.0
      %2331 = vmatpush1.msra.mxu0 0.0
      %2332 = vmatprep.subr.mxu0 0.0
      %2333 = vmatpush1.msra.mxu0 0.0
      %2334 = vmatprep.subr.mxu0 0.0
      %2335 = vmatpush1.msra.mxu0 0.0
      %2336 = vmatprep.subr.mxu0 0.0
      %2337 = vmatpush1.msra.mxu0 0.0
      %2338 = vmatprep.subr.mxu0 0.0
      %2339 = vmatpush1.msra.mxu0 0.0
      %2340 = vmatprep.subr.mxu0 0.0
      %2341 = vmatpush1.msra.mxu0 0.0
      %2342 = vmatprep.subr.mxu0 0.0
      %2343 = vmatpush1.msra.mxu0 0.0
      %2344 = vmatprep.subr.mxu0 0.0
      %2345 = vmatpush1.msra.mxu0 0.0
      %2346 = vmatprep.subr.mxu0 0.0
      %2347 = vmatpush1.msra.mxu0 0.0
      %2348 = vmatprep.subr.mxu0 0.0
      %2349 = vmatpush1.msra.mxu0 0.0
      %2350 = vmatprep.subr.mxu0 0.0
      %2351 = vmatpush1.msra.mxu0 0.0
      %2352 = vmatprep.subr.mxu0 0.0
      %2353 = vmatpush1.msra.mxu0 0.0
      %2354 = vmatprep.subr.mxu0 0.0
      %2355 = vmatpush1.msra.mxu0 0.0
      %2356 = vmatprep.subr.mxu0 0.0
      %2357 = vmatpush1.msra.mxu0 0.0
      %2358 = vmatprep.subr.mxu0 0.0
      %2359 = vmatpush1.msra.mxu0 0.0
      %2360 = vmatprep.subr.mxu0 0.0
      %2361 = vmatpush1.msra.mxu0 0.0
      %2362 = vmatprep.subr.mxu0 0.0
      %2363 = vmatpush1.msra.mxu0 0.0
      %2364 = vmatprep.subr.mxu0 0.0
      %2365 = vmatpush1.msra.mxu0 0.0
      %2366 = vmatprep.subr.mxu0 0.0
      %2367 = vmatpush1.msra.mxu0 0.0
      %2368 = vmatprep.mubr.f32.mxu0 0.0
      %2369 = vmatmul.mubr.f32.gmra.mrb[0].mxu0 %v2302
      %v2370 = vpop.f32.mrb[0].mxu0
      %v2371 = vadd.f32 0.0, %v2370
      %v2372 = vpop.f32.mrb[0].mxu0
      %v2373 = vadd.f32 0.0, %v2372
      %2374 = vdwg.mxu0
      %2375 = vmatprep.subr.mxu0 0.0
      %2376 = vmatpush1.msra.mxu0 %v2297
      %2377 = vmatprep.subr.mxu0 0.0
      %2378 = vmatpush1.msra.mxu0 0.0
      %2379 = vmatprep.subr.mxu0 0.0
      %2380 = vmatpush1.msra.mxu0 0.0
      %2381 = vmatprep.subr.mxu0 0.0
      %2382 = vmatpush1.msra.mxu0 0.0
      %2383 = vmatprep.subr.mxu0 0.0
      %2384 = vmatpush1.msra.mxu0 0.0
      %2385 = vmatprep.subr.mxu0 0.0
      %2386 = vmatpush1.msra.mxu0 0.0
      %2387 = vmatprep.subr.mxu0 0.0
      %2388 = vmatpush1.msra.mxu0 0.0
      %2389 = vmatprep.subr.mxu0 0.0
      %2390 = vmatpush1.msra.mxu0 0.0
      %2391 = vmatprep.subr.mxu0 0.0
      %2392 = vmatpush1.msra.mxu0 0.0
      %2393 = vmatprep.subr.mxu0 0.0
      %2394 = vmatpush1.msra.mxu0 0.0
      %2395 = vmatprep.subr.mxu0 0.0
      %2396 = vmatpush1.msra.mxu0 0.0
      %2397 = vmatprep.subr.mxu0 0.0
      %2398 = vmatpush1.msra.mxu0 0.0
      %2399 = vmatprep.subr.mxu0 0.0
      %2400 = vmatpush1.msra.mxu0 0.0
      %2401 = vmatprep.subr.mxu0 0.0
      %2402 = vmatpush1.msra.mxu0 0.0
      %2403 = vmatprep.subr.mxu0 0.0
      %2404 = vmatpush1.msra.mxu0 0.0
      %2405 = vmatprep.subr.mxu0 0.0
      %2406 = vmatpush1.msra.mxu0 0.0
      %2407 = vmatprep.subr.mxu0 0.0
      %2408 = vmatpush1.msra.mxu0 0.0
      %2409 = vmatprep.subr.mxu0 0.0
      %2410 = vmatpush1.msra.mxu0 0.0
      %2411 = vmatprep.subr.mxu0 0.0
      %2412 = vmatpush1.msra.mxu0 0.0
      %2413 = vmatprep.subr.mxu0 0.0
      %2414 = vmatpush1.msra.mxu0 0.0
      %2415 = vmatprep.subr.mxu0 0.0
      %2416 = vmatpush1.msra.mxu0 0.0
      %2417 = vmatprep.subr.mxu0 0.0
      %2418 = vmatpush1.msra.mxu0 0.0
      %2419 = vmatprep.subr.mxu0 0.0
      %2420 = vmatpush1.msra.mxu0 0.0
      %2421 = vmatprep.subr.mxu0 0.0
      %2422 = vmatpush1.msra.mxu0 0.0
      %2423 = vmatprep.subr.mxu0 0.0
      %2424 = vmatpush1.msra.mxu0 0.0
      %2425 = vmatprep.subr.mxu0 0.0
      %2426 = vmatpush1.msra.mxu0 0.0
      %2427 = vmatprep.subr.mxu0 0.0
      %2428 = vmatpush1.msra.mxu0 0.0
      %2429 = vmatprep.subr.mxu0 0.0
      %2430 = vmatpush1.msra.mxu0 0.0
      %2431 = vmatprep.subr.mxu0 0.0
      %2432 = vmatpush1.msra.mxu0 0.0
      %2433 = vmatprep.subr.mxu0 0.0
      %2434 = vmatpush1.msra.mxu0 0.0
      %2435 = vmatprep.subr.mxu0 0.0
      %2436 = vmatpush1.msra.mxu0 0.0
      %2437 = vmatprep.subr.mxu0 0.0
      %2438 = vmatpush1.msra.mxu0 0.0
      %2439 = vmatprep.mubr.f32.mxu0 0.0
      %2440 = vmatmul.mubr.f32.gmra.mrb[0].mxu0 %v2302
      %v2441 = vpop.f32.mrb[0].mxu0
      %v2442 = vadd.f32 0.0, %v2441
      %v2443 = vpop.f32.mrb[0].mxu0
      %2444 = vdwg.mxu0
      %v2445 = vadd.f32 %v2284, %v2371
      %v2446 = vadd.f32 %v2285, %v2373
      %v2447 = vadd.f32 %v2286, %v2442
      %2448 = vrot.lane.b32.xlu0 %v1816, 109
      %v2449 = vpop.permute.xlu0 %2448
      %2450 = vrot.lane.b32.xlu0 %v1817, 109
      %v2451 = vpop.permute.xlu0 %2450
      %2452 = vrot.lane.b32.xlu0 %v1818, 109
      %v2453 = vpop.permute.xlu0 %2452
      %2454 = vrot.lane.b32.xlu0 %v1819, 109
      %v2455 = vpop.permute.xlu0 %2454
      %v2456 = vsel %vm951, %v2449, %v2451
      %v2457 = vsel %vm951, %v2451, %v2453
      %v2458 = vsel %vm951, %v2453, %v2455
      %v2463 = vsel %vm322, %v250, 0
      %2465 = vmatprep.subr.mxu0 %v2457
      %2466 = vmatpush1.msra.mxu0 %v2456
      %2467 = vmatprep.subr.mxu0 0.0
      %2468 = vmatpush1.msra.mxu0 0.0
      %2469 = vmatprep.subr.mxu0 0.0
      %2470 = vmatpush1.msra.mxu0 0.0
      %2471 = vmatprep.subr.mxu0 0.0
      %2472 = vmatpush1.msra.mxu0 0.0
      %2473 = vmatprep.subr.mxu0 0.0
      %2474 = vmatpush1.msra.mxu0 0.0
      %2475 = vmatprep.subr.mxu0 0.0
      %2476 = vmatpush1.msra.mxu0 0.0
      %2477 = vmatprep.subr.mxu0 0.0
      %2478 = vmatpush1.msra.mxu0 0.0
      %2479 = vmatprep.subr.mxu0 0.0
      %2480 = vmatpush1.msra.mxu0 0.0
      %2481 = vmatprep.subr.mxu0 0.0
      %2482 = vmatpush1.msra.mxu0 0.0
      %2483 = vmatprep.subr.mxu0 0.0
      %2484 = vmatpush1.msra.mxu0 0.0
      %2485 = vmatprep.subr.mxu0 0.0
      %2486 = vmatpush1.msra.mxu0 0.0
      %2487 = vmatprep.subr.mxu0 0.0
      %2488 = vmatpush1.msra.mxu0 0.0
      %2489 = vmatprep.subr.mxu0 0.0
      %2490 = vmatpush1.msra.mxu0 0.0
      %2491 = vmatprep.subr.mxu0 0.0
      %2492 = vmatpush1.msra.mxu0 0.0
      %2493 = vmatprep.subr.mxu0 0.0
      %2494 = vmatpush1.msra.mxu0 0.0
      %2495 = vmatprep.subr.mxu0 0.0
      %2496 = vmatpush1.msra.mxu0 0.0
      %2497 = vmatprep.subr.mxu0 0.0
      %2498 = vmatpush1.msra.mxu0 0.0
      %2499 = vmatprep.subr.mxu0 0.0
      %2500 = vmatpush1.msra.mxu0 0.0
      %2501 = vmatprep.subr.mxu0 0.0
      %2502 = vmatpush1.msra.mxu0 0.0
      %2503 = vmatprep.subr.mxu0 0.0
      %2504 = vmatpush1.msra.mxu0 0.0
      %2505 = vmatprep.subr.mxu0 0.0
      %2506 = vmatpush1.msra.mxu0 0.0
      %2507 = vmatprep.subr.mxu0 0.0
      %2508 = vmatpush1.msra.mxu0 0.0
      %2509 = vmatprep.subr.mxu0 0.0
      %2510 = vmatpush1.msra.mxu0 0.0
      %2511 = vmatprep.subr.mxu0 0.0
      %2512 = vmatpush1.msra.mxu0 0.0
      %2513 = vmatprep.subr.mxu0 0.0
      %2514 = vmatpush1.msra.mxu0 0.0
      %2515 = vmatprep.subr.mxu0 0.0
      %2516 = vmatpush1.msra.mxu0 0.0
      %2517 = vmatprep.subr.mxu0 0.0
      %2518 = vmatpush1.msra.mxu0 0.0
      %2519 = vmatprep.subr.mxu0 0.0
      %2520 = vmatpush1.msra.mxu0 0.0
      %2521 = vmatprep.subr.mxu0 0.0
      %2522 = vmatpush1.msra.mxu0 0.0
      %2523 = vmatprep.subr.mxu0 0.0
      %2524 = vmatpush1.msra.mxu0 0.0
      %2525 = vmatprep.subr.mxu0 0.0
      %2526 = vmatpush1.msra.mxu0 0.0
      %2527 = vmatprep.subr.mxu0 0.0
      %2528 = vmatpush1.msra.mxu0 0.0
      %2529 = vmatprep.mubr.f32.mxu0 0.0
      %2530 = vmatmul.mubr.f32.gmra.mrb[0].mxu0 %v2463
      %v2531 = vpop.f32.mrb[0].mxu0
      %v2532 = vadd.f32 0.0, %v2531
      %v2533 = vpop.f32.mrb[0].mxu0
      %v2534 = vadd.f32 0.0, %v2533
      %2535 = vdwg.mxu0
      %2536 = vmatprep.subr.mxu0 0.0
      %2537 = vmatpush1.msra.mxu0 %v2458
      %2538 = vmatprep.subr.mxu0 0.0
      %2539 = vmatpush1.msra.mxu0 0.0
      %2540 = vmatprep.subr.mxu0 0.0
      %2541 = vmatpush1.msra.mxu0 0.0
      %2542 = vmatprep.subr.mxu0 0.0
      %2543 = vmatpush1.msra.mxu0 0.0
      %2544 = vmatprep.subr.mxu0 0.0
      %2545 = vmatpush1.msra.mxu0 0.0
      %2546 = vmatprep.subr.mxu0 0.0
      %2547 = vmatpush1.msra.mxu0 0.0
      %2548 = vmatprep.subr.mxu0 0.0
      %2549 = vmatpush1.msra.mxu0 0.0
      %2550 = vmatprep.subr.mxu0 0.0
      %2551 = vmatpush1.msra.mxu0 0.0
      %2552 = vmatprep.subr.mxu0 0.0
      %2553 = vmatpush1.msra.mxu0 0.0
      %2554 = vmatprep.subr.mxu0 0.0
      %2555 = vmatpush1.msra.mxu0 0.0
      %2556 = vmatprep.subr.mxu0 0.0
      %2557 = vmatpush1.msra.mxu0 0.0
      %2558 = vmatprep.subr.mxu0 0.0
      %2559 = vmatpush1.msra.mxu0 0.0
      %2560 = vmatprep.subr.mxu0 0.0
      %2561 = vmatpush1.msra.mxu0 0.0
      %2562 = vmatprep.subr.mxu0 0.0
      %2563 = vmatpush1.msra.mxu0 0.0
      %2564 = vmatprep.subr.mxu0 0.0
      %2565 = vmatpush1.msra.mxu0 0.0
      %2566 = vmatprep.subr.mxu0 0.0
      %2567 = vmatpush1.msra.mxu0 0.0
      %2568 = vmatprep.subr.mxu0 0.0
      %2569 = vmatpush1.msra.mxu0 0.0
      %2570 = vmatprep.subr.mxu0 0.0
      %2571 = vmatpush1.msra.mxu0 0.0
      %2572 = vmatprep.subr.mxu0 0.0
      %2573 = vmatpush1.msra.mxu0 0.0
      %2574 = vmatprep.subr.mxu0 0.0
      %2575 = vmatpush1.msra.mxu0 0.0
      %2576 = vmatprep.subr.mxu0 0.0
      %2577 = vmatpush1.msra.mxu0 0.0
      %2578 = vmatprep.subr.mxu0 0.0
      %2579 = vmatpush1.msra.mxu0 0.0
      %2580 = vmatprep.subr.mxu0 0.0
      %2581 = vmatpush1.msra.mxu0 0.0
      %2582 = vmatprep.subr.mxu0 0.0
      %2583 = vmatpush1.msra.mxu0 0.0
      %2584 = vmatprep.subr.mxu0 0.0
      %2585 = vmatpush1.msra.mxu0 0.0
      %2586 = vmatprep.subr.mxu0 0.0
      %2587 = vmatpush1.msra.mxu0 0.0
      %2588 = vmatprep.subr.mxu0 0.0
      %2589 = vmatpush1.msra.mxu0 0.0
      %2590 = vmatprep.subr.mxu0 0.0
      %2591 = vmatpush1.msra.mxu0 0.0
      %2592 = vmatprep.subr.mxu0 0.0
      %2593 = vmatpush1.msra.mxu0 0.0
      %2594 = vmatprep.subr.mxu0 0.0
      %2595 = vmatpush1.msra.mxu0 0.0
      %2596 = vmatprep.subr.mxu0 0.0
      %2597 = vmatpush1.msra.mxu0 0.0
      %2598 = vmatprep.subr.mxu0 0.0
      %2599 = vmatpush1.msra.mxu0 0.0
      %2600 = vmatprep.mubr.f32.mxu0 0.0
      %2601 = vmatmul.mubr.f32.gmra.mrb[0].mxu0 %v2463
      %v2602 = vpop.f32.mrb[0].mxu0
      %v2603 = vadd.f32 0.0, %v2602
      %v2604 = vpop.f32.mrb[0].mxu0
      %2605 = vdwg.mxu0
      %v2606 = vadd.f32 %v2445, %v2532
      %v2607 = vadd.f32 %v2446, %v2534
      %v2608 = vadd.f32 %v2447, %v2603
      %2609 = vrot.lane.b32.xlu0 %v1816, 108
      %v2610 = vpop.permute.xlu0 %2609
      %2611 = vrot.lane.b32.xlu0 %v1817, 108
      %v2612 = vpop.permute.xlu0 %2611
      %2613 = vrot.lane.b32.xlu0 %v1818, 108
      %v2614 = vpop.permute.xlu0 %2613
      %2615 = vrot.lane.b32.xlu0 %v1819, 108
      %v2616 = vpop.permute.xlu0 %2615
      %v2617 = vsel %vm1116, %v2610, %v2612
      %v2618 = vsel %vm1116, %v2612, %v2614
      %v2619 = vsel %vm1116, %v2614, %v2616
      %v2624 = vsel %vm322, %v252, 0
      %2626 = vmatprep.subr.mxu0 %v2618
      %2627 = vmatpush1.msra.mxu0 %v2617
      %2628 = vmatprep.subr.mxu0 0.0
      %2629 = vmatpush1.msra.mxu0 0.0
      %2630 = vmatprep.subr.mxu0 0.0
      %2631 = vmatpush1.msra.mxu0 0.0
      %2632 = vmatprep.subr.mxu0 0.0
      %2633 = vmatpush1.msra.mxu0 0.0
      %2634 = vmatprep.subr.mxu0 0.0
      %2635 = vmatpush1.msra.mxu0 0.0
      %2636 = vmatprep.subr.mxu0 0.0
      %2637 = vmatpush1.msra.mxu0 0.0
      %2638 = vmatprep.subr.mxu0 0.0
      %2639 = vmatpush1.msra.mxu0 0.0
      %2640 = vmatprep.subr.mxu0 0.0
      %2641 = vmatpush1.msra.mxu0 0.0
      %2642 = vmatprep.subr.mxu0 0.0
      %2643 = vmatpush1.msra.mxu0 0.0
      %2644 = vmatprep.subr.mxu0 0.0
      %2645 = vmatpush1.msra.mxu0 0.0
      %2646 = vmatprep.subr.mxu0 0.0
      %2647 = vmatpush1.msra.mxu0 0.0
      %2648 = vmatprep.subr.mxu0 0.0
      %2649 = vmatpush1.msra.mxu0 0.0
      %2650 = vmatprep.subr.mxu0 0.0
      %2651 = vmatpush1.msra.mxu0 0.0
      %2652 = vmatprep.subr.mxu0 0.0
      %2653 = vmatpush1.msra.mxu0 0.0
      %2654 = vmatprep.subr.mxu0 0.0
      %2655 = vmatpush1.msra.mxu0 0.0
      %2656 = vmatprep.subr.mxu0 0.0
      %2657 = vmatpush1.msra.mxu0 0.0
      %2658 = vmatprep.subr.mxu0 0.0
      %2659 = vmatpush1.msra.mxu0 0.0
      %2660 = vmatprep.subr.mxu0 0.0
      %2661 = vmatpush1.msra.mxu0 0.0
      %2662 = vmatprep.subr.mxu0 0.0
      %2663 = vmatpush1.msra.mxu0 0.0
      %2664 = vmatprep.subr.mxu0 0.0
      %2665 = vmatpush1.msra.mxu0 0.0
      %2666 = vmatprep.subr.mxu0 0.0
      %2667 = vmatpush1.msra.mxu0 0.0
      %2668 = vmatprep.subr.mxu0 0.0
      %2669 = vmatpush1.msra.mxu0 0.0
      %2670 = vmatprep.subr.mxu0 0.0
      %2671 = vmatpush1.msra.mxu0 0.0
      %2672 = vmatprep.subr.mxu0 0.0
      %2673 = vmatpush1.msra.mxu0 0.0
      %2674 = vmatprep.subr.mxu0 0.0
      %2675 = vmatpush1.msra.mxu0 0.0
      %2676 = vmatprep.subr.mxu0 0.0
      %2677 = vmatpush1.msra.mxu0 0.0
      %2678 = vmatprep.subr.mxu0 0.0
      %2679 = vmatpush1.msra.mxu0 0.0
      %2680 = vmatprep.subr.mxu0 0.0
      %2681 = vmatpush1.msra.mxu0 0.0
      %2682 = vmatprep.subr.mxu0 0.0
      %2683 = vmatpush1.msra.mxu0 0.0
      %2684 = vmatprep.subr.mxu0 0.0
      %2685 = vmatpush1.msra.mxu0 0.0
      %2686 = vmatprep.subr.mxu0 0.0
      %2687 = vmatpush1.msra.mxu0 0.0
      %2688 = vmatprep.subr.mxu0 0.0
      %2689 = vmatpush1.msra.mxu0 0.0
      %2690 = vmatprep.mubr.f32.mxu0 0.0
      %2691 = vmatmul.mubr.f32.gmra.mrb[0].mxu0 %v2624
      %v2692 = vpop.f32.mrb[0].mxu0
      %v2693 = vadd.f32 0.0, %v2692
      %v2694 = vpop.f32.mrb[0].mxu0
      %v2695 = vadd.f32 0.0, %v2694
      %2696 = vdwg.mxu0
      %2697 = vmatprep.subr.mxu0 0.0
      %2698 = vmatpush1.msra.mxu0 %v2619
      %2699 = vmatprep.subr.mxu0 0.0
      %2700 = vmatpush1.msra.mxu0 0.0
      %2701 = vmatprep.subr.mxu0 0.0
      %2702 = vmatpush1.msra.mxu0 0.0
      %2703 = vmatprep.subr.mxu0 0.0
      %2704 = vmatpush1.msra.mxu0 0.0
      %2705 = vmatprep.subr.mxu0 0.0
      %2706 = vmatpush1.msra.mxu0 0.0
      %2707 = vmatprep.subr.mxu0 0.0
      %2708 = vmatpush1.msra.mxu0 0.0
      %2709 = vmatprep.subr.mxu0 0.0
      %2710 = vmatpush1.msra.mxu0 0.0
      %2711 = vmatprep.subr.mxu0 0.0
      %2712 = vmatpush1.msra.mxu0 0.0
      %2713 = vmatprep.subr.mxu0 0.0
      %2714 = vmatpush1.msra.mxu0 0.0
      %2715 = vmatprep.subr.mxu0 0.0
      %2716 = vmatpush1.msra.mxu0 0.0
      %2717 = vmatprep.subr.mxu0 0.0
      %2718 = vmatpush1.msra.mxu0 0.0
      %2719 = vmatprep.subr.mxu0 0.0
      %2720 = vmatpush1.msra.mxu0 0.0
      %2721 = vmatprep.subr.mxu0 0.0
      %2722 = vmatpush1.msra.mxu0 0.0
      %2723 = vmatprep.subr.mxu0 0.0
      %2724 = vmatpush1.msra.mxu0 0.0
      %2725 = vmatprep.subr.mxu0 0.0
      %2726 = vmatpush1.msra.mxu0 0.0
      %2727 = vmatprep.subr.mxu0 0.0
      %2728 = vmatpush1.msra.mxu0 0.0
      %2729 = vmatprep.subr.mxu0 0.0
      %2730 = vmatpush1.msra.mxu0 0.0
      %2731 = vmatprep.subr.mxu0 0.0
      %2732 = vmatpush1.msra.mxu0 0.0
      %2733 = vmatprep.subr.mxu0 0.0
      %2734 = vmatpush1.msra.mxu0 0.0
      %2735 = vmatprep.subr.mxu0 0.0
      %2736 = vmatpush1.msra.mxu0 0.0
      %2737 = vmatprep.subr.mxu0 0.0
      %2738 = vmatpush1.msra.mxu0 0.0
      %2739 = vmatprep.subr.mxu0 0.0
      %2740 = vmatpush1.msra.mxu0 0.0
      %2741 = vmatprep.subr.mxu0 0.0
      %2742 = vmatpush1.msra.mxu0 0.0
      %2743 = vmatprep.subr.mxu0 0.0
      %2744 = vmatpush1.msra.mxu0 0.0
      %2745 = vmatprep.subr.mxu0 0.0
      %2746 = vmatpush1.msra.mxu0 0.0
      %2747 = vmatprep.subr.mxu0 0.0
      %2748 = vmatpush1.msra.mxu0 0.0
      %2749 = vmatprep.subr.mxu0 0.0
      %2750 = vmatpush1.msra.mxu0 0.0
      %2751 = vmatprep.subr.mxu0 0.0
      %2752 = vmatpush1.msra.mxu0 0.0
      %2753 = vmatprep.subr.mxu0 0.0
      %2754 = vmatpush1.msra.mxu0 0.0
      %2755 = vmatprep.subr.mxu0 0.0
      %2756 = vmatpush1.msra.mxu0 0.0
      %2757 = vmatprep.subr.mxu0 0.0
      %2758 = vmatpush1.msra.mxu0 0.0
      %2759 = vmatprep.subr.mxu0 0.0
      %2760 = vmatpush1.msra.mxu0 0.0
      %2761 = vmatprep.mubr.f32.mxu0 0.0
      %2762 = vmatmul.mubr.f32.gmra.mrb[0].mxu0 %v2624
      %v2763 = vpop.f32.mrb[0].mxu0
      %v2764 = vadd.f32 0.0, %v2763
      %v2765 = vpop.f32.mrb[0].mxu0
      %2766 = vdwg.mxu0
      %v2767 = vadd.f32 %v2606, %v2693
      %v2768 = vadd.f32 %v2607, %v2695
      %v2769 = vadd.f32 %v2608, %v2764
      %2770 = vrot.lane.b32.xlu0 %v1816, 92
      %v2771 = vpop.permute.xlu0 %2770
      %2772 = vrot.lane.b32.xlu0 %v1817, 92
      %v2773 = vpop.permute.xlu0 %2772
      %2774 = vrot.lane.b32.xlu0 %v1818, 92
      %v2775 = vpop.permute.xlu0 %2774
      %2776 = vrot.lane.b32.xlu0 %v1819, 92
      %v2777 = vpop.permute.xlu0 %2776
      %v2778 = vsel %vm1281, %v2771, %v2773
      %v2779 = vsel %vm1281, %v2773, %v2775
      %v2780 = vsel %vm1281, %v2775, %v2777
      %v2785 = vsel %vm322, %v254, 0
      %2787 = vmatprep.subr.mxu0 %v2779
      %2788 = vmatpush1.msra.mxu0 %v2778
      %2789 = vmatprep.subr.mxu0 0.0
      %2790 = vmatpush1.msra.mxu0 0.0
      %2791 = vmatprep.subr.mxu0 0.0
      %2792 = vmatpush1.msra.mxu0 0.0
      %2793 = vmatprep.subr.mxu0 0.0
      %2794 = vmatpush1.msra.mxu0 0.0
      %2795 = vmatprep.subr.mxu0 0.0
      %2796 = vmatpush1.msra.mxu0 0.0
      %2797 = vmatprep.subr.mxu0 0.0
      %2798 = vmatpush1.msra.mxu0 0.0
      %2799 = vmatprep.subr.mxu0 0.0
      %2800 = vmatpush1.msra.mxu0 0.0
      %2801 = vmatprep.subr.mxu0 0.0
      %2802 = vmatpush1.msra.mxu0 0.0
      %2803 = vmatprep.subr.mxu0 0.0
      %2804 = vmatpush1.msra.mxu0 0.0
      %2805 = vmatprep.subr.mxu0 0.0
      %2806 = vmatpush1.msra.mxu0 0.0
      %2807 = vmatprep.subr.mxu0 0.0
      %2808 = vmatpush1.msra.mxu0 0.0
      %2809 = vmatprep.subr.mxu0 0.0
      %2810 = vmatpush1.msra.mxu0 0.0
      %2811 = vmatprep.subr.mxu0 0.0
      %2812 = vmatpush1.msra.mxu0 0.0
      %2813 = vmatprep.subr.mxu0 0.0
      %2814 = vmatpush1.msra.mxu0 0.0
      %2815 = vmatprep.subr.mxu0 0.0
      %2816 = vmatpush1.msra.mxu0 0.0
      %2817 = vmatprep.subr.mxu0 0.0
      %2818 = vmatpush1.msra.mxu0 0.0
      %2819 = vmatprep.subr.mxu0 0.0
      %2820 = vmatpush1.msra.mxu0 0.0
      %2821 = vmatprep.subr.mxu0 0.0
      %2822 = vmatpush1.msra.mxu0 0.0
      %2823 = vmatprep.subr.mxu0 0.0
      %2824 = vmatpush1.msra.mxu0 0.0
      %2825 = vmatprep.subr.mxu0 0.0
      %2826 = vmatpush1.msra.mxu0 0.0
      %2827 = vmatprep.subr.mxu0 0.0
      %2828 = vmatpush1.msra.mxu0 0.0
      %2829 = vmatprep.subr.mxu0 0.0
      %2830 = vmatpush1.msra.mxu0 0.0
      %2831 = vmatprep.subr.mxu0 0.0
      %2832 = vmatpush1.msra.mxu0 0.0
      %2833 = vmatprep.subr.mxu0 0.0
      %2834 = vmatpush1.msra.mxu0 0.0
      %2835 = vmatprep.subr.mxu0 0.0
      %2836 = vmatpush1.msra.mxu0 0.0
      %2837 = vmatprep.subr.mxu0 0.0
      %2838 = vmatpush1.msra.mxu0 0.0
      %2839 = vmatprep.subr.mxu0 0.0
      %2840 = vmatpush1.msra.mxu0 0.0
      %2841 = vmatprep.subr.mxu0 0.0
      %2842 = vmatpush1.msra.mxu0 0.0
      %2843 = vmatprep.subr.mxu0 0.0
      %2844 = vmatpush1.msra.mxu0 0.0
      %2845 = vmatprep.subr.mxu0 0.0
      %2846 = vmatpush1.msra.mxu0 0.0
      %2847 = vmatprep.subr.mxu0 0.0
      %2848 = vmatpush1.msra.mxu0 0.0
      %2849 = vmatprep.subr.mxu0 0.0
      %2850 = vmatpush1.msra.mxu0 0.0
      %2851 = vmatprep.mubr.f32.mxu0 0.0
      %2852 = vmatmul.mubr.f32.gmra.mrb[0].mxu0 %v2785
      %v2853 = vpop.f32.mrb[0].mxu0
      %v2854 = vadd.f32 0.0, %v2853
      %v2855 = vpop.f32.mrb[0].mxu0
      %v2856 = vadd.f32 0.0, %v2855
      %2857 = vdwg.mxu0
      %2858 = vmatprep.subr.mxu0 0.0
      %2859 = vmatpush1.msra.mxu0 %v2780
      %2860 = vmatprep.subr.mxu0 0.0
      %2861 = vmatpush1.msra.mxu0 0.0
      %2862 = vmatprep.subr.mxu0 0.0
      %2863 = vmatpush1.msra.mxu0 0.0
      %2864 = vmatprep.subr.mxu0 0.0
      %2865 = vmatpush1.msra.mxu0 0.0
      %2866 = vmatprep.subr.mxu0 0.0
      %2867 = vmatpush1.msra.mxu0 0.0
      %2868 = vmatprep.subr.mxu0 0.0
      %2869 = vmatpush1.msra.mxu0 0.0
      %2870 = vmatprep.subr.mxu0 0.0
      %2871 = vmatpush1.msra.mxu0 0.0
      %2872 = vmatprep.subr.mxu0 0.0
      %2873 = vmatpush1.msra.mxu0 0.0
      %2874 = vmatprep.subr.mxu0 0.0
      %2875 = vmatpush1.msra.mxu0 0.0
      %2876 = vmatprep.subr.mxu0 0.0
      %2877 = vmatpush1.msra.mxu0 0.0
      %2878 = vmatprep.subr.mxu0 0.0
      %2879 = vmatpush1.msra.mxu0 0.0
      %2880 = vmatprep.subr.mxu0 0.0
      %2881 = vmatpush1.msra.mxu0 0.0
      %2882 = vmatprep.subr.mxu0 0.0
      %2883 = vmatpush1.msra.mxu0 0.0
      %2884 = vmatprep.subr.mxu0 0.0
      %2885 = vmatpush1.msra.mxu0 0.0
      %2886 = vmatprep.subr.mxu0 0.0
      %2887 = vmatpush1.msra.mxu0 0.0
      %2888 = vmatprep.subr.mxu0 0.0
      %2889 = vmatpush1.msra.mxu0 0.0
      %2890 = vmatprep.subr.mxu0 0.0
      %2891 = vmatpush1.msra.mxu0 0.0
      %2892 = vmatprep.subr.mxu0 0.0
      %2893 = vmatpush1.msra.mxu0 0.0
      %2894 = vmatprep.subr.mxu0 0.0
      %2895 = vmatpush1.msra.mxu0 0.0
      %2896 = vmatprep.subr.mxu0 0.0
      %2897 = vmatpush1.msra.mxu0 0.0
      %2898 = vmatprep.subr.mxu0 0.0
      %2899 = vmatpush1.msra.mxu0 0.0
      %2900 = vmatprep.subr.mxu0 0.0
      %2901 = vmatpush1.msra.mxu0 0.0
      %2902 = vmatprep.subr.mxu0 0.0
      %2903 = vmatpush1.msra.mxu0 0.0
      %2904 = vmatprep.subr.mxu0 0.0
      %2905 = vmatpush1.msra.mxu0 0.0
      %2906 = vmatprep.subr.mxu0 0.0
      %2907 = vmatpush1.msra.mxu0 0.0
      %2908 = vmatprep.subr.mxu0 0.0
      %2909 = vmatpush1.msra.mxu0 0.0
      %2910 = vmatprep.subr.mxu0 0.0
      %2911 = vmatpush1.msra.mxu0 0.0
      %2912 = vmatprep.subr.mxu0 0.0
      %2913 = vmatpush1.msra.mxu0 0.0
      %2914 = vmatprep.subr.mxu0 0.0
      %2915 = vmatpush1.msra.mxu0 0.0
      %2916 = vmatprep.subr.mxu0 0.0
      %2917 = vmatpush1.msra.mxu0 0.0
      %2918 = vmatprep.subr.mxu0 0.0
      %2919 = vmatpush1.msra.mxu0 0.0
      %2920 = vmatprep.subr.mxu0 0.0
      %2921 = vmatpush1.msra.mxu0 0.0
      %2922 = vmatprep.mubr.f32.mxu0 0.0
      %2923 = vmatmul.mubr.f32.gmra.mrb[0].mxu0 %v2785
      %v2924 = vpop.f32.mrb[0].mxu0
      %v2925 = vadd.f32 0.0, %v2924
      %v2926 = vpop.f32.mrb[0].mxu0
      %2927 = vdwg.mxu0
      %v2928 = vadd.f32 %v2767, %v2854
      %v2929 = vadd.f32 %v2768, %v2856
      %v2930 = vadd.f32 %v2769, %v2925
      %2931 = vrot.lane.b32.xlu0 %v1816, 91
      %v2932 = vpop.permute.xlu0 %2931
      %2933 = vrot.lane.b32.xlu0 %v1817, 91
      %v2934 = vpop.permute.xlu0 %2933
      %2935 = vrot.lane.b32.xlu0 %v1818, 91
      %v2936 = vpop.permute.xlu0 %2935
      %2937 = vrot.lane.b32.xlu0 %v1819, 91
      %v2938 = vpop.permute.xlu0 %2937
      %v2939 = vsel %vm1446, %v2932, %v2934
      %v2940 = vsel %vm1446, %v2934, %v2936
      %v2941 = vsel %vm1446, %v2936, %v2938
      %v2946 = vsel %vm322, %v256, 0
      %2948 = vmatprep.subr.mxu0 %v2940
      %2949 = vmatpush1.msra.mxu0 %v2939
      %2950 = vmatprep.subr.mxu0 0.0
      %2951 = vmatpush1.msra.mxu0 0.0
      %2952 = vmatprep.subr.mxu0 0.0
      %2953 = vmatpush1.msra.mxu0 0.0
      %2954 = vmatprep.subr.mxu0 0.0
      %2955 = vmatpush1.msra.mxu0 0.0
      %2956 = vmatprep.subr.mxu0 0.0
      %2957 = vmatpush1.msra.mxu0 0.0
      %2958 = vmatprep.subr.mxu0 0.0
      %2959 = vmatpush1.msra.mxu0 0.0
      %2960 = vmatprep.subr.mxu0 0.0
      %2961 = vmatpush1.msra.mxu0 0.0
      %2962 = vmatprep.subr.mxu0 0.0
      %2963 = vmatpush1.msra.mxu0 0.0
      %2964 = vmatprep.subr.mxu0 0.0
      %2965 = vmatpush1.msra.mxu0 0.0
      %2966 = vmatprep.subr.mxu0 0.0
      %2967 = vmatpush1.msra.mxu0 0.0
      %2968 = vmatprep.subr.mxu0 0.0
      %2969 = vmatpush1.msra.mxu0 0.0
      %2970 = vmatprep.subr.mxu0 0.0
      %2971 = vmatpush1.msra.mxu0 0.0
      %2972 = vmatprep.subr.mxu0 0.0
      %2973 = vmatpush1.msra.mxu0 0.0
      %2974 = vmatprep.subr.mxu0 0.0
      %2975 = vmatpush1.msra.mxu0 0.0
      %2976 = vmatprep.subr.mxu0 0.0
      %2977 = vmatpush1.msra.mxu0 0.0
      %2978 = vmatprep.subr.mxu0 0.0
      %2979 = vmatpush1.msra.mxu0 0.0
      %2980 = vmatprep.subr.mxu0 0.0
      %2981 = vmatpush1.msra.mxu0 0.0
      %2982 = vmatprep.subr.mxu0 0.0
      %2983 = vmatpush1.msra.mxu0 0.0
      %2984 = vmatprep.subr.mxu0 0.0
      %2985 = vmatpush1.msra.mxu0 0.0
      %2986 = vmatprep.subr.mxu0 0.0
      %2987 = vmatpush1.msra.mxu0 0.0
      %2988 = vmatprep.subr.mxu0 0.0
      %2989 = vmatpush1.msra.mxu0 0.0
      %2990 = vmatprep.subr.mxu0 0.0
      %2991 = vmatpush1.msra.mxu0 0.0
      %2992 = vmatprep.subr.mxu0 0.0
      %2993 = vmatpush1.msra.mxu0 0.0
      %2994 = vmatprep.subr.mxu0 0.0
      %2995 = vmatpush1.msra.mxu0 0.0
      %2996 = vmatprep.subr.mxu0 0.0
      %2997 = vmatpush1.msra.mxu0 0.0
      %2998 = vmatprep.subr.mxu0 0.0
      %2999 = vmatpush1.msra.mxu0 0.0
      %3000 = vmatprep.subr.mxu0 0.0
      %3001 = vmatpush1.msra.mxu0 0.0
      %3002 = vmatprep.subr.mxu0 0.0
      %3003 = vmatpush1.msra.mxu0 0.0
      %3004 = vmatprep.subr.mxu0 0.0
      %3005 = vmatpush1.msra.mxu0 0.0
      %3006 = vmatprep.subr.mxu0 0.0
      %3007 = vmatpush1.msra.mxu0 0.0
      %3008 = vmatprep.subr.mxu0 0.0
      %3009 = vmatpush1.msra.mxu0 0.0
      %3010 = vmatprep.subr.mxu0 0.0
      %3011 = vmatpush1.msra.mxu0 0.0
      %3012 = vmatprep.mubr.f32.mxu0 0.0
      %3013 = vmatmul.mubr.f32.gmra.mrb[0].mxu0 %v2946
      %v3014 = vpop.f32.mrb[0].mxu0
      %v3015 = vadd.f32 0.0, %v3014
      %v3016 = vpop.f32.mrb[0].mxu0
      %v3017 = vadd.f32 0.0, %v3016
      %3018 = vdwg.mxu0
      %3019 = vmatprep.subr.mxu0 0.0
      %3020 = vmatpush1.msra.mxu0 %v2941
      %3021 = vmatprep.subr.mxu0 0.0
      %3022 = vmatpush1.msra.mxu0 0.0
      %3023 = vmatprep.subr.mxu0 0.0
      %3024 = vmatpush1.msra.mxu0 0.0
      %3025 = vmatprep.subr.mxu0 0.0
      %3026 = vmatpush1.msra.mxu0 0.0
      %3027 = vmatprep.subr.mxu0 0.0
      %3028 = vmatpush1.msra.mxu0 0.0
      %3029 = vmatprep.subr.mxu0 0.0
      %3030 = vmatpush1.msra.mxu0 0.0
      %3031 = vmatprep.subr.mxu0 0.0
      %3032 = vmatpush1.msra.mxu0 0.0
      %3033 = vmatprep.subr.mxu0 0.0
      %3034 = vmatpush1.msra.mxu0 0.0
      %3035 = vmatprep.subr.mxu0 0.0
      %3036 = vmatpush1.msra.mxu0 0.0
      %3037 = vmatprep.subr.mxu0 0.0
      %3038 = vmatpush1.msra.mxu0 0.0
      %3039 = vmatprep.subr.mxu0 0.0
      %3040 = vmatpush1.msra.mxu0 0.0
      %3041 = vmatprep.subr.mxu0 0.0
      %3042 = vmatpush1.msra.mxu0 0.0
      %3043 = vmatprep.subr.mxu0 0.0
      %3044 = vmatpush1.msra.mxu0 0.0
      %3045 = vmatprep.subr.mxu0 0.0
      %3046 = vmatpush1.msra.mxu0 0.0
      %3047 = vmatprep.subr.mxu0 0.0
      %3048 = vmatpush1.msra.mxu0 0.0
      %3049 = vmatprep.subr.mxu0 0.0
      %3050 = vmatpush1.msra.mxu0 0.0
      %3051 = vmatprep.subr.mxu0 0.0
      %3052 = vmatpush1.msra.mxu0 0.0
      %3053 = vmatprep.subr.mxu0 0.0
      %3054 = vmatpush1.msra.mxu0 0.0
      %3055 = vmatprep.subr.mxu0 0.0
      %3056 = vmatpush1.msra.mxu0 0.0
      %3057 = vmatprep.subr.mxu0 0.0
      %3058 = vmatpush1.msra.mxu0 0.0
      %3059 = vmatprep.subr.mxu0 0.0
      %3060 = vmatpush1.msra.mxu0 0.0
      %3061 = vmatprep.subr.mxu0 0.0
      %3062 = vmatpush1.msra.mxu0 0.0
      %3063 = vmatprep.subr.mxu0 0.0
      %3064 = vmatpush1.msra.mxu0 0.0
      %3065 = vmatprep.subr.mxu0 0.0
      %3066 = vmatpush1.msra.mxu0 0.0
      %3067 = vmatprep.subr.mxu0 0.0
      %3068 = vmatpush1.msra.mxu0 0.0
      %3069 = vmatprep.subr.mxu0 0.0
      %3070 = vmatpush1.msra.mxu0 0.0
      %3071 = vmatprep.subr.mxu0 0.0
      %3072 = vmatpush1.msra.mxu0 0.0
      %3073 = vmatprep.subr.mxu0 0.0
      %3074 = vmatpush1.msra.mxu0 0.0
      %3075 = vmatprep.subr.mxu0 0.0
      %3076 = vmatpush1.msra.mxu0 0.0
      %3077 = vmatprep.subr.mxu0 0.0
      %3078 = vmatpush1.msra.mxu0 0.0
      %3079 = vmatprep.subr.mxu0 0.0
      %3080 = vmatpush1.msra.mxu0 0.0
      %3081 = vmatprep.subr.mxu0 0.0
      %3082 = vmatpush1.msra.mxu0 0.0
      %3083 = vmatprep.mubr.f32.mxu0 0.0
      %3084 = vmatmul.mubr.f32.gmra.mrb[0].mxu0 %v2946
      %v3085 = vpop.f32.mrb[0].mxu0
      %v3086 = vadd.f32 0.0, %v3085
      %v3087 = vpop.f32.mrb[0].mxu0
      %3088 = vdwg.mxu0
      %v3089 = vadd.f32 %v2928, %v3015
      %v3090 = vadd.f32 %v2929, %v3017
      %v3091 = vadd.f32 %v2930, %v3086
      %3092 = vrot.lane.b32.xlu0 %v1816, 90
      %v3093 = vpop.permute.xlu0 %3092
      %3094 = vrot.lane.b32.xlu0 %v1817, 90
      %v3095 = vpop.permute.xlu0 %3094
      %3096 = vrot.lane.b32.xlu0 %v1818, 90
      %v3097 = vpop.permute.xlu0 %3096
      %3098 = vrot.lane.b32.xlu0 %v1819, 90
      %v3099 = vpop.permute.xlu0 %3098
      %v3100 = vsel %vm1611, %v3093, %v3095
      %v3101 = vsel %vm1611, %v3095, %v3097
      %v3102 = vsel %vm1611, %v3097, %v3099
      %v3107 = vsel %vm322, %v258, 0
      %3109 = vmatprep.subr.mxu0 %v3101
      %3110 = vmatpush1.msra.mxu0 %v3100
      %3111 = vmatprep.subr.mxu0 0.0
      %3112 = vmatpush1.msra.mxu0 0.0
      %3113 = vmatprep.subr.mxu0 0.0
      %3114 = vmatpush1.msra.mxu0 0.0
      %3115 = vmatprep.subr.mxu0 0.0
      %3116 = vmatpush1.msra.mxu0 0.0
      %3117 = vmatprep.subr.mxu0 0.0
      %3118 = vmatpush1.msra.mxu0 0.0
      %3119 = vmatprep.subr.mxu0 0.0
      %3120 = vmatpush1.msra.mxu0 0.0
      %3121 = vmatprep.subr.mxu0 0.0
      %3122 = vmatpush1.msra.mxu0 0.0
      %3123 = vmatprep.subr.mxu0 0.0
      %3124 = vmatpush1.msra.mxu0 0.0
      %3125 = vmatprep.subr.mxu0 0.0
      %3126 = vmatpush1.msra.mxu0 0.0
      %3127 = vmatprep.subr.mxu0 0.0
      %3128 = vmatpush1.msra.mxu0 0.0
      %3129 = vmatprep.subr.mxu0 0.0
      %3130 = vmatpush1.msra.mxu0 0.0
      %3131 = vmatprep.subr.mxu0 0.0
      %3132 = vmatpush1.msra.mxu0 0.0
      %3133 = vmatprep.subr.mxu0 0.0
      %3134 = vmatpush1.msra.mxu0 0.0
      %3135 = vmatprep.subr.mxu0 0.0
      %3136 = vmatpush1.msra.mxu0 0.0
      %3137 = vmatprep.subr.mxu0 0.0
      %3138 = vmatpush1.msra.mxu0 0.0
      %3139 = vmatprep.subr.mxu0 0.0
      %3140 = vmatpush1.msra.mxu0 0.0
      %3141 = vmatprep.subr.mxu0 0.0
      %3142 = vmatpush1.msra.mxu0 0.0
      %3143 = vmatprep.subr.mxu0 0.0
      %3144 = vmatpush1.msra.mxu0 0.0
      %3145 = vmatprep.subr.mxu0 0.0
      %3146 = vmatpush1.msra.mxu0 0.0
      %3147 = vmatprep.subr.mxu0 0.0
      %3148 = vmatpush1.msra.mxu0 0.0
      %3149 = vmatprep.subr.mxu0 0.0
      %3150 = vmatpush1.msra.mxu0 0.0
      %3151 = vmatprep.subr.mxu0 0.0
      %3152 = vmatpush1.msra.mxu0 0.0
      %3153 = vmatprep.subr.mxu0 0.0
      %3154 = vmatpush1.msra.mxu0 0.0
      %3155 = vmatprep.subr.mxu0 0.0
      %3156 = vmatpush1.msra.mxu0 0.0
      %3157 = vmatprep.subr.mxu0 0.0
      %3158 = vmatpush1.msra.mxu0 0.0
      %3159 = vmatprep.subr.mxu0 0.0
      %3160 = vmatpush1.msra.mxu0 0.0
      %3161 = vmatprep.subr.mxu0 0.0
      %3162 = vmatpush1.msra.mxu0 0.0
      %3163 = vmatprep.subr.mxu0 0.0
      %3164 = vmatpush1.msra.mxu0 0.0
      %3165 = vmatprep.subr.mxu0 0.0
      %3166 = vmatpush1.msra.mxu0 0.0
      %3167 = vmatprep.subr.mxu0 0.0
      %3168 = vmatpush1.msra.mxu0 0.0
      %3169 = vmatprep.subr.mxu0 0.0
      %3170 = vmatpush1.msra.mxu0 0.0
      %3171 = vmatprep.subr.mxu0 0.0
      %3172 = vmatpush1.msra.mxu0 0.0
      %3173 = vmatprep.mubr.f32.mxu0 0.0
      %3174 = vmatmul.mubr.f32.gmra.mrb[0].mxu0 %v3107
      %v3175 = vpop.f32.mrb[0].mxu0
      %v3176 = vadd.f32 0.0, %v3175
      %v3177 = vpop.f32.mrb[0].mxu0
      %v3178 = vadd.f32 0.0, %v3177
      %3179 = vdwg.mxu0
      %3180 = vmatprep.subr.mxu0 0.0
      %3181 = vmatpush1.msra.mxu0 %v3102
      %3182 = vmatprep.subr.mxu0 0.0
      %3183 = vmatpush1.msra.mxu0 0.0
      %3184 = vmatprep.subr.mxu0 0.0
      %3185 = vmatpush1.msra.mxu0 0.0
      %3186 = vmatprep.subr.mxu0 0.0
      %3187 = vmatpush1.msra.mxu0 0.0
      %3188 = vmatprep.subr.mxu0 0.0
      %3189 = vmatpush1.msra.mxu0 0.0
      %3190 = vmatprep.subr.mxu0 0.0
      %3191 = vmatpush1.msra.mxu0 0.0
      %3192 = vmatprep.subr.mxu0 0.0
      %3193 = vmatpush1.msra.mxu0 0.0
      %3194 = vmatprep.subr.mxu0 0.0
      %3195 = vmatpush1.msra.mxu0 0.0
      %3196 = vmatprep.subr.mxu0 0.0
      %3197 = vmatpush1.msra.mxu0 0.0
      %3198 = vmatprep.subr.mxu0 0.0
      %3199 = vmatpush1.msra.mxu0 0.0
      %3200 = vmatprep.subr.mxu0 0.0
      %3201 = vmatpush1.msra.mxu0 0.0
      %3202 = vmatprep.subr.mxu0 0.0
      %3203 = vmatpush1.msra.mxu0 0.0
      %3204 = vmatprep.subr.mxu0 0.0
      %3205 = vmatpush1.msra.mxu0 0.0
      %3206 = vmatprep.subr.mxu0 0.0
      %3207 = vmatpush1.msra.mxu0 0.0
      %3208 = vmatprep.subr.mxu0 0.0
      %3209 = vmatpush1.msra.mxu0 0.0
      %3210 = vmatprep.subr.mxu0 0.0
      %3211 = vmatpush1.msra.mxu0 0.0
      %3212 = vmatprep.subr.mxu0 0.0
      %3213 = vmatpush1.msra.mxu0 0.0
      %3214 = vmatprep.subr.mxu0 0.0
      %3215 = vmatpush1.msra.mxu0 0.0
      %3216 = vmatprep.subr.mxu0 0.0
      %3217 = vmatpush1.msra.mxu0 0.0
      %3218 = vmatprep.subr.mxu0 0.0
      %3219 = vmatpush1.msra.mxu0 0.0
      %3220 = vmatprep.subr.mxu0 0.0
      %3221 = vmatpush1.msra.mxu0 0.0
      %3222 = vmatprep.subr.mxu0 0.0
      %3223 = vmatpush1.msra.mxu0 0.0
      %3224 = vmatprep.subr.mxu0 0.0
      %3225 = vmatpush1.msra.mxu0 0.0
      %3226 = vmatprep.subr.mxu0 0.0
      %3227 = vmatpush1.msra.mxu0 0.0
      %3228 = vmatprep.subr.mxu0 0.0
      %3229 = vmatpush1.msra.mxu0 0.0
      %3230 = vmatprep.subr.mxu0 0.0
      %3231 = vmatpush1.msra.mxu0 0.0
      %3232 = vmatprep.subr.mxu0 0.0
      %3233 = vmatpush1.msra.mxu0 0.0
      %3234 = vmatprep.subr.mxu0 0.0
      %3235 = vmatpush1.msra.mxu0 0.0
      %3236 = vmatprep.subr.mxu0 0.0
      %3237 = vmatpush1.msra.mxu0 0.0
      %3238 = vmatprep.subr.mxu0 0.0
      %3239 = vmatpush1.msra.mxu0 0.0
      %3240 = vmatprep.subr.mxu0 0.0
      %3241 = vmatpush1.msra.mxu0 0.0
      %3242 = vmatprep.subr.mxu0 0.0
      %3243 = vmatpush1.msra.mxu0 0.0
      %3244 = vmatprep.mubr.f32.mxu0 0.0
      %3245 = vmatmul.mubr.f32.gmra.mrb[0].mxu0 %v3107
      %v3246 = vpop.f32.mrb[0].mxu0
      %v3247 = vadd.f32 0.0, %v3246
      %v3248 = vpop.f32.mrb[0].mxu0
      %3249 = vdwg.mxu0
      %v3250 = vadd.f32 %v3089, %v3176
      %v3251 = vadd.f32 %v3090, %v3178
      %v3252 = vadd.f32 %v3091, %v3247
      %v3253 = vmul.f32 %v3250, %v286
      %v3254 = vmul.f32 %v3251, %v290
      %v3255 = vmul.f32 %v3252, %v294
      %v3256 = vadd.f32 %v3253, %v3254
      %v3257 = vadd.f32 %v3256, %v3255
      %3258 = vadd.xlane.f32.xlu0 %v3257
      %v3259 = vpop.xlane.xlu0 %3258
      %v3260 = vmul.f32 %v3253, %v3253
      %v3261 = vmul.f32 %v3254, %v3254
      %v3262 = vmul.f32 %v3255, %v3255
      %v3263 = vadd.f32 %v3260, %v3261
      %v3264 = vadd.f32 %v3263, %v3262
      %3265 = vadd.xlane.f32.xlu0 %v3264
      %v3266 = vpop.xlane.xlu0 %3265
      %v3267 = vmul.f32 %v3259, 0.00390625
      %v3268 = vmul.f32 %v3266, 0.00390625
      %v3269 = vmul.f32 %v3267, %v3267
      %v3270 = vsub.f32 %v3268, %v3269
      %v3271 = vmax.f32 %v3270, 0.0
      %v3272 = vadd.f32 %v3271, 1e-05
      %v3273 = vrsqrt.pop %v3272
      %v3274 = vld [vmem:[%s219] sm:$0xff]
      %v3275 = vld [vmem:[%s219 + $0x8] sm:$0xff]
      %v3276 = vld [vmem:[%s219 + $0x10] sm:$0xff]
      %v3277 = vld [vmem:[%s219 + $0x18] sm:$0xff]
      %v3278 = vsub.f32 %v3250, %v3267
      %v3279 = vsub.f32 %v3251, %v3267
      %v3280 = vsub.f32 %v3252, %v3267
      %v3281 = vmul.f32 %v3278, %v3273
      %v3282 = vmul.f32 %v3279, %v3273
      %v3283 = vmul.f32 %v3280, %v3273
      %3288 = vrot.lane.b32.xlu0 %v3274, 90
      %v3289 = vpop.permute.xlu0 %3288
      %3290 = vrot.lane.b32.xlu0 %v3275, 90
      %v3291 = vpop.permute.xlu0 %3290
      %3292 = vrot.lane.b32.xlu0 %v3276, 90
      %v3293 = vpop.permute.xlu0 %3292
      %3294 = vrot.lane.b32.xlu0 %v3277, 90
      %v3295 = vpop.permute.xlu0 %3294
      %v3296 = vsel %vm1611, %v3289, %v3291
      %v3297 = vsel %vm1611, %v3291, %v3293
      %v3298 = vsel %vm1611, %v3293, %v3295
      %v3302 = vadd.f32 %v3281, %v3296
      %v3303 = vadd.f32 %v3282, %v3297
      %v3304 = vadd.f32 %v3283, %v3298
      %v3305 = vmax.f32 %v3302, 0.0
      %v3306 = vmax.f32 %v3303, 0.0
      %v3307 = vmax.f32 %v3304, 0.0
      %3308 = vst [vmem:[%s224] sm:$0xff] %v3305
      %3309 = vst [vmem:[%s224 + $0x8] sm:$0xff] %v3306
      %3310 = vst [vmem:[%s224 + $0x10] sm:$0xff] %v3307
      %p3311 = scmp.lt.s32.totalorder %s16, 1
      %s3312 = scalar_select %p3311, %s16, 1
      %s3313 = smul.addr %s3312, 3
      %s3314 = smul.addr %s3313, 8
      %s3315 = scalar_lea.vmem %s5, %s3314
      // Predicated region
      $region41: #{basic_block_pallas.1} parent=39 // pred_check
        %p3316 = pneg %p144
      $region42: #{basic_block_pallas.1} parent=39 // pred_check_branch
        %3318 = sbr.rel (%p3316) target = $region44
      $region43: #{basic_block_pallas.1} parent=39 // pred_region
        _
      $region44: #{basic_block_pallas.1} parent=39 // pred_fallthru
        _
    $region40: #{basic_block_pallas.1} parent=5 // pred_fallthru
      _
    %p3319 = scmp.le.s32.totalorder 2, %s11
    // Predicated region
    $region45: #{basic_block_pallas.1} parent=5 // pred_check
      %p3320 = pneg %p3319
    $region46: #{basic_block_pallas.1} parent=5 // pred_check_branch
      %3322 = sbr.rel (%p3320) target = $region48
    $region47: #{basic_block_pallas.1} parent=5 // pred_region
      %s3323 = ssub.s32 %s11, 2
      // Predicated region
      $region49: #{basic_block_pallas.1} parent=47 // pred_check
        %p3324 = pneg %p150
      $region50: #{basic_block_pallas.1} parent=47 // pred_check_branch
        %3326 = sbr.rel (%p3324) target = $region52
      $region51: #{basic_block_pallas.1} parent=47 // pred_region
        %p3327 = scmp.lt.s32.totalorder %s17, 1
        %s3328 = scalar_select %p3327, %s17, 1
        %s3329 = smul.addr %s3328, 3
        %s3330 = smul.addr %s3329, 8
        %s3331 = scalar_lea.vmem %s5, %s3330
      $region52: #{basic_block_pallas.1} parent=47 // pred_fallthru
        _
    $region48: #{basic_block_pallas.1} parent=5 // pred_fallthru
      _
  $region6: #{basic_block_pallas.1} parent=0 // loop_footer
    %s15 = sadd.s32 1, %s11
  $region7: #{basic_block_pallas.1} parent=0 // loop_footer_branch
    %10 = sbr.rel target = $region3
  $region8: #{basic_block_pallas.1} parent=0 // loop_exit
    _

</llo_original>
